<compile_context>
chip_gen: v5e
topology: v5e:2x2
jax: 0.10.0
libtpu: 0.0.40
codegen_flags: <defaults>
</compile_context>

<pallas_src>
import functools
import math

import jax
import jax.numpy as jnp
from jax.experimental import pallas as pl
from jax.experimental.pallas import tpu as pltpu

_BN_EPS = 1e-5
_ROW_GRAN = 16                    # bf16 sublane packing -> 16-row granularity
_MAX_ROW_TILE = 512               # ~85% of HBM roofline for streamed tiles
_NODE_RESIDENT_LIMIT = 2048       # max padded node rows kept resident in VMEM
_VMEM_LIMIT = 48 * 1024 * 1024    # explicit scoped-VMEM budget (< v7x 64 MiB)

_COMPILER_PARAMS = pltpu.CompilerParams(
    dimension_semantics=("parallel",),
    vmem_limit_bytes=_VMEM_LIMIT,
)

# TODO(synk): resident-weight BlockSpecs (constant index_map) could be marked
# pipeline_mode=pl.Buffered(1) to halve their VMEM footprint on v7x; skipped
# here because the weights are tiny at F=128 and single-buffering is not
# uniformly accepted by the lowering.


# ----------------------------------------------------------------------------
# helpers: row padding / tile selection
# ----------------------------------------------------------------------------
def _round_up(x, m):
    return (x + m - 1) // m * m


def _choose_rows(m):
    """Return (padded_rows, row_tile).

    Always emits >= 2 grid steps when possible (v7x megacore), tiles capped at
    512 rows (fits the 64 MiB v7x VMEM with resident weights + double buffers).
    """
    mp = _round_up(m, _ROW_GRAN)
    if mp <= _ROW_GRAN:
        return mp, mp
    if mp <= 2 * _MAX_ROW_TILE:
        tile = _round_up((mp + 1) // 2, _ROW_GRAN)
        return 2 * tile, tile
    mp = _round_up(m, _MAX_ROW_TILE)
    return mp, _MAX_ROW_TILE


def _pad_rows(x, mp):
    m = x.shape[0]
    if m == mp:
        return x
    return jnp.pad(x, ((0, mp - m), (0, 0)))


def _bn_fold(bn, folded_bias):
    """Fold eval-mode BatchNorm1d + a preceding linear bias into scale/shift."""
    scale = bn["gamma"] / jnp.sqrt(bn["var"] + _BN_EPS)
    shift = bn["beta"] - bn["mean"] * scale + folded_bias * scale
    return scale, shift


# ----------------------------------------------------------------------------
# Kernel 1: fused matmul + bias (the concatenated [K|V|Q] projection)
# ----------------------------------------------------------------------------
def _matmul_bias_kernel(x_ref, w_ref, b_ref, o_ref):
    acc = jnp.dot(x_ref[...].astype(jnp.bfloat16), w_ref[...],
                  preferred_element_type=jnp.float32)
    o_ref[...] = (acc + b_ref[...]).astype(o_ref.dtype)


def fused_linear(x, w_bf16, b, out_dtype=jnp.bfloat16):
    m, k = x.shape
    n = w_bf16.shape[1]
    mp, tm = _choose_rows(m)
    xp = _pad_rows(x, mp)
    out = pl.pallas_call(
        _matmul_bias_kernel,
        out_shape=jax.ShapeDtypeStruct((mp, n), out_dtype),
        grid_spec=pltpu.PrefetchScalarGridSpec(
            num_scalar_prefetch=0,
            grid=(mp // tm,),
            in_specs=[
                pl.BlockSpec((tm, k), lambda i: (i, 0)),
                pl.BlockSpec((k, n), lambda i: (0, 0)),   # weight resident
                pl.BlockSpec((1, n), lambda i: (0, 0)),
            ],
            out_specs=pl.BlockSpec((tm, n), lambda i: (i, 0)),
        ),
        compiler_params=_COMPILER_PARAMS,
    )(xp, w_bf16, b.reshape(1, n))
    return out[:m]


# ----------------------------------------------------------------------------
# Kernel 2: per-edge attention (gather + W_E projection + head reduction fused)
#   eproj  = e_raw @ W_E + b_E
#   score  = K[src] * Q[dst] / sqrt(head_dim) * eproj          (-> e_out)
#   s      = exp(clamp(head_sum(score), -5, 5))                (compact, (te,Hp))
#   wv     = V[src] * broadcast(s)
# head_sum uses a constant (F,Hp) ones matmul; the broadcast back uses (Hp,F).
# ----------------------------------------------------------------------------
def _attn_core(eraw, k, q, v, we, be, fh, hf, eout_ref, s_ref, wv_ref, inv_scale):
    eproj = jnp.dot(eraw.astype(jnp.bfloat16), we,
                    preferred_element_type=jnp.float32) + be
    score = (k * q) * inv_scale * eproj                      # f32 elementwise
    eout_ref[...] = score.astype(eout_ref.dtype)
    ssum = jnp.dot(score, fh, preferred_element_type=jnp.float32)   # (te, Hp)
    s = jnp.exp(jnp.clip(ssum, -5.0, 5.0))
    s_ref[...] = s.astype(s_ref.dtype)
    s_full = jnp.dot(s, hf, preferred_element_type=jnp.float32)     # (te, F)
    wv_ref[...] = (v * s_full).astype(wv_ref.dtype)


def _edge_attn_gather_kernel(eraw_ref, src_ref, dst_ref, kvq_ref, we_ref,
                             be_ref, fh_ref, hf_ref,
                             eout_ref, s_ref, wv_ref, *, inv_scale):
    te = eraw_ref.shape[0]
    n_pad = kvq_ref.shape[0]
    f = kvq_ref.shape[1] // 3
    # one-hot row selection against the VMEM-resident node table (exact gather)
    lane = jax.lax.broadcasted_iota(jnp.int32, (te, n_pad), 1)
    oh_src = jnp.where(lane == src_ref[...], 1.0, 0.0).astype(jnp.bfloat16)
    oh_dst = jnp.where(lane == dst_ref[...], 1.0, 0.0).astype(jnp.bfloat16)
    kv = jnp.dot(oh_src, kvq_ref[:, :2 * f], preferred_element_type=jnp.float32)
    q = jnp.dot(oh_dst, kvq_ref[:, 2 * f:3 * f], preferred_element_type=jnp.float32)
    _attn_core(eraw_ref[...], kv[:, :f], q, kv[:, f:],
               we_ref[...], be_ref[...], fh_ref[...], hf_ref[...],
               eout_ref, s_ref, wv_ref, inv_scale)


def _edge_attn_kernel(eraw_ref, ksrc_ref, qdst_ref, vsrc_ref, we_ref, be_ref,
                      fh_ref, hf_ref, eout_ref, s_ref, wv_ref, *, inv_scale):
    _attn_core(eraw_ref[...],
               ksrc_ref[...].astype(jnp.float32),
               qdst_ref[...].astype(jnp.float32),
               vsrc_ref[...].astype(jnp.float32),
               we_ref[...], be_ref[...], fh_ref[...], hf_ref[...],
               eout_ref, s_ref, wv_ref, inv_scale)


def edge_attention(e_raw, w_e, b_e, kvq, src, dst, ones_fh, ones_hf, *, head_dim):
    ecount, in_dim = e_raw.shape
    f = w_e.shape[1]
    hp = ones_fh.shape[1]
    n_nodes = kvq.shape[0]
    inv_scale = 1.0 / math.sqrt(head_dim)

    ep, te = _choose_rows(ecount)
    e_raw_p = _pad_rows(e_raw, ep)

    row_f = pl.BlockSpec((te, f), lambda i: (i, 0))
    row_in = pl.BlockSpec((te, in_dim), lambda i: (i, 0))
    row_h = pl.BlockSpec((te, hp), lambda i: (i, 0))
    const = lambda s: pl.BlockSpec(s, lambda i: (0, 0))

    out_shape = (
        jax.ShapeDtypeStruct((ep, f), jnp.bfloat16),   # raw per-dim scores (e_out)
        jax.ShapeDtypeStruct((ep, hp), jnp.float32),   # compact attention coeff
        jax.ShapeDtypeStruct((ep, f), jnp.float32),    # coeff * V[src]
    )
    out_specs = (row_f, row_h, row_f)
    common_specs = [const((in_dim, f)), const((1, f)),
                    const((f, hp)), const((hp, f))]
    common_args = (w_e, b_e.reshape(1, f), ones_fh, ones_hf)

    n_pad = _round_up(n_nodes, 128)
    if n_pad <= _NODE_RESIDENT_LIMIT:
        # Fused gather: [K|V|Q] table stays resident in VMEM; per-edge rows are
        # selected by a one-hot MXU matmul. Removes the 3x(E,F) HBM round trip.
        kvq_p = _pad_rows(kvq, n_pad)
        src_col = _pad_rows(src.astype(jnp.int32).reshape(-1, 1), ep)
        dst_col = _pad_rows(dst.astype(jnp.int32).reshape(-1, 1), ep)
        kernel = functools.partial(_edge_attn_gather_kernel, inv_scale=inv_scale)
        in_specs = [row_in,
                    pl.BlockSpec((te, 1), lambda i: (i, 0)),
                    pl.BlockSpec((te, 1), lambda i: (i, 0)),
                    const((n_pad, 3 * f))] + common_specs
        args = (e_raw_p, src_col, dst_col, kvq_p) + common_args
    else:
        # TODO(synk): for large node sets the one-hot MXU gather costs more than
        # the XLA gather's HBM round-trip and the table no longer fits VMEM, so
        # fall back to a plain-JAX (bf16) gather here; a true per-row DMA gather
        # would need manual descriptors.
        k_src = _pad_rows(kvq[:, :f][src], ep)
        v_src = _pad_rows(kvq[:, f:2 * f][src], ep)
        q_dst = _pad_rows(kvq[:, 2 * f:][dst], ep)
        kernel = functools.partial(_edge_attn_kernel, inv_scale=inv_scale)
        in_specs = [row_in, row_f, row_f, row_f] + common_specs
        args = (e_raw_p, k_src, q_dst, v_src) + common_args

    e_out, s, wv = pl.pallas_call(
        kernel,
        out_shape=out_shape,
        grid_spec=pltpu.PrefetchScalarGridSpec(
            num_scalar_prefetch=0,
            grid=(ep // te,),
            in_specs=in_specs,
            out_specs=out_specs,
        ),
        compiler_params=_COMPILER_PARAMS,
    )(*args)
    # padded edge rows hold garbage-but-finite values: slice BEFORE segment_sum
    return e_out[:ecount], s[:ecount], wv[:ecount]


# ----------------------------------------------------------------------------
# Kernels 3 & 4: fused "tail"  (O-proj + residual + BN1 + FFN + residual + BN2)
# Node path additionally fuses the wV/(z+1e-6) normalization (z kept compact).
# ----------------------------------------------------------------------------
def _ffn_bn_core(x, w1, b1, w2, s2, t2):
    hid = jnp.dot(x.astype(jnp.bfloat16), w1, preferred_element_type=jnp.float32)
    hid = jnp.maximum(hid + b1, 0.0)
    o2 = jnp.dot(hid.astype(jnp.bfloat16), w2, preferred_element_type=jnp.float32)
    return (x + o2) * s2 + t2


def _node_tail_kernel(wv_ref, z_ref, res_ref, hf_ref, wo_ref, w1_ref, b1_ref,
                      w2_ref, s1_ref, t1_ref, s2_ref, t2_ref, out_ref):
    # broadcast compact z (tm, Hp) across head_dim lanes via tiny MXU matmul
    zf = jnp.dot(z_ref[...], hf_ref[...], preferred_element_type=jnp.float32)
    attn = wv_ref[...] * pl.reciprocal(zf + 1e-6, approx=True)
    o = jnp.dot(attn.astype(jnp.bfloat16), wo_ref[...],
                preferred_element_type=jnp.float32)
    x = (res_ref[...] + o) * s1_ref[...] + t1_ref[...]       # BN1 (bias folded)
    out_ref[...] = _ffn_bn_core(x, w1_ref[...], b1_ref[...], w2_ref[...],
                                s2_ref[...], t2_ref[...]).astype(out_ref.dtype)


def _edge_tail_kernel(attn_ref, res_ref, wo_ref, w1_ref, b1_ref, w2_ref,
                      s1_ref, t1_ref, s2_ref, t2_ref, out_ref):
    o = jnp.dot(attn_ref[...], wo_ref[...], preferred_element_type=jnp.float32)
    x = (res_ref[...] + o) * s1_ref[...] + t1_ref[...]       # BN1 (bias folded)
    out_ref[...] = _ffn_bn_core(x, w1_ref[...], b1_ref[...], w2_ref[...],
                                s2_ref[...], t2_ref[...]).astype(out_ref.dtype)


def node_tail(wv, z, h_res, ones_hf, o_lin, ffn1, ffn2, bn1, bn2):
    m, f = h_res.shape
    hp = z.shape[1]
    h2 = ffn1["w"].shape[1]
    bf = jnp.bfloat16
    s1, t1 = _bn_fold(bn1, o_lin["b"])
    s2, t2 = _bn_fold(bn2, ffn2["b"])
    mp, tm = _choose_rows(m)
    row = pl.BlockSpec((tm, f), lambda i: (i, 0))
    const = lambda s: pl.BlockSpec(s, lambda i: (0, 0))
    out = pl.pallas_call(
        _node_tail_kernel,
        out_shape=jax.ShapeDtypeStruct((mp, f), jnp.float32),
        grid_spec=pltpu.PrefetchScalarGridSpec(
            num_scalar_prefetch=0,
            grid=(mp // tm,),
            in_specs=[row,
                      pl.BlockSpec((tm, hp), lambda i: (i, 0)),
                      row,
                      const((hp, f)),
                      const((f, f)),        # W_O resident
                      const((f, h2)),       # FFN W1 resident
                      const((1, h2)),
                      const((h2, f)),       # FFN W2 resident
                      const((1, f)), const((1, f)), const((1, f)), const((1, f))],
            out_specs=row,
        ),
        compiler_params=_COMPILER_PARAMS,
    )(_pad_rows(wv, mp), _pad_rows(z, mp), _pad_rows(h_res, mp), ones_hf,
      o_lin["w"].astype(bf), ffn1["w"].astype(bf), ffn1["b"].reshape(1, h2),
      ffn2["w"].astype(bf),
      s1.reshape(1, f), t1.reshape(1, f), s2.reshape(1, f), t2.reshape(1, f))
    return out[:m]


def edge_tail(attn, res, o_lin, ffn1, ffn2, bn1, bn2):
    m, f = res.shape
    h2 = ffn1["w"].shape[1]
    bf = jnp.bfloat16
    s1, t1 = _bn_fold(bn1, o_lin["b"])
    s2, t2 = _bn_fold(bn2, ffn2["b"])
    mp, tm = _choose_rows(m)
    row = pl.BlockSpec((tm, f), lambda i: (i, 0))
    const = lambda s: pl.BlockSpec(s, lambda i: (0, 0))
    out = pl.pallas_call(
        _edge_tail_kernel,
        out_shape=jax.ShapeDtypeStruct((mp, f), jnp.float32),
        grid_spec=pltpu.PrefetchScalarGridSpec(
            num_scalar_prefetch=0,
            grid=(mp // tm,),
            in_specs=[row, row,
                      const((f, f)), const((f, h2)), const((1, h2)), const((h2, f)),
                      const((1, f)), const((1, f)), const((1, f)), const((1, f))],
            out_specs=row,
        ),
        compiler_params=_COMPILER_PARAMS,
    )(_pad_rows(attn, mp), _pad_rows(res, mp),
      o_lin["w"].astype(bf), ffn1["w"].astype(bf), ffn1["b"].reshape(1, h2),
      ffn2["w"].astype(bf),
      s1.reshape(1, f), t1.reshape(1, f), s2.reshape(1, f), t2.reshape(1, f))
    return out[:m]


# ----------------------------------------------------------------------------
# Parameter construction (PyTorch-style deterministic init)
# ----------------------------------------------------------------------------
def _init_linear(key, in_dim, out_dim, dtype=jnp.float32):
    kw, kb = jax.random.split(key)
    bound = 1.0 / math.sqrt(in_dim)
    w = jax.random.uniform(kw, (in_dim, out_dim), dtype, -bound, bound)
    b = jax.random.uniform(kb, (out_dim,), dtype, -bound, bound)
    return {"w": w, "b": b}


def _init_bn(dim, dtype=jnp.float32):
    return {
        "gamma": jnp.ones((dim,), dtype),
        "beta": jnp.zeros((dim,), dtype),
        "mean": jnp.zeros((dim,), dtype),
        "var": jnp.ones((dim,), dtype),
    }


def init_graph_transformer_params(key, in_dim, out_dim):
    keys = jax.random.split(key, 10)
    p = {}
    p["W_Q"] = _init_linear(keys[0], in_dim, out_dim)
    p["W_K"] = _init_linear(keys[1], in_dim, out_dim)
    p["W_V"] = _init_linear(keys[2], in_dim, out_dim)
    p["W_E"] = _init_linear(keys[3], in_dim, out_dim)
    p["O_h"] = _init_linear(keys[4], out_dim, out_dim)
    p["O_e"] = _init_linear(keys[5], out_dim, out_dim)
    p["FFN_h1"] = _init_linear(keys[6], out_dim, out_dim * 2)
    p["FFN_h2"] = _init_linear(keys[7], out_dim * 2, out_dim)
    p["FFN_e1"] = _init_linear(keys[8], out_dim, out_dim * 2)
    p["FFN_e2"] = _init_linear(keys[9], out_dim * 2, out_dim)
    p["bn1_h"] = _init_bn(out_dim)
    p["bn1_e"] = _init_bn(out_dim)
    p["bn2_h"] = _init_bn(out_dim)
    p["bn2_e"] = _init_bn(out_dim)
    return p


# ----------------------------------------------------------------------------
# Forward pass (only the destination scatter-add stays in plain JAX)
# ----------------------------------------------------------------------------
def graph_transformer_layer(params, h, e, src, dst, *, num_heads):
    n_nodes, in_dim = h.shape
    f = params["W_Q"]["w"].shape[1]
    assert in_dim == f, "residual paths require in_dim == out_dim"
    head_dim = f // num_heads
    hp = _round_up(num_heads, 8)          # head axis padded to 8 sublanes
    bf = jnp.bfloat16

    # constant head-sum (F,Hp) and head-broadcast (Hp,F) matrices
    head_of_lane = jnp.repeat(jnp.arange(num_heads, dtype=jnp.int32), head_dim)
    ones_fh = (head_of_lane[:, None] ==
               jnp.arange(hp, dtype=jnp.int32)[None, :]).astype(jnp.float32)
    ones_hf = ones_fh.T

    # 1) fused [K|V|Q] projection: one wide (in_dim x 3F) bf16 matmul
    w_kvq = jnp.concatenate([params["W_K"]["w"], params["W_V"]["w"],
                             params["W_Q"]["w"]], axis=1).astype(bf)
    b_kvq = jnp.concatenate([params["W_K"]["b"], params["W_V"]["b"],
                             params["W_Q"]["b"]], axis=0)
    kvq = fused_linear(h, w_kvq, b_kvq)                         # (N, 3F) bf16

    # 2) per-edge attention (row gather + W_E projection + head reduction fused)
    e_score, s, wv_e = edge_attention(
        e, params["W_E"]["w"].astype(bf), params["W_E"]["b"],
        kvq, src, dst, ones_fh, ones_hf, head_dim=head_dim)

    # TODO(synk): destination scatter-add kept in XLA (segment_sum); irregular
    # scatter has no clean BlockSpec expression.
    wV = jax.ops.segment_sum(wv_e, dst, num_segments=n_nodes)   # (N, F)  f32
    z = jax.ops.segment_sum(s, dst, num_segments=n_nodes)       # (N, Hp) f32

    # 3) node tail: z-normalize + O_h + residual + BN1 + FFN_h + residual + BN2
    h_new = node_tail(wV, z, h, ones_hf, params["O_h"], params["FFN_h1"],
                      params["FFN_h2"], params["bn1_h"], params["bn2_h"])
    # 4) edge tail: O_e + residual + BN1 + FFN_e + residual + BN2
    e_new = edge_tail(e_score, e, params["O_e"], params["FFN_e1"],
                      params["FFN_e2"], params["bn1_e"], params["bn2_e"])
    return h_new, e_new


# ----------------------------------------------------------------------------
if __name__ == "__main__":
    in_dim = out_dim = 128     # lane-dense feature dim (full 128-lane vregs)
    num_heads = 4              # head_dim = 32
    n_nodes = 64
    n_edges = 256

    key = jax.random.PRNGKey(0)
    k_h, k_e, k_src, k_dst, k_params = jax.random.split(key, 5)

    h = jax.random.normal(k_h, (n_nodes, in_dim), jnp.float32)
    e = jax.random.normal(k_e, (n_edges, in_dim), jnp.float32)
    src = jax.random.randint(k_src, (n_edges,), 0, n_nodes)
    dst = jax.random.randint(k_dst, (n_edges,), 0, n_nodes)

    params = init_graph_transformer_params(k_params, in_dim, out_dim)

    fwd = jax.jit(functools.partial(graph_transformer_layer,
                                    num_heads=num_heads))
    h_out, e_out = fwd(params, h, e, src, dst)
    jax.block_until_ready((h_out, e_out))

    assert h_out.shape == (n_nodes, out_dim)
    assert e_out.shape == (n_edges, out_dim)
    assert bool(jnp.all(jnp.isfinite(h_out))) and bool(jnp.all(jnp.isfinite(e_out)))
    print("KERNEL_OK")
</pallas_src>

<mosaic_0001>
module attributes {stable_mosaic.version = 11 : i64} {
  func.func @_matmul_bias_kernel(%arg0: i32, %arg1: memref<32x128xf32, #tpu.memory_space<vmem>>, %arg2: memref<128x384xbf16, #tpu.memory_space<vmem>>, %arg3: memref<1x384xf32, #tpu.memory_space<vmem>>, %arg4: memref<32x384xbf16, #tpu.memory_space<vmem>>) attributes {dimension_semantics = [#tpu.dimension_semantics<parallel>], iteration_bounds = array<i64: 2>, scalar_prefetch = 0 : i64, scratch_operands = 0 : i64, tpu.core_type = #tpu.core_type<tc>, window_params = [{transform_indices = @transform_0, window_bounds = array<i64: 32, 128>}, {pipeline_mode = #tpu.pipeline_mode<synchronous>, transform_indices = @transform_1, window_bounds = array<i64: 128, 384>}, {pipeline_mode = #tpu.pipeline_mode<synchronous>, transform_indices = @transform_2, window_bounds = array<i64: 1, 384>}, {transform_indices = @transform_3, window_bounds = array<i64: 32, 384>}]} {
    %c0 = arith.constant 0 : index
    %c0_0 = arith.constant 0 : index
    %0 = vector.load %arg1[%c0, %c0_0] : memref<32x128xf32, #tpu.memory_space<vmem>>, vector<32x128xf32>
    %1 = arith.truncf %0 : vector<32x128xf32> to vector<32x128xbf16>
    %c0_1 = arith.constant 0 : index
    %c0_2 = arith.constant 0 : index
    %2 = vector.load %arg2[%c0_1, %c0_2] : memref<128x384xbf16, #tpu.memory_space<vmem>>, vector<128x384xbf16>
    %cst = arith.constant dense<0.000000e+00> : vector<32x384xf32>
    %3 = tpu.matmul %1, %2, %cst {dimension_numbers = #tpu.dot_dimension_numbers<[1], [0], [0], [1], [0, 0, 1, 1], [], []>} : vector<32x128xbf16>, vector<128x384xbf16>, vector<32x384xf32> -> vector<32x384xf32>
    %c0_3 = arith.constant 0 : index
    %c0_4 = arith.constant 0 : index
    %4 = vector.load %arg3[%c0_3, %c0_4] : memref<1x384xf32, #tpu.memory_space<vmem>>, vector<1x384xf32>
    %5 = vector.broadcast %4 : vector<1x384xf32> to vector<32x384xf32>
    %6 = arith.addf %3, %5 : vector<32x384xf32>
    %7 = arith.truncf %6 : vector<32x384xf32> to vector<32x384xbf16>
    %c0_5 = arith.constant 0 : index
    %c0_6 = arith.constant 0 : index
    %8 = vector.load %arg4[%c0_5, %c0_6] : memref<32x384xbf16, #tpu.memory_space<vmem>>, vector<32x384xbf16>
    tpu.vector_store %arg4[%c0_5, %c0_6], %7 {strides = array<i32>} : memref<32x384xbf16, #tpu.memory_space<vmem>>, vector<32x384xbf16>,
    return
  }
  func.func @transform_0(%arg0: i32) -> (i32, i32) {
    %c0_i32 = arith.constant 0 : i32
    %c0_i32_0 = arith.constant 0 : i32
    return %arg0, %c0_i32 : i32, i32
  }
  func.func @transform_1(%arg0: i32) -> (i32, i32) {
    %c0_i32 = arith.constant 0 : i32
    %c0_i32_0 = arith.constant 0 : i32
    %c0_i32_1 = arith.constant 0 : i32
    return %c0_i32, %c0_i32_0 : i32, i32
  }
  func.func @transform_2(%arg0: i32) -> (i32, i32) {
    %c0_i32 = arith.constant 0 : i32
    %c0_i32_0 = arith.constant 0 : i32
    %c0_i32_1 = arith.constant 0 : i32
    return %c0_i32, %c0_i32_0 : i32, i32
  }
  func.func @transform_3(%arg0: i32) -> (i32, i32) {
    %c0_i32 = arith.constant 0 : i32
    %c0_i32_0 = arith.constant 0 : i32
    return %arg0, %c0_i32 : i32, i32
  }
}

module attributes {stable_mosaic.version = 11 : i64} {
  func.func @_edge_attn_gather_kernel(%arg0: i32, %arg1: memref<128x128xf32, #tpu.memory_space<vmem>>, %arg2: memref<128x1xi32, #tpu.memory_space<vmem>>, %arg3: memref<128x1xi32, #tpu.memory_space<vmem>>, %arg4: memref<128x384xbf16, #tpu.memory_space<vmem>>, %arg5: memref<128x128xbf16, #tpu.memory_space<vmem>>, %arg6: memref<1x128xf32, #tpu.memory_space<vmem>>, %arg7: memref<128x8xf32, #tpu.memory_space<vmem>>, %arg8: memref<8x128xf32, #tpu.memory_space<vmem>>, %arg9: memref<128x128xbf16, #tpu.memory_space<vmem>>, %arg10: memref<128x8xf32, #tpu.memory_space<vmem>>, %arg11: memref<128x128xf32, #tpu.memory_space<vmem>>) attributes {dimension_semantics = [#tpu.dimension_semantics<parallel>], iteration_bounds = array<i64: 2>, scalar_prefetch = 0 : i64, scratch_operands = 0 : i64, tpu.core_type = #tpu.core_type<tc>, window_params = [{transform_indices = @transform_0, window_bounds = array<i64: 128, 128>}, {transform_indices = @transform_1, window_bounds = array<i64: 128, 1>}, {transform_indices = @transform_2, window_bounds = array<i64: 128, 1>}, {pipeline_mode = #tpu.pipeline_mode<synchronous>, transform_indices = @transform_3, window_bounds = array<i64: 128, 384>}, {pipeline_mode = #tpu.pipeline_mode<synchronous>, transform_indices = @transform_4, window_bounds = array<i64: 128, 128>}, {pipeline_mode = #tpu.pipeline_mode<synchronous>, transform_indices = @transform_5, window_bounds = array<i64: 1, 128>}, {pipeline_mode = #tpu.pipeline_mode<synchronous>, transform_indices = @transform_6, window_bounds = array<i64: 128, 8>}, {pipeline_mode = #tpu.pipeline_mode<synchronous>, transform_indices = @transform_7, window_bounds = array<i64: 8, 128>}, {transform_indices = @transform_8, window_bounds = array<i64: 128, 128>}, {transform_indices = @transform_9, window_bounds = array<i64: 128, 8>}, {transform_indices = @transform_10, window_bounds = array<i64: 128, 128>}]} {
    %0 = tpu.iota {dimensions = array<i32: 1>} : vector<128x128xi32>
    %c0 = arith.constant 0 : index
    %c0_0 = arith.constant 0 : index
    %1 = vector.load %arg2[%c0, %c0_0] : memref<128x1xi32, #tpu.memory_space<vmem>>, vector<128x1xi32>
    %2 = vector.broadcast %1 : vector<128x1xi32> to vector<128x128xi32>
    %3 = arith.cmpi eq, %0, %2 : vector<128x128xi32>
    %cst = arith.constant 1.000000e+00 : f32
    %cst_1 = arith.constant 0.000000e+00 : f32
    %4 = vector.broadcast %cst : f32 to vector<128x128xf32>
    %5 = vector.broadcast %cst_1 : f32 to vector<128x128xf32>
    %6 = arith.select %3, %4, %5 : vector<128x128xi1>, vector<128x128xf32>
    %7 = arith.truncf %6 : vector<128x128xf32> to vector<128x128xbf16>
    %c0_2 = arith.constant 0 : index
    %c0_3 = arith.constant 0 : index
    %8 = vector.load %arg3[%c0_2, %c0_3] : memref<128x1xi32, #tpu.memory_space<vmem>>, vector<128x1xi32>
    %9 = vector.broadcast %8 : vector<128x1xi32> to vector<128x128xi32>
    %10 = arith.cmpi eq, %0, %9 : vector<128x128xi32>
    %cst_4 = arith.constant 1.000000e+00 : f32
    %cst_5 = arith.constant 0.000000e+00 : f32
    %11 = vector.broadcast %cst_4 : f32 to vector<128x128xf32>
    %12 = vector.broadcast %cst_5 : f32 to vector<128x128xf32>
    %13 = arith.select %10, %11, %12 : vector<128x128xi1>, vector<128x128xf32>
    %14 = arith.truncf %13 : vector<128x128xf32> to vector<128x128xbf16>
    %c0_6 = arith.constant 0 : index
    %c0_7 = arith.constant 0 : index
    %15 = vector.load %arg4[%c0_6, %c0_7] : memref<128x384xbf16, #tpu.memory_space<vmem>>, vector<128x256xbf16>
    %cst_8 = arith.constant dense<0.000000e+00> : vector<128x256xf32>
    %16 = tpu.matmul %7, %15, %cst_8 {dimension_numbers = #tpu.dot_dimension_numbers<[1], [0], [0], [1], [0, 0, 1, 1], [], []>} : vector<128x128xbf16>, vector<128x256xbf16>, vector<128x256xf32> -> vector<128x256xf32>
    %c0_9 = arith.constant 0 : index
    %c256 = arith.constant 256 : index
    %17 = vector.load %arg4[%c0_9, %c256] : memref<128x384xbf16, #tpu.memory_space<vmem>>, vector<128x128xbf16>
    %cst_10 = arith.constant dense<0.000000e+00> : vector<128x128xf32>
    %18 = tpu.matmul %14, %17, %cst_10 {dimension_numbers = #tpu.dot_dimension_numbers<[1], [0], [0], [1], [0, 0, 1, 1], [], []>} : vector<128x128xbf16>, vector<128x128xbf16>, vector<128x128xf32> -> vector<128x128xf32>
    %c0_11 = arith.constant 0 : index
    %c0_12 = arith.constant 0 : index
    %19 = vector.load %arg1[%c0_11, %c0_12] : memref<128x128xf32, #tpu.memory_space<vmem>>, vector<128x128xf32>
    %20 = vector.extract_strided_slice %16 {offsets = [0, 0], sizes = [128, 128], strides = [1, 1]} : vector<128x256xf32> to vector<128x128xf32>
    %21 = vector.extract_strided_slice %16 {offsets = [0, 128], sizes = [128, 128], strides = [1, 1]} : vector<128x256xf32> to vector<128x128xf32>
    %c0_13 = arith.constant 0 : index
    %c0_14 = arith.constant 0 : index
    %22 = vector.load %arg5[%c0_13, %c0_14] : memref<128x128xbf16, #tpu.memory_space<vmem>>, vector<128x128xbf16>
    %c0_15 = arith.constant 0 : index
    %c0_16 = arith.constant 0 : index
    %23 = vector.load %arg6[%c0_15, %c0_16] : memref<1x128xf32, #tpu.memory_space<vmem>>, vector<1x128xf32>
    %c0_17 = arith.constant 0 : index
    %c0_18 = arith.constant 0 : index
    %24 = vector.load %arg7[%c0_17, %c0_18] : memref<128x8xf32, #tpu.memory_space<vmem>>, vector<128x8xf32>
    %c0_19 = arith.constant 0 : index
    %c0_20 = arith.constant 0 : index
    %25 = vector.load %arg8[%c0_19, %c0_20] : memref<8x128xf32, #tpu.memory_space<vmem>>, vector<8x128xf32>
    %26 = arith.truncf %19 : vector<128x128xf32> to vector<128x128xbf16>
    %cst_21 = arith.constant dense<0.000000e+00> : vector<128x128xf32>
    %27 = tpu.matmul %26, %22, %cst_21 {dimension_numbers = #tpu.dot_dimension_numbers<[1], [0], [0], [1], [0, 0, 1, 1], [], []>} : vector<128x128xbf16>, vector<128x128xbf16>, vector<128x128xf32> -> vector<128x128xf32>
    %28 = vector.broadcast %23 : vector<1x128xf32> to vector<128x128xf32>
    %29 = arith.addf %27, %28 : vector<128x128xf32>
    %30 = arith.mulf %20, %18 : vector<128x128xf32>
    %cst_22 = arith.constant 0.176776692 : f32
    %31 = vector.broadcast %cst_22 : f32 to vector<128x128xf32>
    %32 = arith.mulf %30, %31 : vector<128x128xf32>
    %33 = arith.mulf %32, %29 : vector<128x128xf32>
    %34 = arith.truncf %33 : vector<128x128xf32> to vector<128x128xbf16>
    %c0_23 = arith.constant 0 : index
    %c0_24 = arith.constant 0 : index
    %35 = vector.load %arg9[%c0_23, %c0_24] : memref<128x128xbf16, #tpu.memory_space<vmem>>, vector<128x128xbf16>
    tpu.vector_store %arg9[%c0_23, %c0_24], %34 {strides = array<i32>} : memref<128x128xbf16, #tpu.memory_space<vmem>>, vector<128x128xbf16>,
    %cst_25 = arith.constant dense<0.000000e+00> : vector<128x8xf32>
    %36 = tpu.matmul %33, %24, %cst_25 {dimension_numbers = #tpu.dot_dimension_numbers<[1], [0], [0], [1], [0, 0, 1, 1], [], []>} : vector<128x128xf32>, vector<128x8xf32>, vector<128x8xf32> -> vector<128x8xf32>
    %cst_26 = arith.constant -5.000000e+00 : f32
    %cst_27 = arith.constant 5.000000e+00 : f32
    %37 = vector.broadcast %cst_26 : f32 to vector<128x8xf32>
    %38 = arith.maximumf %37, %36 : vector<128x8xf32>
    %39 = vector.broadcast %cst_27 : f32 to vector<128x8xf32>
    %40 = arith.minimumf %39, %38 : vector<128x8xf32>
    %41 = math.exp %40 : vector<128x8xf32>
    %c0_28 = arith.constant 0 : index
    %c0_29 = arith.constant 0 : index
    %42 = vector.load %arg10[%c0_28, %c0_29] : memref<128x8xf32, #tpu.memory_space<vmem>>, vector<128x8xf32>
    tpu.vector_store %arg10[%c0_28, %c0_29], %41 {strides = array<i32>} : memref<128x8xf32, #tpu.memory_space<vmem>>, vector<128x8xf32>,
    %cst_30 = arith.constant dense<0.000000e+00> : vector<128x128xf32>
    %43 = tpu.matmul %41, %25, %cst_30 {dimension_numbers = #tpu.dot_dimension_numbers<[1], [0], [0], [1], [0, 0, 1, 1], [], []>} : vector<128x8xf32>, vector<8x128xf32>, vector<128x128xf32> -> vector<128x128xf32>
    %44 = arith.mulf %21, %43 : vector<128x128xf32>
    %c0_31 = arith.constant 0 : index
    %c0_32 = arith.constant 0 : index
    %45 = vector.load %arg11[%c0_31, %c0_32] : memref<128x128xf32, #tpu.memory_space<vmem>>, vector<128x128xf32>
    tpu.vector_store %arg11[%c0_31, %c0_32], %44 {strides = array<i32>} : memref<128x128xf32, #tpu.memory_space<vmem>>, vector<128x128xf32>,
    return
  }
  func.func @transform_0(%arg0: i32) -> (i32, i32) {
    %c0_i32 = arith.constant 0 : i32
    %c0_i32_0 = arith.constant 0 : i32
    return %arg0, %c0_i32 : i32, i32
  }
  func.func @transform_1(%arg0: i32) -> (i32, i32) {
    %c0_i32 = arith.constant 0 : i32
    %c0_i32_0 = arith.constant 0 : i32
    return %arg0, %c0_i32 : i32, i32
  }
  func.func @transform_2(%arg0: i32) -> (i32, i32) {
    %c0_i32 = arith.constant 0 : i32
    %c0_i32_0 = arith.constant 0 : i32
    return %arg0, %c0_i32 : i32, i32
  }
  func.func @transform_3(%arg0: i32) -> (i32, i32) {
    %c0_i32 = arith.constant 0 : i32
    %c0_i32_0 = arith.constant 0 : i32
    %c0_i32_1 = arith.constant 0 : i32
    return %c0_i32, %c0_i32_0 : i32, i32
  }
  func.func @transform_4(%arg0: i32) -> (i32, i32) {
    %c0_i32 = arith.constant 0 : i32
    %c0_i32_0 = arith.constant 0 : i32
    %c0_i32_1 = arith.constant 0 : i32
    return %c0_i32, %c0_i32_0 : i32, i32
  }
  func.func @transform_5(%arg0: i32) -> (i32, i32) {
    %c0_i32 = arith.constant 0 : i32
    %c0_i32_0 = arith.constant 0 : i32
    %c0_i32_1 = arith.constant 0 : i32
    return %c0_i32, %c0_i32_0 : i32, i32
  }
  func.func @transform_6(%arg0: i32) -> (i32, i32) {
    %c0_i32 = arith.constant 0 : i32
    %c0_i32_0 = arith.constant 0 : i32
    %c0_i32_1 = arith.constant 0 : i32
    return %c0_i32, %c0_i32_0 : i32, i32
  }
  func.func @transform_7(%arg0: i32) -> (i32, i32) {
    %c0_i32 = arith.constant 0 : i32
    %c0_i32_0 = arith.constant 0 : i32
    %c0_i32_1 = arith.constant 0 : i32
    return %c0_i32, %c0_i32_0 : i32, i32
  }
  func.func @transform_8(%arg0: i32) -> (i32, i32) {
    %c0_i32 = arith.constant 0 : i32
    %c0_i32_0 = arith.constant 0 : i32
    return %arg0, %c0_i32 : i32, i32
  }
  func.func @transform_9(%arg0: i32) -> (i32, i32) {
    %c0_i32 = arith.constant 0 : i32
    %c0_i32_0 = arith.constant 0 : i32
    return %arg0, %c0_i32 : i32, i32
  }
  func.func @transform_10(%arg0: i32) -> (i32, i32) {
    %c0_i32 = arith.constant 0 : i32
    %c0_i32_0 = arith.constant 0 : i32
    return %arg0, %c0_i32 : i32, i32
  }
}

module attributes {stable_mosaic.version = 11 : i64} {
  func.func @_node_tail_kernel(%arg0: i32, %arg1: memref<32x128xf32, #tpu.memory_space<vmem>>, %arg2: memref<32x8xf32, #tpu.memory_space<vmem>>, %arg3: memref<32x128xf32, #tpu.memory_space<vmem>>, %arg4: memref<8x128xf32, #tpu.memory_space<vmem>>, %arg5: memref<128x128xbf16, #tpu.memory_space<vmem>>, %arg6: memref<128x256xbf16, #tpu.memory_space<vmem>>, %arg7: memref<1x256xf32, #tpu.memory_space<vmem>>, %arg8: memref<256x128xbf16, #tpu.memory_space<vmem>>, %arg9: memref<1x128xf32, #tpu.memory_space<vmem>>, %arg10: memref<1x128xf32, #tpu.memory_space<vmem>>, %arg11: memref<1x128xf32, #tpu.memory_space<vmem>>, %arg12: memref<1x128xf32, #tpu.memory_space<vmem>>, %arg13: memref<32x128xf32, #tpu.memory_space<vmem>>) attributes {dimension_semantics = [#tpu.dimension_semantics<parallel>], iteration_bounds = array<i64: 2>, scalar_prefetch = 0 : i64, scratch_operands = 0 : i64, tpu.core_type = #tpu.core_type<tc>, window_params = [{transform_indices = @transform_0, window_bounds = array<i64: 32, 128>}, {transform_indices = @transform_1, window_bounds = array<i64: 32, 8>}, {transform_indices = @transform_2, window_bounds = array<i64: 32, 128>}, {pipeline_mode = #tpu.pipeline_mode<synchronous>, transform_indices = @transform_3, window_bounds = array<i64: 8, 128>}, {pipeline_mode = #tpu.pipeline_mode<synchronous>, transform_indices = @transform_4, window_bounds = array<i64: 128, 128>}, {pipeline_mode = #tpu.pipeline_mode<synchronous>, transform_indices = @transform_5, window_bounds = array<i64: 128, 256>}, {pipeline_mode = #tpu.pipeline_mode<synchronous>, transform_indices = @transform_6, window_bounds = array<i64: 1, 256>}, {pipeline_mode = #tpu.pipeline_mode<synchronous>, transform_indices = @transform_7, window_bounds = array<i64: 256, 128>}, {pipeline_mode = #tpu.pipeline_mode<synchronous>, transform_indices = @transform_8, window_bounds = array<i64: 1, 128>}, {pipeline_mode = #tpu.pipeline_mode<synchronous>, transform_indices = @transform_9, window_bounds = array<i64: 1, 128>}, {pipeline_mode = #tpu.pipeline_mode<synchronous>, transform_indices = @transform_10, window_bounds = array<i64: 1, 128>}, {pipeline_mode = #tpu.pipeline_mode<synchronous>, transform_indices = @transform_11, window_bounds = array<i64: 1, 128>}, {transform_indices = @transform_12, window_bounds = array<i64: 32, 128>}]} {
    %c0 = arith.constant 0 : index
    %c0_0 = arith.constant 0 : index
    %0 = vector.load %arg2[%c0, %c0_0] : memref<32x8xf32, #tpu.memory_space<vmem>>, vector<32x8xf32>
    %c0_1 = arith.constant 0 : index
    %c0_2 = arith.constant 0 : index
    %1 = vector.load %arg4[%c0_1, %c0_2] : memref<8x128xf32, #tpu.memory_space<vmem>>, vector<8x128xf32>
    %cst = arith.constant dense<0.000000e+00> : vector<32x128xf32>
    %2 = tpu.matmul %0, %1, %cst {dimension_numbers = #tpu.dot_dimension_numbers<[1], [0], [0], [1], [0, 0, 1, 1], [], []>} : vector<32x8xf32>, vector<8x128xf32>, vector<32x128xf32> -> vector<32x128xf32>
    %c0_3 = arith.constant 0 : index
    %c0_4 = arith.constant 0 : index
    %3 = vector.load %arg1[%c0_3, %c0_4] : memref<32x128xf32, #tpu.memory_space<vmem>>, vector<32x128xf32>
    %cst_5 = arith.constant 9.99999997E-7 : f32
    %4 = vector.broadcast %cst_5 : f32 to vector<32x128xf32>
    %5 = arith.addf %2, %4 : vector<32x128xf32>
    %6 = tpu.reciprocal %5 {approx = true} : vector<32x128xf32> -> vector<32x128xf32>
    %7 = arith.mulf %3, %6 : vector<32x128xf32>
    %8 = arith.truncf %7 : vector<32x128xf32> to vector<32x128xbf16>
    %c0_6 = arith.constant 0 : index
    %c0_7 = arith.constant 0 : index
    %9 = vector.load %arg5[%c0_6, %c0_7] : memref<128x128xbf16, #tpu.memory_space<vmem>>, vector<128x128xbf16>
    %cst_8 = arith.constant dense<0.000000e+00> : vector<32x128xf32>
    %10 = tpu.matmul %8, %9, %cst_8 {dimension_numbers = #tpu.dot_dimension_numbers<[1], [0], [0], [1], [0, 0, 1, 1], [], []>} : vector<32x128xbf16>, vector<128x128xbf16>, vector<32x128xf32> -> vector<32x128xf32>
    %c0_9 = arith.constant 0 : index
    %c0_10 = arith.constant 0 : index
    %11 = vector.load %arg3[%c0_9, %c0_10] : memref<32x128xf32, #tpu.memory_space<vmem>>, vector<32x128xf32>
    %12 = arith.addf %11, %10 : vector<32x128xf32>
    %c0_11 = arith.constant 0 : index
    %c0_12 = arith.constant 0 : index
    %13 = vector.load %arg9[%c0_11, %c0_12] : memref<1x128xf32, #tpu.memory_space<vmem>>, vector<1x128xf32>
    %14 = vector.broadcast %13 : vector<1x128xf32> to vector<32x128xf32>
    %15 = arith.mulf %12, %14 : vector<32x128xf32>
    %c0_13 = arith.constant 0 : index
    %c0_14 = arith.constant 0 : index
    %16 = vector.load %arg10[%c0_13, %c0_14] : memref<1x128xf32, #tpu.memory_space<vmem>>, vector<1x128xf32>
    %17 = vector.broadcast %16 : vector<1x128xf32> to vector<32x128xf32>
    %18 = arith.addf %15, %17 : vector<32x128xf32>
    %c0_15 = arith.constant 0 : index
    %c0_16 = arith.constant 0 : index
    %19 = vector.load %arg6[%c0_15, %c0_16] : memref<128x256xbf16, #tpu.memory_space<vmem>>, vector<128x256xbf16>
    %c0_17 = arith.constant 0 : index
    %c0_18 = arith.constant 0 : index
    %20 = vector.load %arg7[%c0_17, %c0_18] : memref<1x256xf32, #tpu.memory_space<vmem>>, vector<1x256xf32>
    %c0_19 = arith.constant 0 : index
    %c0_20 = arith.constant 0 : index
    %21 = vector.load %arg8[%c0_19, %c0_20] : memref<256x128xbf16, #tpu.memory_space<vmem>>, vector<256x128xbf16>
    %c0_21 = arith.constant 0 : index
    %c0_22 = arith.constant 0 : index
    %22 = vector.load %arg11[%c0_21, %c0_22] : memref<1x128xf32, #tpu.memory_space<vmem>>, vector<1x128xf32>
    %c0_23 = arith.constant 0 : index
    %c0_24 = arith.constant 0 : index
    %23 = vector.load %arg12[%c0_23, %c0_24] : memref<1x128xf32, #tpu.memory_space<vmem>>, vector<1x128xf32>
    %24 = arith.truncf %18 : vector<32x128xf32> to vector<32x128xbf16>
    %cst_25 = arith.constant dense<0.000000e+00> : vector<32x256xf32>
    %25 = tpu.matmul %24, %19, %cst_25 {dimension_numbers = #tpu.dot_dimension_numbers<[1], [0], [0], [1], [0, 0, 1, 1], [], []>} : vector<32x128xbf16>, vector<128x256xbf16>, vector<32x256xf32> -> vector<32x256xf32>
    %26 = vector.broadcast %20 : vector<1x256xf32> to vector<32x256xf32>
    %27 = arith.addf %25, %26 : vector<32x256xf32>
    %cst_26 = arith.constant 0.000000e+00 : f32
    %28 = vector.broadcast %cst_26 : f32 to vector<32x256xf32>
    %29 = arith.maximumf %27, %28 : vector<32x256xf32>
    %30 = arith.truncf %29 : vector<32x256xf32> to vector<32x256xbf16>
    %cst_27 = arith.constant dense<0.000000e+00> : vector<32x128xf32>
    %31 = tpu.matmul %30, %21, %cst_27 {dimension_numbers = #tpu.dot_dimension_numbers<[1], [0], [0], [1], [0, 0, 1, 1], [], []>} : vector<32x256xbf16>, vector<256x128xbf16>, vector<32x128xf32> -> vector<32x128xf32>
    %32 = arith.addf %18, %31 : vector<32x128xf32>
    %33 = vector.broadcast %22 : vector<1x128xf32> to vector<32x128xf32>
    %34 = arith.mulf %32, %33 : vector<32x128xf32>
    %35 = vector.broadcast %23 : vector<1x128xf32> to vector<32x128xf32>
    %36 = arith.addf %34, %35 : vector<32x128xf32>
    %c0_28 = arith.constant 0 : index
    %c0_29 = arith.constant 0 : index
    %37 = vector.load %arg13[%c0_28, %c0_29] : memref<32x128xf32, #tpu.memory_space<vmem>>, vector<32x128xf32>
    tpu.vector_store %arg13[%c0_28, %c0_29], %36 {strides = array<i32>} : memref<32x128xf32, #tpu.memory_space<vmem>>, vector<32x128xf32>,
    return
  }
  func.func @transform_0(%arg0: i32) -> (i32, i32) {
    %c0_i32 = arith.constant 0 : i32
    %c0_i32_0 = arith.constant 0 : i32
    return %arg0, %c0_i32 : i32, i32
  }
  func.func @transform_1(%arg0: i32) -> (i32, i32) {
    %c0_i32 = arith.constant 0 : i32
    %c0_i32_0 = arith.constant 0 : i32
    return %arg0, %c0_i32 : i32, i32
  }
  func.func @transform_2(%arg0: i32) -> (i32, i32) {
    %c0_i32 = arith.constant 0 : i32
    %c0_i32_0 = arith.constant 0 : i32
    return %arg0, %c0_i32 : i32, i32
  }
  func.func @transform_3(%arg0: i32) -> (i32, i32) {
    %c0_i32 = arith.constant 0 : i32
    %c0_i32_0 = arith.constant 0 : i32
    %c0_i32_1 = arith.constant 0 : i32
    return %c0_i32, %c0_i32_0 : i32, i32
  }
  func.func @transform_4(%arg0: i32) -> (i32, i32) {
    %c0_i32 = arith.constant 0 : i32
    %c0_i32_0 = arith.constant 0 : i32
    %c0_i32_1 = arith.constant 0 : i32
    return %c0_i32, %c0_i32_0 : i32, i32
  }
  func.func @transform_5(%arg0: i32) -> (i32, i32) {
    %c0_i32 = arith.constant 0 : i32
    %c0_i32_0 = arith.constant 0 : i32
    %c0_i32_1 = arith.constant 0 : i32
    return %c0_i32, %c0_i32_0 : i32, i32
  }
  func.func @transform_6(%arg0: i32) -> (i32, i32) {
    %c0_i32 = arith.constant 0 : i32
    %c0_i32_0 = arith.constant 0 : i32
    %c0_i32_1 = arith.constant 0 : i32
    return %c0_i32, %c0_i32_0 : i32, i32
  }
  func.func @transform_7(%arg0: i32) -> (i32, i32) {
    %c0_i32 = arith.constant 0 : i32
    %c0_i32_0 = arith.constant 0 : i32
    %c0_i32_1 = arith.constant 0 : i32
    return %c0_i32, %c0_i32_0 : i32, i32
  }
  func.func @transform_8(%arg0: i32) -> (i32, i32) {
    %c0_i32 = arith.constant 0 : i32
    %c0_i32_0 = arith.constant 0 : i32
    %c0_i32_1 = arith.constant 0 : i32
    return %c0_i32, %c0_i32_0 : i32, i32
  }
  func.func @transform_9(%arg0: i32) -> (i32, i32) {
    %c0_i32 = arith.constant 0 : i32
    %c0_i32_0 = arith.constant 0 : i32
    %c0_i32_1 = arith.constant 0 : i32
    return %c0_i32, %c0_i32_0 : i32, i32
  }
  func.func @transform_10(%arg0: i32) -> (i32, i32) {
    %c0_i32 = arith.constant 0 : i32
    %c0_i32_0 = arith.constant 0 : i32
    %c0_i32_1 = arith.constant 0 : i32
    return %c0_i32, %c0_i32_0 : i32, i32
  }
  func.func @transform_11(%arg0: i32) -> (i32, i32) {
    %c0_i32 = arith.constant 0 : i32
    %c0_i32_0 = arith.constant 0 : i32
    %c0_i32_1 = arith.constant 0 : i32
    return %c0_i32, %c0_i32_0 : i32, i32
  }
  func.func @transform_12(%arg0: i32) -> (i32, i32) {
    %c0_i32 = arith.constant 0 : i32
    %c0_i32_0 = arith.constant 0 : i32
    return %arg0, %c0_i32 : i32, i32
  }
}

module attributes {stable_mosaic.version = 11 : i64} {
  func.func @_edge_tail_kernel(%arg0: i32, %arg1: memref<128x128xbf16, #tpu.memory_space<vmem>>, %arg2: memref<128x128xf32, #tpu.memory_space<vmem>>, %arg3: memref<128x128xbf16, #tpu.memory_space<vmem>>, %arg4: memref<128x256xbf16, #tpu.memory_space<vmem>>, %arg5: memref<1x256xf32, #tpu.memory_space<vmem>>, %arg6: memref<256x128xbf16, #tpu.memory_space<vmem>>, %arg7: memref<1x128xf32, #tpu.memory_space<vmem>>, %arg8: memref<1x128xf32, #tpu.memory_space<vmem>>, %arg9: memref<1x128xf32, #tpu.memory_space<vmem>>, %arg10: memref<1x128xf32, #tpu.memory_space<vmem>>, %arg11: memref<128x128xf32, #tpu.memory_space<vmem>>) attributes {dimension_semantics = [#tpu.dimension_semantics<parallel>], iteration_bounds = array<i64: 2>, scalar_prefetch = 0 : i64, scratch_operands = 0 : i64, tpu.core_type = #tpu.core_type<tc>, window_params = [{transform_indices = @transform_0, window_bounds = array<i64: 128, 128>}, {transform_indices = @transform_1, window_bounds = array<i64: 128, 128>}, {pipeline_mode = #tpu.pipeline_mode<synchronous>, transform_indices = @transform_2, window_bounds = array<i64: 128, 128>}, {pipeline_mode = #tpu.pipeline_mode<synchronous>, transform_indices = @transform_3, window_bounds = array<i64: 128, 256>}, {pipeline_mode = #tpu.pipeline_mode<synchronous>, transform_indices = @transform_4, window_bounds = array<i64: 1, 256>}, {pipeline_mode = #tpu.pipeline_mode<synchronous>, transform_indices = @transform_5, window_bounds = array<i64: 256, 128>}, {pipeline_mode = #tpu.pipeline_mode<synchronous>, transform_indices = @transform_6, window_bounds = array<i64: 1, 128>}, {pipeline_mode = #tpu.pipeline_mode<synchronous>, transform_indices = @transform_7, window_bounds = array<i64: 1, 128>}, {pipeline_mode = #tpu.pipeline_mode<synchronous>, transform_indices = @transform_8, window_bounds = array<i64: 1, 128>}, {pipeline_mode = #tpu.pipeline_mode<synchronous>, transform_indices = @transform_9, window_bounds = array<i64: 1, 128>}, {transform_indices = @transform_10, window_bounds = array<i64: 128, 128>}]} {
    %c0 = arith.constant 0 : index
    %c0_0 = arith.constant 0 : index
    %0 = vector.load %arg1[%c0, %c0_0] : memref<128x128xbf16, #tpu.memory_space<vmem>>, vector<128x128xbf16>
    %c0_1 = arith.constant 0 : index
    %c0_2 = arith.constant 0 : index
    %1 = vector.load %arg3[%c0_1, %c0_2] : memref<128x128xbf16, #tpu.memory_space<vmem>>, vector<128x128xbf16>
    %cst = arith.constant dense<0.000000e+00> : vector<128x128xf32>
    %2 = tpu.matmul %0, %1, %cst {dimension_numbers = #tpu.dot_dimension_numbers<[1], [0], [0], [1], [0, 0, 1, 1], [], []>} : vector<128x128xbf16>, vector<128x128xbf16>, vector<128x128xf32> -> vector<128x128xf32>
    %c0_3 = arith.constant 0 : index
    %c0_4 = arith.constant 0 : index
    %3 = vector.load %arg2[%c0_3, %c0_4] : memref<128x128xf32, #tpu.memory_space<vmem>>, vector<128x128xf32>
    %4 = arith.addf %3, %2 : vector<128x128xf32>
    %c0_5 = arith.constant 0 : index
    %c0_6 = arith.constant 0 : index
    %5 = vector.load %arg7[%c0_5, %c0_6] : memref<1x128xf32, #tpu.memory_space<vmem>>, vector<1x128xf32>
    %6 = vector.broadcast %5 : vector<1x128xf32> to vector<128x128xf32>
    %7 = arith.mulf %4, %6 : vector<128x128xf32>
    %c0_7 = arith.constant 0 : index
    %c0_8 = arith.constant 0 : index
    %8 = vector.load %arg8[%c0_7, %c0_8] : memref<1x128xf32, #tpu.memory_space<vmem>>, vector<1x128xf32>
    %9 = vector.broadcast %8 : vector<1x128xf32> to vector<128x128xf32>
    %10 = arith.addf %7, %9 : vector<128x128xf32>
    %c0_9 = arith.constant 0 : index
    %c0_10 = arith.constant 0 : index
    %11 = vector.load %arg4[%c0_9, %c0_10] : memref<128x256xbf16, #tpu.memory_space<vmem>>, vector<128x256xbf16>
    %c0_11 = arith.constant 0 : index
    %c0_12 = arith.constant 0 : index
    %12 = vector.load %arg5[%c0_11, %c0_12] : memref<1x256xf32, #tpu.memory_space<vmem>>, vector<1x256xf32>
    %c0_13 = arith.constant 0 : index
    %c0_14 = arith.constant 0 : index
    %13 = vector.load %arg6[%c0_13, %c0_14] : memref<256x128xbf16, #tpu.memory_space<vmem>>, vector<256x128xbf16>
    %c0_15 = arith.constant 0 : index
    %c0_16 = arith.constant 0 : index
    %14 = vector.load %arg9[%c0_15, %c0_16] : memref<1x128xf32, #tpu.memory_space<vmem>>, vector<1x128xf32>
    %c0_17 = arith.constant 0 : index
    %c0_18 = arith.constant 0 : index
    %15 = vector.load %arg10[%c0_17, %c0_18] : memref<1x128xf32, #tpu.memory_space<vmem>>, vector<1x128xf32>
    %16 = arith.truncf %10 : vector<128x128xf32> to vector<128x128xbf16>
    %cst_19 = arith.constant dense<0.000000e+00> : vector<128x256xf32>
    %17 = tpu.matmul %16, %11, %cst_19 {dimension_numbers = #tpu.dot_dimension_numbers<[1], [0], [0], [1], [0, 0, 1, 1], [], []>} : vector<128x128xbf16>, vector<128x256xbf16>, vector<128x256xf32> -> vector<128x256xf32>
    %18 = vector.broadcast %12 : vector<1x256xf32> to vector<128x256xf32>
    %19 = arith.addf %17, %18 : vector<128x256xf32>
    %cst_20 = arith.constant 0.000000e+00 : f32
    %20 = vector.broadcast %cst_20 : f32 to vector<128x256xf32>
    %21 = arith.maximumf %19, %20 : vector<128x256xf32>
    %22 = arith.truncf %21 : vector<128x256xf32> to vector<128x256xbf16>
    %cst_21 = arith.constant dense<0.000000e+00> : vector<128x128xf32>
    %23 = tpu.matmul %22, %13, %cst_21 {dimension_numbers = #tpu.dot_dimension_numbers<[1], [0], [0], [1], [0, 0, 1, 1], [], []>} : vector<128x256xbf16>, vector<256x128xbf16>, vector<128x128xf32> -> vector<128x128xf32>
    %24 = arith.addf %10, %23 : vector<128x128xf32>
    %25 = vector.broadcast %14 : vector<1x128xf32> to vector<128x128xf32>
    %26 = arith.mulf %24, %25 : vector<128x128xf32>
    %27 = vector.broadcast %15 : vector<1x128xf32> to vector<128x128xf32>
    %28 = arith.addf %26, %27 : vector<128x128xf32>
    %c0_22 = arith.constant 0 : index
    %c0_23 = arith.constant 0 : index
    %29 = vector.load %arg11[%c0_22, %c0_23] : memref<128x128xf32, #tpu.memory_space<vmem>>, vector<128x128xf32>
    tpu.vector_store %arg11[%c0_22, %c0_23], %28 {strides = array<i32>} : memref<128x128xf32, #tpu.memory_space<vmem>>, vector<128x128xf32>,
    return
  }
  func.func @transform_0(%arg0: i32) -> (i32, i32) {
    %c0_i32 = arith.constant 0 : i32
    %c0_i32_0 = arith.constant 0 : i32
    return %arg0, %c0_i32 : i32, i32
  }
  func.func @transform_1(%arg0: i32) -> (i32, i32) {
    %c0_i32 = arith.constant 0 : i32
    %c0_i32_0 = arith.constant 0 : i32
    return %arg0, %c0_i32 : i32, i32
  }
  func.func @transform_2(%arg0: i32) -> (i32, i32) {
    %c0_i32 = arith.constant 0 : i32
    %c0_i32_0 = arith.constant 0 : i32
    %c0_i32_1 = arith.constant 0 : i32
    return %c0_i32, %c0_i32_0 : i32, i32
  }
  func.func @transform_3(%arg0: i32) -> (i32, i32) {
    %c0_i32 = arith.constant 0 : i32
    %c0_i32_0 = arith.constant 0 : i32
    %c0_i32_1 = arith.constant 0 : i32
    return %c0_i32, %c0_i32_0 : i32, i32
  }
  func.func @transform_4(%arg0: i32) -> (i32, i32) {
    %c0_i32 = arith.constant 0 : i32
    %c0_i32_0 = arith.constant 0 : i32
    %c0_i32_1 = arith.constant 0 : i32
    return %c0_i32, %c0_i32_0 : i32, i32
  }
  func.func @transform_5(%arg0: i32) -> (i32, i32) {
    %c0_i32 = arith.constant 0 : i32
    %c0_i32_0 = arith.constant 0 : i32
    %c0_i32_1 = arith.constant 0 : i32
    return %c0_i32, %c0_i32_0 : i32, i32
  }
  func.func @transform_6(%arg0: i32) -> (i32, i32) {
    %c0_i32 = arith.constant 0 : i32
    %c0_i32_0 = arith.constant 0 : i32
    %c0_i32_1 = arith.constant 0 : i32
    return %c0_i32, %c0_i32_0 : i32, i32
  }
  func.func @transform_7(%arg0: i32) -> (i32, i32) {
    %c0_i32 = arith.constant 0 : i32
    %c0_i32_0 = arith.constant 0 : i32
    %c0_i32_1 = arith.constant 0 : i32
    return %c0_i32, %c0_i32_0 : i32, i32
  }
  func.func @transform_8(%arg0: i32) -> (i32, i32) {
    %c0_i32 = arith.constant 0 : i32
    %c0_i32_0 = arith.constant 0 : i32
    %c0_i32_1 = arith.constant 0 : i32
    return %c0_i32, %c0_i32_0 : i32, i32
  }
  func.func @transform_9(%arg0: i32) -> (i32, i32) {
    %c0_i32 = arith.constant 0 : i32
    %c0_i32_0 = arith.constant 0 : i32
    %c0_i32_1 = arith.constant 0 : i32
    return %c0_i32, %c0_i32_0 : i32, i32
  }
  func.func @transform_10(%arg0: i32) -> (i32, i32) {
    %c0_i32 = arith.constant 0 : i32
    %c0_i32_0 = arith.constant 0 : i32
    return %arg0, %c0_i32 : i32, i32
  }
}

</mosaic_0001>

<llo_original>
// kernel: eq.8
$region0: #{eq.8}
  %s0 = inlined_call_operand.vmem [shape: s32[4,32], index: 0, kind: input, shape index: {}]
  %s1 = inlined_call_operand.vmem [shape: s32[128], index: 1, kind: output, shape index: {}]
  $region1: #{eq.8} parent=0
    #allocation0 [shape = 'u8[4096]{0}', space=vmem, size = 0x1000, scoped, tag = 'scoped mem for output reshape']
    #allocation1 [shape = 'u8[4096]{0}', space=vmem, size = 0x1000, scoped, tag = 'scoped mem for input reshape']
    %s3 = ssub.s32 16, 1
    %v4 = vld [vmem:[%s0] sm:%s3]
    %5 = vst [vmem:[#allocation1] sm:%s3] %v4
    %v6 = vld [vmem:[#allocation1] sm:$0x1]
    %vm7 = vcmask 261120
    %8 = vst.msk [vmem:[#allocation0] sm:$0x1] %vm7, %v6
    %s9 = scalar_lea.vmem [#allocation1], 3
    %v10 = vld [vmem:[%s9] sm:$0x1]
    %11 = vrot.lane.b32.xlu0 %v10, 96
    %v12 = vpop.permute.xlu0 %11
    %vm13 = vcmask 1048320
    %14 = vst.msk [vmem:[#allocation0] sm:$0x1] %vm13, %v12
    %s15 = scalar_lea.vmem [#allocation1], 2
    %v16 = vld [vmem:[%s15] sm:$0x1]
    %17 = vrot.lane.b32.xlu0 %v16, 64
    %v18 = vpop.permute.xlu0 %17
    %vm19 = vcmask 785920
    %20 = vst.msk [vmem:[#allocation0] sm:$0x1] %vm19, %v18
    %s21 = scalar_lea.vmem [#allocation1], 1
    %v22 = vld [vmem:[%s21] sm:$0x1]
    %23 = vrot.lane.b32.xlu0 %v22, 32
    %v24 = vpop.permute.xlu0 %23
    %vm25 = vcmask 523520
    %26 = vst.msk [vmem:[#allocation0] sm:$0x1] %vm25, %v24
    %s28 = ssub.s32 2, 1
    %v29 = vld [vmem:[#allocation0] sm:%s28]
    %s31 = ssub.s32 2, 1
    %32 = vst [vmem:[%s1] sm:%s31] %v29

// kernel: graph_transformer_layer.4
$region0: #{graph_transformer_layer.4}
  #allocation0 [shape = 'u32[]', space=smem, size = 0x4, offset = 0x4, fixed_abs, tag = 'smem constant byte address 0x4 - core index']
  #allocation1 [shape = 'u32[72,128]{1,0:T(1,128)}', space=vmem, size = 0x9000, scoped, tag = 'internal scratch']
  %s0 = inlined_call_operand.vmem [shape: f32[64,128], index: 0, kind: input, shape index: {}]
  %s1 = inlined_call_operand.vmem [shape: bf16[128,384], index: 1, kind: input, shape index: {}]
  %s2 = inlined_call_operand.vmem [shape: f32[1,384], index: 2, kind: input, shape index: {}]
  %s3 = inlined_call_operand.vmem [shape: bf16[64,384], index: 3, kind: output, shape index: {}]
  %s4 = sld [smem:[#allocation0]]
  $region45: #{graph_transformer_layer.4} parent=0
    _
  %s6 = ssub.s32 1, %s4
  %s7 = scalar_select 0, %s6, %s4
  loop: start=0, step=1, limit=4
  $region2: #{graph_transformer_layer.4} parent=0 // loop_pre_header
    _
  $region3: #{graph_transformer_layer.4} parent=0 // loop_header
    %s9 = sphi 0, %s13
    %p10 = scmp.ge.s32.totalorder %s9, 4
    %s19 = sphi 0, %s21
    %s22 = sphi 0, %s19
    %s23 = sphi 0, %s22
    %s39 = sphi 0, %s23
    %s43 = sphi 0, %s43
    %s45 = sphi 0, %s43
    %s46 = sphi 0, %s45
    %s60 = sphi 0, %s46
    %s64 = sphi 0, %s64
    %s66 = sphi 0, %s64
    %s67 = sphi 0, %s66
    %s81 = sphi 0, %s67
    %s87 = sphi 0, %s89
    %s90 = sphi 0, %s87
    %s91 = sphi 0, %s90
    %s107 = sphi 0, %s91
  $region4: #{graph_transformer_layer.4} parent=0 // loop_header_branch
    %12 = sbr.rel (%p10) target = $region8
  $region5: #{graph_transformer_layer.4} parent=0 // loop_body
    %s14 = ssub.s32 %s9, 1
    %s15 = ssub.s32 %s9, 2
    %s16 = sadd.s32 %s9, 1
    %s17 = ssub.s32 %s9, %s16
    %p18 = scmp.eq.s32.totalorder %s17, 0
    %s20 = sadd.s32 %s19, 1
    %s21 = scalar_select %p18, %s19, %s20
    %p24 = pneg %p18
    %p25 = scmp.eq.s32.totalorder %s9, 1
    %p26 = por %p24, %p25
    %p27 = scmp.ne.s32.totalorder %s19, %s22
    %p28 = scmp.eq.s32.totalorder %s9, 0
    %p29 = por %p27, %p28
    %p30 = scmp.ne.s32.totalorder %s19, %s22
    %p31 = scmp.eq.s32.totalorder %s14, 1
    %p32 = por %p30, %p31
    %p33 = scmp.ne.s32.totalorder %s22, %s23
    %p34 = scmp.eq.s32.totalorder %s14, 0
    %p35 = por %p33, %p34
    %p36 = scmp.ne.s32.totalorder %s22, %s23
    %p37 = scmp.eq.s32.totalorder %s15, 1
    %p38 = por %p36, %p37
    %p40 = scmp.ne.s32.totalorder %s23, %s39
    %p41 = scmp.eq.s32.totalorder %s15, 0
    %p42 = por %p40, %p41
    %s44 = sadd.s32 %s43, 1
    %p47 = scmp.eq.s32.totalorder %s9, 1
    %p48 = scmp.ne.s32.totalorder %s43, %s45
    %p49 = scmp.eq.s32.totalorder %s9, 0
    %p50 = por %p48, %p49
    %p51 = scmp.ne.s32.totalorder %s43, %s45
    %p52 = scmp.eq.s32.totalorder %s14, 1
    %p53 = por %p51, %p52
    %p54 = scmp.ne.s32.totalorder %s45, %s46
    %p55 = scmp.eq.s32.totalorder %s14, 0
    %p56 = por %p54, %p55
    %p57 = scmp.ne.s32.totalorder %s45, %s46
    %p58 = scmp.eq.s32.totalorder %s15, 1
    %p59 = por %p57, %p58
    %p61 = scmp.ne.s32.totalorder %s46, %s60
    %p62 = scmp.eq.s32.totalorder %s15, 0
    %p63 = por %p61, %p62
    %s65 = sadd.s32 %s64, 1
    %p68 = scmp.eq.s32.totalorder %s9, 1
    %p69 = scmp.ne.s32.totalorder %s64, %s66
    %p70 = scmp.eq.s32.totalorder %s9, 0
    %p71 = por %p69, %p70
    %p72 = scmp.ne.s32.totalorder %s64, %s66
    %p73 = scmp.eq.s32.totalorder %s14, 1
    %p74 = por %p72, %p73
    %p75 = scmp.ne.s32.totalorder %s66, %s67
    %p76 = scmp.eq.s32.totalorder %s14, 0
    %p77 = por %p75, %p76
    %p78 = scmp.ne.s32.totalorder %s66, %s67
    %p79 = scmp.eq.s32.totalorder %s15, 1
    %p80 = por %p78, %p79
    %p82 = scmp.ne.s32.totalorder %s67, %s81
    %p83 = scmp.eq.s32.totalorder %s15, 0
    %p84 = por %p82, %p83
    %s85 = ssub.s32 %s9, %s16
    %p86 = scmp.eq.s32.totalorder %s85, 0
    %s88 = sadd.s32 %s87, 1
    %s89 = scalar_select %p86, %s87, %s88
    %p92 = pneg %p86
    %p93 = scmp.eq.s32.totalorder %s9, 1
    %p94 = por %p92, %p93
    %p95 = scmp.ne.s32.totalorder %s87, %s90
    %p96 = scmp.eq.s32.totalorder %s9, 0
    %p97 = por %p95, %p96
    %p98 = scmp.ne.s32.totalorder %s87, %s90
    %p99 = scmp.eq.s32.totalorder %s14, 1
    %p100 = por %p98, %p99
    %p101 = scmp.ne.s32.totalorder %s90, %s91
    %p102 = scmp.eq.s32.totalorder %s14, 0
    %p103 = por %p101, %p102
    %p104 = scmp.ne.s32.totalorder %s90, %s91
    %p105 = scmp.eq.s32.totalorder %s15, 1
    %p106 = por %p104, %p105
    %p108 = scmp.ne.s32.totalorder %s91, %s107
    %p109 = scmp.eq.s32.totalorder %s15, 0
    %p110 = por %p108, %p109
    %p111 = scmp.le.s32.totalorder 1, %s9
    %p112 = scmp.lt.s32.totalorder %s9, 3
    %p113 = pnand %p111, %p112
    %p114 = pneg %p113
    // Predicated region
    $region9: #{graph_transformer_layer.4} parent=5 // pred_check
      _
    $region10: #{graph_transformer_layer.4} parent=5 // pred_check_branch
      %116 = sbr.rel (%p113) target = $region12
    $region11: #{graph_transformer_layer.4} parent=5 // pred_region
      %s117 = ssub.s32 %s9, 1
      // Predicated region
      $region13: #{graph_transformer_layer.4} parent=11 // pred_check
        %p118 = pneg %p56
      $region14: #{graph_transformer_layer.4} parent=11 // pred_check_branch
        %120 = sbr.rel (%p118) target = $region16
      $region15: #{graph_transformer_layer.4} parent=11 // pred_region
        _
      $region16: #{graph_transformer_layer.4} parent=11 // pred_fallthru
        _
      // Predicated region
      $region17: #{graph_transformer_layer.4} parent=11 // pred_check
        %p121 = pneg %p77
      $region18: #{graph_transformer_layer.4} parent=11 // pred_check_branch
        %123 = sbr.rel (%p121) target = $region20
      $region19: #{graph_transformer_layer.4} parent=11 // pred_region
        _
      $region20: #{graph_transformer_layer.4} parent=11 // pred_fallthru
        _
    $region12: #{graph_transformer_layer.4} parent=5 // pred_fallthru
      _
    %p124 = scmp.lt.s32.totalorder %s9, 2
    // Predicated region
    $region21: #{graph_transformer_layer.4} parent=5 // pred_check
      %p125 = pneg %p124
    $region22: #{graph_transformer_layer.4} parent=5 // pred_check_branch
      %127 = sbr.rel (%p125) target = $region24
    $region23: #{graph_transformer_layer.4} parent=5 // pred_region
      // Predicated region
      $region25: #{graph_transformer_layer.4} parent=23 // pred_check
        %p128 = pneg %p29
      $region26: #{graph_transformer_layer.4} parent=23 // pred_check_branch
        %130 = sbr.rel (%p128) target = $region28
      $region27: #{graph_transformer_layer.4} parent=23 // pred_region
        %s131 = smul.u32 4, %s9
        %p132 = scmp.lt.s32.totalorder %s131, 7
        %s133 = scalar_select %p132, %s131, 7
        %s134 = smul.addr %s133, 8
        %s135 = scalar_lea.vmem %s0, %s134
        %s136 = smul.u32 4, %s9
      $region28: #{graph_transformer_layer.4} parent=23 // pred_fallthru
        _
    $region24: #{graph_transformer_layer.4} parent=5 // pred_fallthru
      _
    %p137 = scmp.le.s32.totalorder 1, %s9
    %p138 = scmp.lt.s32.totalorder %s9, 3
    %p139 = pnand %p137, %p138
    %p140 = pneg %p139
    // Predicated region
    $region29: #{graph_transformer_layer.4} parent=5 // pred_check
      _
    $region30: #{graph_transformer_layer.4} parent=5 // pred_check_branch
      %142 = sbr.rel (%p139) target = $region32
    $region31: #{graph_transformer_layer.4} parent=5 // pred_region
      %s143 = ssub.s32 %s9, 1
      %s144 = smul.u32 4, %s14
      %p145 = scmp.lt.s32.totalorder %s144, 7
      %s146 = scalar_select %p145, %s144, 7
      %s147 = smul.addr %s146, 8
      %s148 = scalar_lea.vmem %s0, %s147
      %p149 = pneg %p35
      %p150 = pneg %p32
      %p151 = pneg %p56
      %p152 = pneg %p53
      %p153 = pneg %p77
      %p154 = pneg %p74
      %p155 = pneg %p103
      %p156 = pneg %p100
      %s157 = smul.u32 4, %s14
      %p158 = scmp.lt.s32.totalorder %s157, 7
      %s159 = scalar_select %p158, %s157, 7
      %s160 = smul.addr %s159, 3
      %s161 = smul.addr %s160, 4
      %s162 = scalar_lea.vmem %s3, %s161
      %s163 = smul.u32 4, %s14
      %p164 = scmp.lt.s32.totalorder %s163, 7
      %s165 = scalar_select %p164, %s163, 7
      %s166 = smul.addr %s165, 8
      %s167 = scalar_lea.vmem %s0, %s166
      %s168 = smul.u32 4, %s14
      %s169 = smul.u32 4, %s14
      %p170 = scmp.lt.s32.totalorder %s169, 7
      %s171 = scalar_select %p170, %s169, 7
      %s172 = smul.addr %s171, 3
      %s173 = smul.addr %s172, 4
      %s174 = scalar_lea.vmem %s3, %s173
      %s175 = smul.u32 4, %s14
      %v176 = vld [vmem:[%s167] sm:$0xff]
      %v177 = vld [vmem:[%s167 + $0x8] sm:$0xff]
      %v178 = vld [vmem:[%s167 + $0x10] sm:$0xff]
      %v179 = vld [vmem:[%s167 + $0x18] sm:$0xff]
      %v180 = vpack.c.bf16 %v177, %v176
      %v181 = vpack.c.bf16 %v179, %v178
      %v182 = vld [vmem:[%s1] sm:$0xff]
      %v183 = vld [vmem:[%s1 + $0x8] sm:$0xf]
      %v184 = vld [vmem:[%s1 + $0xc] sm:$0xff]
      %v185 = vld [vmem:[%s1 + $0x14] sm:$0xf]
      %v186 = vld [vmem:[%s1 + $0x18] sm:$0xff]
      %v187 = vld [vmem:[%s1 + $0x20] sm:$0xf]
      %v188 = vld [vmem:[%s1 + $0x24] sm:$0xff]
      %v189 = vld [vmem:[%s1 + $0x2c] sm:$0xf]
      %v190 = vld [vmem:[%s1 + $0x30] sm:$0xff]
      %v191 = vld [vmem:[%s1 + $0x38] sm:$0xf]
      %v192 = vld [vmem:[%s1 + $0x3c] sm:$0xff]
      %v193 = vld [vmem:[%s1 + $0x44] sm:$0xf]
      %v194 = vld [vmem:[%s1 + $0x48] sm:$0xff]
      %v195 = vld [vmem:[%s1 + $0x50] sm:$0xf]
      %v196 = vld [vmem:[%s1 + $0x54] sm:$0xff]
      %v197 = vld [vmem:[%s1 + $0x5c] sm:$0xf]
      %v198 = vld [vmem:[%s1 + $0x60] sm:$0xff]
      %v199 = vld [vmem:[%s1 + $0x68] sm:$0xf]
      %v200 = vld [vmem:[%s1 + $0x6c] sm:$0xff]
      %v201 = vld [vmem:[%s1 + $0x74] sm:$0xf]
      %v202 = vld [vmem:[%s1 + $0x78] sm:$0xff]
      %v203 = vld [vmem:[%s1 + $0x80] sm:$0xf]
      %v204 = vld [vmem:[%s1 + $0x84] sm:$0xff]
      %v205 = vld [vmem:[%s1 + $0x8c] sm:$0xf]
      %v206 = vld [vmem:[%s1 + $0x90] sm:$0xff]
      %v207 = vld [vmem:[%s1 + $0x98] sm:$0xf]
      %v208 = vld [vmem:[%s1 + $0x9c] sm:$0xff]
      %v209 = vld [vmem:[%s1 + $0xa4] sm:$0xf]
      %v210 = vld [vmem:[%s1 + $0xa8] sm:$0xff]
      %v211 = vld [vmem:[%s1 + $0xb0] sm:$0xf]
      %v212 = vld [vmem:[%s1 + $0xb4] sm:$0xff]
      %v213 = vld [vmem:[%s1 + $0xbc] sm:$0xf]
      %v214 = vld [vmem:[%s2] sm:$0x7]
      %v216 = vperm.slane %v214, 0
      %v217 = vperm.slane %v214, 1
      %v218 = vperm.slane %v214, 2
      %v254 = vunpack.c.l.b16 %v182
      %v255 = vunpack.c.h.b16 %v182
      %v256 = vunpack.c.l.b16 %v183
      %v257 = vunpack.c.l.b16 %v184
      %v258 = vunpack.c.h.b16 %v184
      %v259 = vunpack.c.l.b16 %v185
      %v260 = vunpack.c.l.b16 %v186
      %v261 = vunpack.c.h.b16 %v186
      %v262 = vunpack.c.l.b16 %v187
      %v263 = vunpack.c.l.b16 %v188
      %v264 = vunpack.c.h.b16 %v188
      %v265 = vunpack.c.l.b16 %v189
      %v266 = vunpack.c.l.b16 %v190
      %v267 = vunpack.c.h.b16 %v190
      %v268 = vunpack.c.l.b16 %v191
      %v269 = vunpack.c.l.b16 %v192
      %v270 = vunpack.c.h.b16 %v192
      %v271 = vunpack.c.l.b16 %v193
      %v272 = vunpack.c.l.b16 %v194
      %v273 = vunpack.c.h.b16 %v194
      %v274 = vunpack.c.l.b16 %v195
      %v275 = vunpack.c.l.b16 %v196
      %v276 = vunpack.c.h.b16 %v196
      %v277 = vunpack.c.l.b16 %v197
      %v278 = vunpack.c.l.b16 %v198
      %v279 = vunpack.c.h.b16 %v198
      %v280 = vunpack.c.l.b16 %v199
      %v281 = vunpack.c.l.b16 %v200
      %v282 = vunpack.c.h.b16 %v200
      %v283 = vunpack.c.l.b16 %v201
      %v284 = vunpack.c.l.b16 %v202
      %v285 = vunpack.c.h.b16 %v202
      %v286 = vunpack.c.l.b16 %v203
      %v287 = vunpack.c.l.b16 %v204
      %v288 = vunpack.c.h.b16 %v204
      %v289 = vunpack.c.l.b16 %v205
      %v290 = vunpack.c.l.b16 %v206
      %v291 = vunpack.c.h.b16 %v206
      %v292 = vunpack.c.l.b16 %v207
      %v293 = vunpack.c.l.b16 %v208
      %v294 = vunpack.c.h.b16 %v208
      %v295 = vunpack.c.l.b16 %v209
      %v296 = vunpack.c.l.b16 %v210
      %v297 = vunpack.c.h.b16 %v210
      %v298 = vunpack.c.l.b16 %v211
      %v299 = vunpack.c.l.b16 %v212
      %v300 = vunpack.c.h.b16 %v212
      %v301 = vunpack.c.l.b16 %v213
      %v302 = vpack.c.b16 %v257, %v254
      %v303 = vpack.c.b16 %v258, %v255
      %v304 = vpack.c.b16 %v259, %v256
      %v305 = vpack.c.b16 %v263, %v260
      %v306 = vpack.c.b16 %v264, %v261
      %v307 = vpack.c.b16 %v265, %v262
      %v308 = vpack.c.b16 %v269, %v266
      %v309 = vpack.c.b16 %v270, %v267
      %v310 = vpack.c.b16 %v271, %v268
      %v311 = vpack.c.b16 %v275, %v272
      %v312 = vpack.c.b16 %v276, %v273
      %v313 = vpack.c.b16 %v277, %v274
      %v314 = vpack.c.b16 %v281, %v278
      %v315 = vpack.c.b16 %v282, %v279
      %v316 = vpack.c.b16 %v283, %v280
      %v317 = vpack.c.b16 %v287, %v284
      %v318 = vpack.c.b16 %v288, %v285
      %v319 = vpack.c.b16 %v289, %v286
      %v320 = vpack.c.b16 %v293, %v290
      %v321 = vpack.c.b16 %v294, %v291
      %v322 = vpack.c.b16 %v295, %v292
      %v323 = vpack.c.b16 %v299, %v296
      %v324 = vpack.c.b16 %v300, %v297
      %v325 = vpack.c.b16 %v301, %v298
      %350 = vmatpush.bf16.msra.mxu0 %v323
      %351 = vmatpush.bf16.msra.mxu0 %v320
      %352 = vmatpush.bf16.msra.mxu0 %v317
      %353 = vmatpush.bf16.msra.mxu0 %v314
      %354 = vmatpush.bf16.msra.mxu0 %v311
      %355 = vmatpush.bf16.msra.mxu0 %v308
      %356 = vmatpush.bf16.msra.mxu0 %v305
      %357 = vmatpush.bf16.msra.mxu0 %v302
      %358 = vmatmul.bf16.gmra.mxu0 %v180
      %v359 = vpop.f32.mrf.mxu0
      %v360 = vadd.f32 %v216, %v359
      %v361 = vpop.f32.mrf.mxu0
      %v362 = vadd.f32 %v216, %v361
      %363 = vmatmul.bf16.gmra.mxu0 %v181
      %v364 = vpop.f32.mrf.mxu0
      %v365 = vadd.f32 %v216, %v364
      %v366 = vpop.f32.mrf.mxu0
      %v367 = vadd.f32 %v216, %v366
      %368 = vdwg.mxu0
      %369 = vmatpush.bf16.msra.mxu0 %v324
      %370 = vmatpush.bf16.msra.mxu0 %v321
      %371 = vmatpush.bf16.msra.mxu0 %v318
      %372 = vmatpush.bf16.msra.mxu0 %v315
      %373 = vmatpush.bf16.msra.mxu0 %v312
      %374 = vmatpush.bf16.msra.mxu0 %v309
      %375 = vmatpush.bf16.msra.mxu0 %v306
      %376 = vmatpush.bf16.msra.mxu0 %v303
      %377 = vmatmul.bf16.gmra.mxu0 %v180
      %v378 = vpop.f32.mrf.mxu0
      %v379 = vadd.f32 %v217, %v378
      %v380 = vpop.f32.mrf.mxu0
      %v381 = vadd.f32 %v217, %v380
      %382 = vmatmul.bf16.gmra.mxu0 %v181
      %v383 = vpop.f32.mrf.mxu0
      %v384 = vadd.f32 %v217, %v383
      %v385 = vpop.f32.mrf.mxu0
      %v386 = vadd.f32 %v217, %v385
      %387 = vdwg.mxu0
      %388 = vmatpush.bf16.msra.mxu0 %v325
      %389 = vmatpush.bf16.msra.mxu0 %v322
      %390 = vmatpush.bf16.msra.mxu0 %v319
      %391 = vmatpush.bf16.msra.mxu0 %v316
      %392 = vmatpush.bf16.msra.mxu0 %v313
      %393 = vmatpush.bf16.msra.mxu0 %v310
      %394 = vmatpush.bf16.msra.mxu0 %v307
      %395 = vmatpush.bf16.msra.mxu0 %v304
      %396 = vmatmul.bf16.gmra.mxu0 %v180
      %v397 = vpop.f32.mrf.mxu0
      %v398 = vadd.f32 %v218, %v397
      %v399 = vpop.f32.mrf.mxu0
      %v400 = vadd.f32 %v218, %v399
      %401 = vmatmul.bf16.gmra.mxu0 %v181
      %v402 = vpop.f32.mrf.mxu0
      %v403 = vadd.f32 %v218, %v402
      %v404 = vpop.f32.mrf.mxu0
      %v405 = vadd.f32 %v218, %v404
      %406 = vdwg.mxu0
      %v407 = vpack.c.bf16 %v379, %v360
      %v408 = vpack.c.bf16 %v398, %v398
      %v409 = vpack.c.bf16 %v381, %v362
      %v410 = vpack.c.bf16 %v400, %v400
      %v411 = vpack.c.bf16 %v384, %v365
      %v412 = vpack.c.bf16 %v403, %v403
      %v413 = vpack.c.bf16 %v386, %v367
      %v414 = vpack.c.bf16 %v405, %v405
      %415 = vst [vmem:[%s174] sm:$0xff] %v407
      %416 = vst [vmem:[%s174 + $0x8] sm:$0xf] %v408
      %417 = vst [vmem:[%s174 + $0xc] sm:$0xff] %v409
      %418 = vst [vmem:[%s174 + $0x14] sm:$0xf] %v410
      %419 = vst [vmem:[%s174 + $0x18] sm:$0xff] %v411
      %420 = vst [vmem:[%s174 + $0x20] sm:$0xf] %v412
      %421 = vst [vmem:[%s174 + $0x24] sm:$0xff] %v413
      %422 = vst [vmem:[%s174 + $0x2c] sm:$0xf] %v414
      %s423 = smul.u32 4, %s14
      %p424 = scmp.lt.s32.totalorder %s423, 7
      %s425 = scalar_select %p424, %s423, 7
      %s426 = smul.addr %s425, 3
      %s427 = smul.addr %s426, 4
      %s428 = scalar_lea.vmem %s3, %s427
      // Predicated region
      $region33: #{graph_transformer_layer.4} parent=31 // pred_check
        %p429 = pneg %p100
      $region34: #{graph_transformer_layer.4} parent=31 // pred_check_branch
        %431 = sbr.rel (%p429) target = $region36
      $region35: #{graph_transformer_layer.4} parent=31 // pred_region
        %s432 = smul.u32 4, %s14
      $region36: #{graph_transformer_layer.4} parent=31 // pred_fallthru
        _
    $region32: #{graph_transformer_layer.4} parent=5 // pred_fallthru
      _
    %p433 = scmp.le.s32.totalorder 2, %s9
    // Predicated region
    $region37: #{graph_transformer_layer.4} parent=5 // pred_check
      %p434 = pneg %p433
    $region38: #{graph_transformer_layer.4} parent=5 // pred_check_branch
      %436 = sbr.rel (%p434) target = $region40
    $region39: #{graph_transformer_layer.4} parent=5 // pred_region
      %s437 = ssub.s32 %s9, 2
      // Predicated region
      $region41: #{graph_transformer_layer.4} parent=39 // pred_check
        %p438 = pneg %p106
      $region42: #{graph_transformer_layer.4} parent=39 // pred_check_branch
        %440 = sbr.rel (%p438) target = $region44
      $region43: #{graph_transformer_layer.4} parent=39 // pred_region
        %s441 = smul.u32 4, %s15
        %p442 = scmp.lt.s32.totalorder %s441, 7
        %s443 = scalar_select %p442, %s441, 7
        %s444 = smul.addr %s443, 3
        %s445 = smul.addr %s444, 4
        %s446 = scalar_lea.vmem %s3, %s445
      $region44: #{graph_transformer_layer.4} parent=39 // pred_fallthru
        _
    $region40: #{graph_transformer_layer.4} parent=5 // pred_fallthru
      _
  $region6: #{graph_transformer_layer.4} parent=0 // loop_footer
    %s13 = sadd.s32 1, %s9
  $region7: #{graph_transformer_layer.4} parent=0 // loop_footer_branch
    %8 = sbr.rel target = $region3
  $region8: #{graph_transformer_layer.4} parent=0 // loop_exit
    _

// kernel: graph_transformer_layer.5
$region0: #{graph_transformer_layer.5}
  #allocation0 [shape = 'u32[]', space=smem, size = 0x4, offset = 0x4, fixed_abs, tag = 'smem constant byte address 0x4 - core index']
  #allocation1 [shape = 'u32[72,128]{1,0:T(1,128)}', space=vmem, size = 0x9000, scoped, tag = 'internal scratch']
  %s0 = inlined_call_operand.vmem [shape: f32[256,128], index: 0, kind: input, shape index: {}]
  %s1 = inlined_call_operand.vmem [shape: s32[256,1], index: 1, kind: input, shape index: {}]
  %s2 = inlined_call_operand.vmem [shape: s32[256,1], index: 2, kind: input, shape index: {}]
  %s3 = inlined_call_operand.vmem [shape: bf16[128,384], index: 3, kind: input, shape index: {}]
  %s4 = inlined_call_operand.vmem [shape: bf16[128,128], index: 4, kind: input, shape index: {}]
  %s5 = inlined_call_operand.vmem [shape: f32[1,128], index: 5, kind: input, shape index: {}]
  %s6 = inlined_call_operand.vmem [shape: f32[128,8], index: 6, kind: input, shape index: {}]
  %s7 = inlined_call_operand.vmem [shape: f32[8,128], index: 7, kind: input, shape index: {}]
  %s8 = inlined_call_operand.vmem [shape: bf16[256,128], index: 8, kind: output, shape index: {0}]
  %s9 = inlined_call_operand.vmem [shape: f32[256,8], index: 9, kind: output, shape index: {1}]
  %s10 = inlined_call_operand.vmem [shape: f32[256,128], index: 10, kind: output, shape index: {2}]
  %11 = xla_tuple %s8, %s9, %s10
  %s12 = sld [smem:[#allocation0]]
  $region81: #{graph_transformer_layer.5} parent=0
    _
  %s14 = ssub.s32 1, %s12
  %s15 = scalar_select 0, %s14, %s12
  loop: start=0, step=1, limit=4
  $region2: #{graph_transformer_layer.5} parent=0 // loop_pre_header
    _
  $region3: #{graph_transformer_layer.5} parent=0 // loop_header
    %s17 = sphi 0, %s21
    %p18 = scmp.ge.s32.totalorder %s17, 4
    %s27 = sphi 0, %s29
    %s30 = sphi 0, %s27
    %s31 = sphi 0, %s30
    %s47 = sphi 0, %s31
    %s53 = sphi 0, %s55
    %s56 = sphi 0, %s53
    %s57 = sphi 0, %s56
    %s73 = sphi 0, %s57
    %s79 = sphi 0, %s81
    %s82 = sphi 0, %s79
    %s83 = sphi 0, %s82
    %s99 = sphi 0, %s83
    %s103 = sphi 0, %s103
    %s105 = sphi 0, %s103
    %s106 = sphi 0, %s105
    %s120 = sphi 0, %s106
    %s124 = sphi 0, %s124
    %s126 = sphi 0, %s124
    %s127 = sphi 0, %s126
    %s141 = sphi 0, %s127
    %s145 = sphi 0, %s145
    %s147 = sphi 0, %s145
    %s148 = sphi 0, %s147
    %s162 = sphi 0, %s148
    %s166 = sphi 0, %s166
    %s168 = sphi 0, %s166
    %s169 = sphi 0, %s168
    %s183 = sphi 0, %s169
    %s187 = sphi 0, %s187
    %s189 = sphi 0, %s187
    %s190 = sphi 0, %s189
    %s204 = sphi 0, %s190
    %s210 = sphi 0, %s212
    %s213 = sphi 0, %s210
    %s214 = sphi 0, %s213
    %s230 = sphi 0, %s214
    %s236 = sphi 0, %s238
    %s239 = sphi 0, %s236
    %s240 = sphi 0, %s239
    %s256 = sphi 0, %s240
    %s262 = sphi 0, %s264
    %s265 = sphi 0, %s262
    %s266 = sphi 0, %s265
    %s282 = sphi 0, %s266
  $region4: #{graph_transformer_layer.5} parent=0 // loop_header_branch
    %20 = sbr.rel (%p18) target = $region8
  $region5: #{graph_transformer_layer.5} parent=0 // loop_body
    %s22 = ssub.s32 %s17, 1
    %s23 = ssub.s32 %s17, 2
    %s24 = sadd.s32 %s17, 1
    %s25 = ssub.s32 %s17, %s24
    %p26 = scmp.eq.s32.totalorder %s25, 0
    %s28 = sadd.s32 %s27, 1
    %s29 = scalar_select %p26, %s27, %s28
    %p32 = pneg %p26
    %p33 = scmp.eq.s32.totalorder %s17, 1
    %p34 = por %p32, %p33
    %p35 = scmp.ne.s32.totalorder %s27, %s30
    %p36 = scmp.eq.s32.totalorder %s17, 0
    %p37 = por %p35, %p36
    %p38 = scmp.ne.s32.totalorder %s27, %s30
    %p39 = scmp.eq.s32.totalorder %s22, 1
    %p40 = por %p38, %p39
    %p41 = scmp.ne.s32.totalorder %s30, %s31
    %p42 = scmp.eq.s32.totalorder %s22, 0
    %p43 = por %p41, %p42
    %p44 = scmp.ne.s32.totalorder %s30, %s31
    %p45 = scmp.eq.s32.totalorder %s23, 1
    %p46 = por %p44, %p45
    %p48 = scmp.ne.s32.totalorder %s31, %s47
    %p49 = scmp.eq.s32.totalorder %s23, 0
    %p50 = por %p48, %p49
    %s51 = ssub.s32 %s17, %s24
    %p52 = scmp.eq.s32.totalorder %s51, 0
    %s54 = sadd.s32 %s53, 1
    %s55 = scalar_select %p52, %s53, %s54
    %p58 = pneg %p52
    %p59 = scmp.eq.s32.totalorder %s17, 1
    %p60 = por %p58, %p59
    %p61 = scmp.ne.s32.totalorder %s53, %s56
    %p62 = scmp.eq.s32.totalorder %s17, 0
    %p63 = por %p61, %p62
    %p64 = scmp.ne.s32.totalorder %s53, %s56
    %p65 = scmp.eq.s32.totalorder %s22, 1
    %p66 = por %p64, %p65
    %p67 = scmp.ne.s32.totalorder %s56, %s57
    %p68 = scmp.eq.s32.totalorder %s22, 0
    %p69 = por %p67, %p68
    %p70 = scmp.ne.s32.totalorder %s56, %s57
    %p71 = scmp.eq.s32.totalorder %s23, 1
    %p72 = por %p70, %p71
    %p74 = scmp.ne.s32.totalorder %s57, %s73
    %p75 = scmp.eq.s32.totalorder %s23, 0
    %p76 = por %p74, %p75
    %s77 = ssub.s32 %s17, %s24
    %p78 = scmp.eq.s32.totalorder %s77, 0
    %s80 = sadd.s32 %s79, 1
    %s81 = scalar_select %p78, %s79, %s80
    %p84 = pneg %p78
    %p85 = scmp.eq.s32.totalorder %s17, 1
    %p86 = por %p84, %p85
    %p87 = scmp.ne.s32.totalorder %s79, %s82
    %p88 = scmp.eq.s32.totalorder %s17, 0
    %p89 = por %p87, %p88
    %p90 = scmp.ne.s32.totalorder %s79, %s82
    %p91 = scmp.eq.s32.totalorder %s22, 1
    %p92 = por %p90, %p91
    %p93 = scmp.ne.s32.totalorder %s82, %s83
    %p94 = scmp.eq.s32.totalorder %s22, 0
    %p95 = por %p93, %p94
    %p96 = scmp.ne.s32.totalorder %s82, %s83
    %p97 = scmp.eq.s32.totalorder %s23, 1
    %p98 = por %p96, %p97
    %p100 = scmp.ne.s32.totalorder %s83, %s99
    %p101 = scmp.eq.s32.totalorder %s23, 0
    %p102 = por %p100, %p101
    %s104 = sadd.s32 %s103, 1
    %p107 = scmp.eq.s32.totalorder %s17, 1
    %p108 = scmp.ne.s32.totalorder %s103, %s105
    %p109 = scmp.eq.s32.totalorder %s17, 0
    %p110 = por %p108, %p109
    %p111 = scmp.ne.s32.totalorder %s103, %s105
    %p112 = scmp.eq.s32.totalorder %s22, 1
    %p113 = por %p111, %p112
    %p114 = scmp.ne.s32.totalorder %s105, %s106
    %p115 = scmp.eq.s32.totalorder %s22, 0
    %p116 = por %p114, %p115
    %p117 = scmp.ne.s32.totalorder %s105, %s106
    %p118 = scmp.eq.s32.totalorder %s23, 1
    %p119 = por %p117, %p118
    %p121 = scmp.ne.s32.totalorder %s106, %s120
    %p122 = scmp.eq.s32.totalorder %s23, 0
    %p123 = por %p121, %p122
    %s125 = sadd.s32 %s124, 1
    %p128 = scmp.eq.s32.totalorder %s17, 1
    %p129 = scmp.ne.s32.totalorder %s124, %s126
    %p130 = scmp.eq.s32.totalorder %s17, 0
    %p131 = por %p129, %p130
    %p132 = scmp.ne.s32.totalorder %s124, %s126
    %p133 = scmp.eq.s32.totalorder %s22, 1
    %p134 = por %p132, %p133
    %p135 = scmp.ne.s32.totalorder %s126, %s127
    %p136 = scmp.eq.s32.totalorder %s22, 0
    %p137 = por %p135, %p136
    %p138 = scmp.ne.s32.totalorder %s126, %s127
    %p139 = scmp.eq.s32.totalorder %s23, 1
    %p140 = por %p138, %p139
    %p142 = scmp.ne.s32.totalorder %s127, %s141
    %p143 = scmp.eq.s32.totalorder %s23, 0
    %p144 = por %p142, %p143
    %s146 = sadd.s32 %s145, 1
    %p149 = scmp.eq.s32.totalorder %s17, 1
    %p150 = scmp.ne.s32.totalorder %s145, %s147
    %p151 = scmp.eq.s32.totalorder %s17, 0
    %p152 = por %p150, %p151
    %p153 = scmp.ne.s32.totalorder %s145, %s147
    %p154 = scmp.eq.s32.totalorder %s22, 1
    %p155 = por %p153, %p154
    %p156 = scmp.ne.s32.totalorder %s147, %s148
    %p157 = scmp.eq.s32.totalorder %s22, 0
    %p158 = por %p156, %p157
    %p159 = scmp.ne.s32.totalorder %s147, %s148
    %p160 = scmp.eq.s32.totalorder %s23, 1
    %p161 = por %p159, %p160
    %p163 = scmp.ne.s32.totalorder %s148, %s162
    %p164 = scmp.eq.s32.totalorder %s23, 0
    %p165 = por %p163, %p164
    %s167 = sadd.s32 %s166, 1
    %p170 = scmp.eq.s32.totalorder %s17, 1
    %p171 = scmp.ne.s32.totalorder %s166, %s168
    %p172 = scmp.eq.s32.totalorder %s17, 0
    %p173 = por %p171, %p172
    %p174 = scmp.ne.s32.totalorder %s166, %s168
    %p175 = scmp.eq.s32.totalorder %s22, 1
    %p176 = por %p174, %p175
    %p177 = scmp.ne.s32.totalorder %s168, %s169
    %p178 = scmp.eq.s32.totalorder %s22, 0
    %p179 = por %p177, %p178
    %p180 = scmp.ne.s32.totalorder %s168, %s169
    %p181 = scmp.eq.s32.totalorder %s23, 1
    %p182 = por %p180, %p181
    %p184 = scmp.ne.s32.totalorder %s169, %s183
    %p185 = scmp.eq.s32.totalorder %s23, 0
    %p186 = por %p184, %p185
    %s188 = sadd.s32 %s187, 1
    %p191 = scmp.eq.s32.totalorder %s17, 1
    %p192 = scmp.ne.s32.totalorder %s187, %s189
    %p193 = scmp.eq.s32.totalorder %s17, 0
    %p194 = por %p192, %p193
    %p195 = scmp.ne.s32.totalorder %s187, %s189
    %p196 = scmp.eq.s32.totalorder %s22, 1
    %p197 = por %p195, %p196
    %p198 = scmp.ne.s32.totalorder %s189, %s190
    %p199 = scmp.eq.s32.totalorder %s22, 0
    %p200 = por %p198, %p199
    %p201 = scmp.ne.s32.totalorder %s189, %s190
    %p202 = scmp.eq.s32.totalorder %s23, 1
    %p203 = por %p201, %p202
    %p205 = scmp.ne.s32.totalorder %s190, %s204
    %p206 = scmp.eq.s32.totalorder %s23, 0
    %p207 = por %p205, %p206
    %s208 = ssub.s32 %s17, %s24
    %p209 = scmp.eq.s32.totalorder %s208, 0
    %s211 = sadd.s32 %s210, 1
    %s212 = scalar_select %p209, %s210, %s211
    %p215 = pneg %p209
    %p216 = scmp.eq.s32.totalorder %s17, 1
    %p217 = por %p215, %p216
    %p218 = scmp.ne.s32.totalorder %s210, %s213
    %p219 = scmp.eq.s32.totalorder %s17, 0
    %p220 = por %p218, %p219
    %p221 = scmp.ne.s32.totalorder %s210, %s213
    %p222 = scmp.eq.s32.totalorder %s22, 1
    %p223 = por %p221, %p222
    %p224 = scmp.ne.s32.totalorder %s213, %s214
    %p225 = scmp.eq.s32.totalorder %s22, 0
    %p226 = por %p224, %p225
    %p227 = scmp.ne.s32.totalorder %s213, %s214
    %p228 = scmp.eq.s32.totalorder %s23, 1
    %p229 = por %p227, %p228
    %p231 = scmp.ne.s32.totalorder %s214, %s230
    %p232 = scmp.eq.s32.totalorder %s23, 0
    %p233 = por %p231, %p232
    %s234 = ssub.s32 %s17, %s24
    %p235 = scmp.eq.s32.totalorder %s234, 0
    %s237 = sadd.s32 %s236, 1
    %s238 = scalar_select %p235, %s236, %s237
    %p241 = pneg %p235
    %p242 = scmp.eq.s32.totalorder %s17, 1
    %p243 = por %p241, %p242
    %p244 = scmp.ne.s32.totalorder %s236, %s239
    %p245 = scmp.eq.s32.totalorder %s17, 0
    %p246 = por %p244, %p245
    %p247 = scmp.ne.s32.totalorder %s236, %s239
    %p248 = scmp.eq.s32.totalorder %s22, 1
    %p249 = por %p247, %p248
    %p250 = scmp.ne.s32.totalorder %s239, %s240
    %p251 = scmp.eq.s32.totalorder %s22, 0
    %p252 = por %p250, %p251
    %p253 = scmp.ne.s32.totalorder %s239, %s240
    %p254 = scmp.eq.s32.totalorder %s23, 1
    %p255 = por %p253, %p254
    %p257 = scmp.ne.s32.totalorder %s240, %s256
    %p258 = scmp.eq.s32.totalorder %s23, 0
    %p259 = por %p257, %p258
    %s260 = ssub.s32 %s17, %s24
    %p261 = scmp.eq.s32.totalorder %s260, 0
    %s263 = sadd.s32 %s262, 1
    %s264 = scalar_select %p261, %s262, %s263
    %p267 = pneg %p261
    %p268 = scmp.eq.s32.totalorder %s17, 1
    %p269 = por %p267, %p268
    %p270 = scmp.ne.s32.totalorder %s262, %s265
    %p271 = scmp.eq.s32.totalorder %s17, 0
    %p272 = por %p270, %p271
    %p273 = scmp.ne.s32.totalorder %s262, %s265
    %p274 = scmp.eq.s32.totalorder %s22, 1
    %p275 = por %p273, %p274
    %p276 = scmp.ne.s32.totalorder %s265, %s266
    %p277 = scmp.eq.s32.totalorder %s22, 0
    %p278 = por %p276, %p277
    %p279 = scmp.ne.s32.totalorder %s265, %s266
    %p280 = scmp.eq.s32.totalorder %s23, 1
    %p281 = por %p279, %p280
    %p283 = scmp.ne.s32.totalorder %s266, %s282
    %p284 = scmp.eq.s32.totalorder %s23, 0
    %p285 = por %p283, %p284
    %p286 = scmp.le.s32.totalorder 1, %s17
    %p287 = scmp.lt.s32.totalorder %s17, 3
    %p288 = pnand %p286, %p287
    %p289 = pneg %p288
    // Predicated region
    $region9: #{graph_transformer_layer.5} parent=5 // pred_check
      _
    $region10: #{graph_transformer_layer.5} parent=5 // pred_check_branch
      %291 = sbr.rel (%p288) target = $region12
    $region11: #{graph_transformer_layer.5} parent=5 // pred_region
      %s292 = ssub.s32 %s17, 1
      // Predicated region
      $region13: #{graph_transformer_layer.5} parent=11 // pred_check
        %p293 = pneg %p116
      $region14: #{graph_transformer_layer.5} parent=11 // pred_check_branch
        %295 = sbr.rel (%p293) target = $region16
      $region15: #{graph_transformer_layer.5} parent=11 // pred_region
        _
      $region16: #{graph_transformer_layer.5} parent=11 // pred_fallthru
        _
      // Predicated region
      $region17: #{graph_transformer_layer.5} parent=11 // pred_check
        %p296 = pneg %p137
      $region18: #{graph_transformer_layer.5} parent=11 // pred_check_branch
        %298 = sbr.rel (%p296) target = $region20
      $region19: #{graph_transformer_layer.5} parent=11 // pred_region
        _
      $region20: #{graph_transformer_layer.5} parent=11 // pred_fallthru
        _
      // Predicated region
      $region21: #{graph_transformer_layer.5} parent=11 // pred_check
        %p299 = pneg %p158
      $region22: #{graph_transformer_layer.5} parent=11 // pred_check_branch
        %301 = sbr.rel (%p299) target = $region24
      $region23: #{graph_transformer_layer.5} parent=11 // pred_region
        _
      $region24: #{graph_transformer_layer.5} parent=11 // pred_fallthru
        _
      // Predicated region
      $region25: #{graph_transformer_layer.5} parent=11 // pred_check
        %p302 = pneg %p179
      $region26: #{graph_transformer_layer.5} parent=11 // pred_check_branch
        %304 = sbr.rel (%p302) target = $region28
      $region27: #{graph_transformer_layer.5} parent=11 // pred_region
        _
      $region28: #{graph_transformer_layer.5} parent=11 // pred_fallthru
        _
      // Predicated region
      $region29: #{graph_transformer_layer.5} parent=11 // pred_check
        %p305 = pneg %p200
      $region30: #{graph_transformer_layer.5} parent=11 // pred_check_branch
        %307 = sbr.rel (%p305) target = $region32
      $region31: #{graph_transformer_layer.5} parent=11 // pred_region
        _
      $region32: #{graph_transformer_layer.5} parent=11 // pred_fallthru
        _
    $region12: #{graph_transformer_layer.5} parent=5 // pred_fallthru
      _
    %p308 = scmp.lt.s32.totalorder %s17, 2
    // Predicated region
    $region33: #{graph_transformer_layer.5} parent=5 // pred_check
      %p309 = pneg %p308
    $region34: #{graph_transformer_layer.5} parent=5 // pred_check_branch
      %311 = sbr.rel (%p309) target = $region36
    $region35: #{graph_transformer_layer.5} parent=5 // pred_region
      // Predicated region
      $region37: #{graph_transformer_layer.5} parent=35 // pred_check
        %p312 = pneg %p37
      $region38: #{graph_transformer_layer.5} parent=35 // pred_check_branch
        %314 = sbr.rel (%p312) target = $region40
      $region39: #{graph_transformer_layer.5} parent=35 // pred_region
        %s315 = smul.u32 16, %s17
        %p316 = scmp.lt.s32.totalorder %s315, 31
        %s317 = scalar_select %p316, %s315, 31
        %s318 = smul.addr %s317, 8
        %s319 = scalar_lea.vmem %s0, %s318
        %s320 = smul.u32 16, %s17
      $region40: #{graph_transformer_layer.5} parent=35 // pred_fallthru
        _
      // Predicated region
      $region41: #{graph_transformer_layer.5} parent=35 // pred_check
        %p321 = pneg %p63
      $region42: #{graph_transformer_layer.5} parent=35 // pred_check_branch
        %323 = sbr.rel (%p321) target = $region44
      $region43: #{graph_transformer_layer.5} parent=35 // pred_region
        %s324 = smul.u32 16, %s17
        %p325 = scmp.lt.s32.totalorder %s324, 31
        %s326 = scalar_select %p325, %s324, 31
        %s327 = smul.addr %s326, 8
        %s328 = scalar_lea.vmem %s1, %s327
        %s329 = smul.u32 16, %s17
      $region44: #{graph_transformer_layer.5} parent=35 // pred_fallthru
        _
      // Predicated region
      $region45: #{graph_transformer_layer.5} parent=35 // pred_check
        %p330 = pneg %p89
      $region46: #{graph_transformer_layer.5} parent=35 // pred_check_branch
        %332 = sbr.rel (%p330) target = $region48
      $region47: #{graph_transformer_layer.5} parent=35 // pred_region
        %s333 = smul.u32 16, %s17
        %p334 = scmp.lt.s32.totalorder %s333, 31
        %s335 = scalar_select %p334, %s333, 31
        %s336 = smul.addr %s335, 8
        %s337 = scalar_lea.vmem %s2, %s336
        %s338 = smul.u32 16, %s17
      $region48: #{graph_transformer_layer.5} parent=35 // pred_fallthru
        _
    $region36: #{graph_transformer_layer.5} parent=5 // pred_fallthru
      _
    %p339 = scmp.le.s32.totalorder 1, %s17
    %p340 = scmp.lt.s32.totalorder %s17, 3
    %p341 = pnand %p339, %p340
    %p342 = pneg %p341
    // Predicated region
    $region49: #{graph_transformer_layer.5} parent=5 // pred_check
      _
    $region50: #{graph_transformer_layer.5} parent=5 // pred_check_branch
      %344 = sbr.rel (%p341) target = $region52
    $region51: #{graph_transformer_layer.5} parent=5 // pred_region
      %s345 = ssub.s32 %s17, 1
      %s346 = smul.u32 16, %s22
      %p347 = scmp.lt.s32.totalorder %s346, 31
      %s348 = scalar_select %p347, %s346, 31
      %s349 = smul.addr %s348, 8
      %s350 = scalar_lea.vmem %s0, %s349
      %p351 = pneg %p43
      %p352 = pneg %p40
      %s353 = smul.u32 16, %s22
      %p354 = scmp.lt.s32.totalorder %s353, 31
      %s355 = scalar_select %p354, %s353, 31
      %s356 = smul.addr %s355, 8
      %s357 = scalar_lea.vmem %s1, %s356
      %p358 = pneg %p69
      %p359 = pneg %p66
      %s360 = smul.u32 16, %s22
      %p361 = scmp.lt.s32.totalorder %s360, 31
      %s362 = scalar_select %p361, %s360, 31
      %s363 = smul.addr %s362, 8
      %s364 = scalar_lea.vmem %s2, %s363
      %p365 = pneg %p95
      %p366 = pneg %p92
      %p367 = pneg %p116
      %p368 = pneg %p113
      %p369 = pneg %p137
      %p370 = pneg %p134
      %p371 = pneg %p158
      %p372 = pneg %p155
      %p373 = pneg %p179
      %p374 = pneg %p176
      %p375 = pneg %p200
      %p376 = pneg %p197
      %p377 = pneg %p226
      %p378 = pneg %p223
      %s379 = smul.u32 16, %s22
      %p380 = scmp.lt.s32.totalorder %s379, 31
      %s381 = scalar_select %p380, %s379, 31
      %s382 = smul.addr %s381, 4
      %s383 = scalar_lea.vmem %s8, %s382
      %p384 = pneg %p252
      %p385 = pneg %p249
      %s386 = smul.u32 16, %s22
      %p387 = scmp.lt.s32.totalorder %s386, 31
      %s388 = scalar_select %p387, %s386, 31
      %s389 = smul.addr %s388, 8
      %s390 = scalar_lea.vmem %s9, %s389
      %p391 = pneg %p278
      %p392 = pneg %p275
      %s393 = smul.u32 16, %s22
      %p394 = scmp.lt.s32.totalorder %s393, 31
      %s395 = scalar_select %p394, %s393, 31
      %s396 = smul.addr %s395, 8
      %s397 = scalar_lea.vmem %s10, %s396
      %s398 = smul.u32 16, %s22
      %p399 = scmp.lt.s32.totalorder %s398, 31
      %s400 = scalar_select %p399, %s398, 31
      %s401 = smul.addr %s400, 8
      %s402 = scalar_lea.vmem %s0, %s401
      %s403 = smul.u32 16, %s22
      %s404 = smul.u32 16, %s22
      %p405 = scmp.lt.s32.totalorder %s404, 31
      %s406 = scalar_select %p405, %s404, 31
      %s407 = smul.addr %s406, 8
      %s408 = scalar_lea.vmem %s1, %s407
      %s409 = smul.u32 16, %s22
      %s410 = smul.u32 16, %s22
      %p411 = scmp.lt.s32.totalorder %s410, 31
      %s412 = scalar_select %p411, %s410, 31
      %s413 = smul.addr %s412, 8
      %s414 = scalar_lea.vmem %s2, %s413
      %s415 = smul.u32 16, %s22
      %s416 = smul.u32 16, %s22
      %p417 = scmp.lt.s32.totalorder %s416, 31
      %s418 = scalar_select %p417, %s416, 31
      %s419 = smul.addr %s418, 4
      %s420 = scalar_lea.vmem %s8, %s419
      %s421 = smul.u32 16, %s22
      %s422 = smul.u32 16, %s22
      %p423 = scmp.lt.s32.totalorder %s422, 31
      %s424 = scalar_select %p423, %s422, 31
      %s425 = smul.addr %s424, 8
      %s426 = scalar_lea.vmem %s9, %s425
      %s427 = smul.u32 16, %s22
      %s428 = smul.u32 16, %s22
      %p429 = scmp.lt.s32.totalorder %s428, 31
      %s430 = scalar_select %p429, %s428, 31
      %s431 = smul.addr %s430, 8
      %s432 = scalar_lea.vmem %s10, %s431
      %s433 = smul.u32 16, %s22
      %v434 = vlaneseq
      %v435 = vand.u32 %v434, 127
      %v436 = vld [vmem:[%s408] sm:$0xff]
      %v437 = vld [vmem:[%s408 + $0x8] sm:$0xff]
      %v438 = vld [vmem:[%s408 + $0x10] sm:$0xff]
      %v439 = vld [vmem:[%s408 + $0x18] sm:$0xff]
      %v440 = vld [vmem:[%s408 + $0x20] sm:$0xff]
      %v441 = vld [vmem:[%s408 + $0x28] sm:$0xff]
      %v442 = vld [vmem:[%s408 + $0x30] sm:$0xff]
      %v443 = vld [vmem:[%s408 + $0x38] sm:$0xff]
      %v444 = vld [vmem:[%s408 + $0x40] sm:$0xff]
      %v445 = vld [vmem:[%s408 + $0x48] sm:$0xff]
      %v446 = vld [vmem:[%s408 + $0x50] sm:$0xff]
      %v447 = vld [vmem:[%s408 + $0x58] sm:$0xff]
      %v448 = vld [vmem:[%s408 + $0x60] sm:$0xff]
      %v449 = vld [vmem:[%s408 + $0x68] sm:$0xff]
      %v450 = vld [vmem:[%s408 + $0x70] sm:$0xff]
      %v451 = vld [vmem:[%s408 + $0x78] sm:$0xff]
      %452 = vset.pattern.permute.xlu0 0
      %453 = vperm.xlu0 %452, %v436
      %v454 = vpop.permute.xlu0 %453
      %455 = vset.pattern.permute.xlu0 0
      %456 = vperm.xlu0 %455, %v437
      %v457 = vpop.permute.xlu0 %456
      %458 = vset.pattern.permute.xlu0 0
      %459 = vperm.xlu0 %458, %v438
      %v460 = vpop.permute.xlu0 %459
      %461 = vset.pattern.permute.xlu0 0
      %462 = vperm.xlu0 %461, %v439
      %v463 = vpop.permute.xlu0 %462
      %464 = vset.pattern.permute.xlu0 0
      %465 = vperm.xlu0 %464, %v440
      %v466 = vpop.permute.xlu0 %465
      %467 = vset.pattern.permute.xlu0 0
      %468 = vperm.xlu0 %467, %v441
      %v469 = vpop.permute.xlu0 %468
      %470 = vset.pattern.permute.xlu0 0
      %471 = vperm.xlu0 %470, %v442
      %v472 = vpop.permute.xlu0 %471
      %473 = vset.pattern.permute.xlu0 0
      %474 = vperm.xlu0 %473, %v443
      %v475 = vpop.permute.xlu0 %474
      %476 = vset.pattern.permute.xlu0 0
      %477 = vperm.xlu0 %476, %v444
      %v478 = vpop.permute.xlu0 %477
      %479 = vset.pattern.permute.xlu0 0
      %480 = vperm.xlu0 %479, %v445
      %v481 = vpop.permute.xlu0 %480
      %482 = vset.pattern.permute.xlu0 0
      %483 = vperm.xlu0 %482, %v446
      %v484 = vpop.permute.xlu0 %483
      %485 = vset.pattern.permute.xlu0 0
      %486 = vperm.xlu0 %485, %v447
      %v487 = vpop.permute.xlu0 %486
      %488 = vset.pattern.permute.xlu0 0
      %489 = vperm.xlu0 %488, %v448
      %v490 = vpop.permute.xlu0 %489
      %491 = vset.pattern.permute.xlu0 0
      %492 = vperm.xlu0 %491, %v449
      %v493 = vpop.permute.xlu0 %492
      %494 = vset.pattern.permute.xlu0 0
      %495 = vperm.xlu0 %494, %v450
      %v496 = vpop.permute.xlu0 %495
      %497 = vset.pattern.permute.xlu0 0
      %498 = vperm.xlu0 %497, %v451
      %v499 = vpop.permute.xlu0 %498
      %vm500 = vcmp.eq.s32.totalorder %v435, %v454
      %vm501 = vcmp.eq.s32.totalorder %v435, %v457
      %vm502 = vcmp.eq.s32.totalorder %v435, %v460
      %vm503 = vcmp.eq.s32.totalorder %v435, %v463
      %vm504 = vcmp.eq.s32.totalorder %v435, %v466
      %vm505 = vcmp.eq.s32.totalorder %v435, %v469
      %vm506 = vcmp.eq.s32.totalorder %v435, %v472
      %vm507 = vcmp.eq.s32.totalorder %v435, %v475
      %vm508 = vcmp.eq.s32.totalorder %v435, %v478
      %vm509 = vcmp.eq.s32.totalorder %v435, %v481
      %vm510 = vcmp.eq.s32.totalorder %v435, %v484
      %vm511 = vcmp.eq.s32.totalorder %v435, %v487
      %vm512 = vcmp.eq.s32.totalorder %v435, %v490
      %vm513 = vcmp.eq.s32.totalorder %v435, %v493
      %vm514 = vcmp.eq.s32.totalorder %v435, %v496
      %vm515 = vcmp.eq.s32.totalorder %v435, %v499
      %v516 = vsel %vm500, 1.0, 0.0
      %v517 = vsel %vm501, 1.0, 0.0
      %v518 = vsel %vm502, 1.0, 0.0
      %v519 = vsel %vm503, 1.0, 0.0
      %v520 = vsel %vm504, 1.0, 0.0
      %v521 = vsel %vm505, 1.0, 0.0
      %v522 = vsel %vm506, 1.0, 0.0
      %v523 = vsel %vm507, 1.0, 0.0
      %v524 = vsel %vm508, 1.0, 0.0
      %v525 = vsel %vm509, 1.0, 0.0
      %v526 = vsel %vm510, 1.0, 0.0
      %v527 = vsel %vm511, 1.0, 0.0
      %v528 = vsel %vm512, 1.0, 0.0
      %v529 = vsel %vm513, 1.0, 0.0
      %v530 = vsel %vm514, 1.0, 0.0
      %v531 = vsel %vm515, 1.0, 0.0
      %v532 = vpack.c.bf16 %v517, %v516
      %v533 = vpack.c.bf16 %v519, %v518
      %v534 = vpack.c.bf16 %v521, %v520
      %v535 = vpack.c.bf16 %v523, %v522
      %v536 = vpack.c.bf16 %v525, %v524
      %v537 = vpack.c.bf16 %v527, %v526
      %v538 = vpack.c.bf16 %v529, %v528
      %v539 = vpack.c.bf16 %v531, %v530
      %v540 = vld [vmem:[%s414] sm:$0xff]
      %v541 = vld [vmem:[%s414 + $0x8] sm:$0xff]
      %v542 = vld [vmem:[%s414 + $0x10] sm:$0xff]
      %v543 = vld [vmem:[%s414 + $0x18] sm:$0xff]
      %v544 = vld [vmem:[%s414 + $0x20] sm:$0xff]
      %v545 = vld [vmem:[%s414 + $0x28] sm:$0xff]
      %v546 = vld [vmem:[%s414 + $0x30] sm:$0xff]
      %v547 = vld [vmem:[%s414 + $0x38] sm:$0xff]
      %v548 = vld [vmem:[%s414 + $0x40] sm:$0xff]
      %v549 = vld [vmem:[%s414 + $0x48] sm:$0xff]
      %v550 = vld [vmem:[%s414 + $0x50] sm:$0xff]
      %v551 = vld [vmem:[%s414 + $0x58] sm:$0xff]
      %v552 = vld [vmem:[%s414 + $0x60] sm:$0xff]
      %v553 = vld [vmem:[%s414 + $0x68] sm:$0xff]
      %v554 = vld [vmem:[%s414 + $0x70] sm:$0xff]
      %v555 = vld [vmem:[%s414 + $0x78] sm:$0xff]
      %556 = vset.pattern.permute.xlu0 0
      %557 = vperm.xlu0 %556, %v540
      %v558 = vpop.permute.xlu0 %557
      %559 = vset.pattern.permute.xlu0 0
      %560 = vperm.xlu0 %559, %v541
      %v561 = vpop.permute.xlu0 %560
      %562 = vset.pattern.permute.xlu0 0
      %563 = vperm.xlu0 %562, %v542
      %v564 = vpop.permute.xlu0 %563
      %565 = vset.pattern.permute.xlu0 0
      %566 = vperm.xlu0 %565, %v543
      %v567 = vpop.permute.xlu0 %566
      %568 = vset.pattern.permute.xlu0 0
      %569 = vperm.xlu0 %568, %v544
      %v570 = vpop.permute.xlu0 %569
      %571 = vset.pattern.permute.xlu0 0
      %572 = vperm.xlu0 %571, %v545
      %v573 = vpop.permute.xlu0 %572
      %574 = vset.pattern.permute.xlu0 0
      %575 = vperm.xlu0 %574, %v546
      %v576 = vpop.permute.xlu0 %575
      %577 = vset.pattern.permute.xlu0 0
      %578 = vperm.xlu0 %577, %v547
      %v579 = vpop.permute.xlu0 %578
      %580 = vset.pattern.permute.xlu0 0
      %581 = vperm.xlu0 %580, %v548
      %v582 = vpop.permute.xlu0 %581
      %583 = vset.pattern.permute.xlu0 0
      %584 = vperm.xlu0 %583, %v549
      %v585 = vpop.permute.xlu0 %584
      %586 = vset.pattern.permute.xlu0 0
      %587 = vperm.xlu0 %586, %v550
      %v588 = vpop.permute.xlu0 %587
      %589 = vset.pattern.permute.xlu0 0
      %590 = vperm.xlu0 %589, %v551
      %v591 = vpop.permute.xlu0 %590
      %592 = vset.pattern.permute.xlu0 0
      %593 = vperm.xlu0 %592, %v552
      %v594 = vpop.permute.xlu0 %593
      %595 = vset.pattern.permute.xlu0 0
      %596 = vperm.xlu0 %595, %v553
      %v597 = vpop.permute.xlu0 %596
      %598 = vset.pattern.permute.xlu0 0
      %599 = vperm.xlu0 %598, %v554
      %v600 = vpop.permute.xlu0 %599
      %601 = vset.pattern.permute.xlu0 0
      %602 = vperm.xlu0 %601, %v555
      %v603 = vpop.permute.xlu0 %602
      %vm604 = vcmp.eq.s32.totalorder %v435, %v558
      %vm605 = vcmp.eq.s32.totalorder %v435, %v561
      %vm606 = vcmp.eq.s32.totalorder %v435, %v564
      %vm607 = vcmp.eq.s32.totalorder %v435, %v567
      %vm608 = vcmp.eq.s32.totalorder %v435, %v570
      %vm609 = vcmp.eq.s32.totalorder %v435, %v573
      %vm610 = vcmp.eq.s32.totalorder %v435, %v576
      %vm611 = vcmp.eq.s32.totalorder %v435, %v579
      %vm612 = vcmp.eq.s32.totalorder %v435, %v582
      %vm613 = vcmp.eq.s32.totalorder %v435, %v585
      %vm614 = vcmp.eq.s32.totalorder %v435, %v588
      %vm615 = vcmp.eq.s32.totalorder %v435, %v591
      %vm616 = vcmp.eq.s32.totalorder %v435, %v594
      %vm617 = vcmp.eq.s32.totalorder %v435, %v597
      %vm618 = vcmp.eq.s32.totalorder %v435, %v600
      %vm619 = vcmp.eq.s32.totalorder %v435, %v603
      %v620 = vsel %vm604, 1.0, 0.0
      %v621 = vsel %vm605, 1.0, 0.0
      %v622 = vsel %vm606, 1.0, 0.0
      %v623 = vsel %vm607, 1.0, 0.0
      %v624 = vsel %vm608, 1.0, 0.0
      %v625 = vsel %vm609, 1.0, 0.0
      %v626 = vsel %vm610, 1.0, 0.0
      %v627 = vsel %vm611, 1.0, 0.0
      %v628 = vsel %vm612, 1.0, 0.0
      %v629 = vsel %vm613, 1.0, 0.0
      %v630 = vsel %vm614, 1.0, 0.0
      %v631 = vsel %vm615, 1.0, 0.0
      %v632 = vsel %vm616, 1.0, 0.0
      %v633 = vsel %vm617, 1.0, 0.0
      %v634 = vsel %vm618, 1.0, 0.0
      %v635 = vsel %vm619, 1.0, 0.0
      %v636 = vpack.c.bf16 %v621, %v620
      %v637 = vpack.c.bf16 %v623, %v622
      %v638 = vpack.c.bf16 %v625, %v624
      %v639 = vpack.c.bf16 %v627, %v626
      %v640 = vpack.c.bf16 %v629, %v628
      %v641 = vpack.c.bf16 %v631, %v630
      %v642 = vpack.c.bf16 %v633, %v632
      %v643 = vpack.c.bf16 %v635, %v634
      %v644 = vld [vmem:[%s3] sm:$0xff]
      %v645 = vld [vmem:[%s3 + $0xc] sm:$0xff]
      %v646 = vld [vmem:[%s3 + $0x18] sm:$0xff]
      %v647 = vld [vmem:[%s3 + $0x24] sm:$0xff]
      %v648 = vld [vmem:[%s3 + $0x30] sm:$0xff]
      %v649 = vld [vmem:[%s3 + $0x3c] sm:$0xff]
      %v650 = vld [vmem:[%s3 + $0x48] sm:$0xff]
      %v651 = vld [vmem:[%s3 + $0x54] sm:$0xff]
      %v652 = vld [vmem:[%s3 + $0x60] sm:$0xff]
      %v653 = vld [vmem:[%s3 + $0x6c] sm:$0xff]
      %v654 = vld [vmem:[%s3 + $0x78] sm:$0xff]
      %v655 = vld [vmem:[%s3 + $0x84] sm:$0xff]
      %v656 = vld [vmem:[%s3 + $0x90] sm:$0xff]
      %v657 = vld [vmem:[%s3 + $0x9c] sm:$0xff]
      %v658 = vld [vmem:[%s3 + $0xa8] sm:$0xff]
      %v659 = vld [vmem:[%s3 + $0xb4] sm:$0xff]
      %v676 = vunpack.c.l.b16 %v644
      %v677 = vunpack.c.h.b16 %v644
      %v678 = vunpack.c.l.b16 %v645
      %v679 = vunpack.c.h.b16 %v645
      %v680 = vunpack.c.l.b16 %v646
      %v681 = vunpack.c.h.b16 %v646
      %v682 = vunpack.c.l.b16 %v647
      %v683 = vunpack.c.h.b16 %v647
      %v684 = vunpack.c.l.b16 %v648
      %v685 = vunpack.c.h.b16 %v648
      %v686 = vunpack.c.l.b16 %v649
      %v687 = vunpack.c.h.b16 %v649
      %v688 = vunpack.c.l.b16 %v650
      %v689 = vunpack.c.h.b16 %v650
      %v690 = vunpack.c.l.b16 %v651
      %v691 = vunpack.c.h.b16 %v651
      %v692 = vunpack.c.l.b16 %v652
      %v693 = vunpack.c.h.b16 %v652
      %v694 = vunpack.c.l.b16 %v653
      %v695 = vunpack.c.h.b16 %v653
      %v696 = vunpack.c.l.b16 %v654
      %v697 = vunpack.c.h.b16 %v654
      %v698 = vunpack.c.l.b16 %v655
      %v699 = vunpack.c.h.b16 %v655
      %v700 = vunpack.c.l.b16 %v656
      %v701 = vunpack.c.h.b16 %v656
      %v702 = vunpack.c.l.b16 %v657
      %v703 = vunpack.c.h.b16 %v657
      %v704 = vunpack.c.l.b16 %v658
      %v705 = vunpack.c.h.b16 %v658
      %v706 = vunpack.c.l.b16 %v659
      %v707 = vunpack.c.h.b16 %v659
      %v708 = vpack.c.b16 %v678, %v676
      %v709 = vpack.c.b16 %v679, %v677
      %v710 = vpack.c.b16 %v682, %v680
      %v711 = vpack.c.b16 %v683, %v681
      %v712 = vpack.c.b16 %v686, %v684
      %v713 = vpack.c.b16 %v687, %v685
      %v714 = vpack.c.b16 %v690, %v688
      %v715 = vpack.c.b16 %v691, %v689
      %v716 = vpack.c.b16 %v694, %v692
      %v717 = vpack.c.b16 %v695, %v693
      %v718 = vpack.c.b16 %v698, %v696
      %v719 = vpack.c.b16 %v699, %v697
      %v720 = vpack.c.b16 %v702, %v700
      %v721 = vpack.c.b16 %v703, %v701
      %v722 = vpack.c.b16 %v706, %v704
      %v723 = vpack.c.b16 %v707, %v705
      %740 = vmatpush.bf16.msra.mxu0 %v722
      %741 = vmatpush.bf16.msra.mxu0 %v720
      %742 = vmatpush.bf16.msra.mxu0 %v718
      %743 = vmatpush.bf16.msra.mxu0 %v716
      %744 = vmatpush.bf16.msra.mxu0 %v714
      %745 = vmatpush.bf16.msra.mxu0 %v712
      %746 = vmatpush.bf16.msra.mxu0 %v710
      %747 = vmatpush.bf16.msra.mxu0 %v708
      %748 = vmatmul.bf16.gmra.mxu0 %v532
      %v749 = vpop.f32.mrf.mxu0
      %v750 = vadd.f32 0.0, %v749
      %v751 = vpop.f32.mrf.mxu0
      %v752 = vadd.f32 0.0, %v751
      %753 = vmatmul.bf16.gmra.mxu0 %v533
      %v754 = vpop.f32.mrf.mxu0
      %v755 = vadd.f32 0.0, %v754
      %v756 = vpop.f32.mrf.mxu0
      %v757 = vadd.f32 0.0, %v756
      %758 = vmatmul.bf16.gmra.mxu0 %v534
      %v759 = vpop.f32.mrf.mxu0
      %v760 = vadd.f32 0.0, %v759
      %v761 = vpop.f32.mrf.mxu0
      %v762 = vadd.f32 0.0, %v761
      %763 = vmatmul.bf16.gmra.mxu0 %v535
      %v764 = vpop.f32.mrf.mxu0
      %v765 = vadd.f32 0.0, %v764
      %v766 = vpop.f32.mrf.mxu0
      %v767 = vadd.f32 0.0, %v766
      %768 = vmatmul.bf16.gmra.mxu0 %v536
      %v769 = vpop.f32.mrf.mxu0
      %v770 = vadd.f32 0.0, %v769
      %v771 = vpop.f32.mrf.mxu0
      %v772 = vadd.f32 0.0, %v771
      %773 = vmatmul.bf16.gmra.mxu0 %v537
      %v774 = vpop.f32.mrf.mxu0
      %v775 = vadd.f32 0.0, %v774
      %v776 = vpop.f32.mrf.mxu0
      %v777 = vadd.f32 0.0, %v776
      %778 = vmatmul.bf16.gmra.mxu0 %v538
      %v779 = vpop.f32.mrf.mxu0
      %v780 = vadd.f32 0.0, %v779
      %v781 = vpop.f32.mrf.mxu0
      %v782 = vadd.f32 0.0, %v781
      %783 = vmatmul.bf16.gmra.mxu0 %v539
      %v784 = vpop.f32.mrf.mxu0
      %v785 = vadd.f32 0.0, %v784
      %v786 = vpop.f32.mrf.mxu0
      %v787 = vadd.f32 0.0, %v786
      %788 = vdwg.mxu0
      %789 = vmatpush.bf16.msra.mxu0 %v723
      %790 = vmatpush.bf16.msra.mxu0 %v721
      %791 = vmatpush.bf16.msra.mxu0 %v719
      %792 = vmatpush.bf16.msra.mxu0 %v717
      %793 = vmatpush.bf16.msra.mxu0 %v715
      %794 = vmatpush.bf16.msra.mxu0 %v713
      %795 = vmatpush.bf16.msra.mxu0 %v711
      %796 = vmatpush.bf16.msra.mxu0 %v709
      %797 = vmatmul.bf16.gmra.mxu0 %v532
      %v798 = vpop.f32.mrf.mxu0
      %v799 = vadd.f32 0.0, %v798
      %v800 = vpop.f32.mrf.mxu0
      %v801 = vadd.f32 0.0, %v800
      %802 = vmatmul.bf16.gmra.mxu0 %v533
      %v803 = vpop.f32.mrf.mxu0
      %v804 = vadd.f32 0.0, %v803
      %v805 = vpop.f32.mrf.mxu0
      %v806 = vadd.f32 0.0, %v805
      %807 = vmatmul.bf16.gmra.mxu0 %v534
      %v808 = vpop.f32.mrf.mxu0
      %v809 = vadd.f32 0.0, %v808
      %v810 = vpop.f32.mrf.mxu0
      %v811 = vadd.f32 0.0, %v810
      %812 = vmatmul.bf16.gmra.mxu0 %v535
      %v813 = vpop.f32.mrf.mxu0
      %v814 = vadd.f32 0.0, %v813
      %v815 = vpop.f32.mrf.mxu0
      %v816 = vadd.f32 0.0, %v815
      %817 = vmatmul.bf16.gmra.mxu0 %v536
      %v818 = vpop.f32.mrf.mxu0
      %v819 = vadd.f32 0.0, %v818
      %v820 = vpop.f32.mrf.mxu0
      %v821 = vadd.f32 0.0, %v820
      %822 = vmatmul.bf16.gmra.mxu0 %v537
      %v823 = vpop.f32.mrf.mxu0
      %v824 = vadd.f32 0.0, %v823
      %v825 = vpop.f32.mrf.mxu0
      %v826 = vadd.f32 0.0, %v825
      %827 = vmatmul.bf16.gmra.mxu0 %v538
      %v828 = vpop.f32.mrf.mxu0
      %v829 = vadd.f32 0.0, %v828
      %v830 = vpop.f32.mrf.mxu0
      %v831 = vadd.f32 0.0, %v830
      %832 = vmatmul.bf16.gmra.mxu0 %v539
      %v833 = vpop.f32.mrf.mxu0
      %v834 = vadd.f32 0.0, %v833
      %v835 = vpop.f32.mrf.mxu0
      %v836 = vadd.f32 0.0, %v835
      %837 = vdwg.mxu0
      %v838 = vld [vmem:[%s3 + $0x8] sm:$0xf]
      %v839 = vld [vmem:[%s3 + $0x14] sm:$0xf]
      %v840 = vld [vmem:[%s3 + $0x20] sm:$0xf]
      %v841 = vld [vmem:[%s3 + $0x2c] sm:$0xf]
      %v842 = vld [vmem:[%s3 + $0x38] sm:$0xf]
      %v843 = vld [vmem:[%s3 + $0x44] sm:$0xf]
      %v844 = vld [vmem:[%s3 + $0x50] sm:$0xf]
      %v845 = vld [vmem:[%s3 + $0x5c] sm:$0xf]
      %v846 = vld [vmem:[%s3 + $0x68] sm:$0xf]
      %v847 = vld [vmem:[%s3 + $0x74] sm:$0xf]
      %v848 = vld [vmem:[%s3 + $0x80] sm:$0xf]
      %v849 = vld [vmem:[%s3 + $0x8c] sm:$0xf]
      %v850 = vld [vmem:[%s3 + $0x98] sm:$0xf]
      %v851 = vld [vmem:[%s3 + $0xa4] sm:$0xf]
      %v852 = vld [vmem:[%s3 + $0xb0] sm:$0xf]
      %v853 = vld [vmem:[%s3 + $0xbc] sm:$0xf]
      %v870 = vunpack.c.l.b16 %v838
      %v871 = vunpack.c.l.b16 %v839
      %v872 = vunpack.c.l.b16 %v840
      %v873 = vunpack.c.l.b16 %v841
      %v874 = vunpack.c.l.b16 %v842
      %v875 = vunpack.c.l.b16 %v843
      %v876 = vunpack.c.l.b16 %v844
      %v877 = vunpack.c.l.b16 %v845
      %v878 = vunpack.c.l.b16 %v846
      %v879 = vunpack.c.l.b16 %v847
      %v880 = vunpack.c.l.b16 %v848
      %v881 = vunpack.c.l.b16 %v849
      %v882 = vunpack.c.l.b16 %v850
      %v883 = vunpack.c.l.b16 %v851
      %v884 = vunpack.c.l.b16 %v852
      %v885 = vunpack.c.l.b16 %v853
      %v886 = vpack.c.b16 %v871, %v870
      %v887 = vpack.c.b16 %v873, %v872
      %v888 = vpack.c.b16 %v875, %v874
      %v889 = vpack.c.b16 %v877, %v876
      %v890 = vpack.c.b16 %v879, %v878
      %v891 = vpack.c.b16 %v881, %v880
      %v892 = vpack.c.b16 %v883, %v882
      %v893 = vpack.c.b16 %v885, %v884
      %902 = vmatpush.bf16.msra.mxu0 %v893
      %903 = vmatpush.bf16.msra.mxu0 %v892
      %904 = vmatpush.bf16.msra.mxu0 %v891
      %905 = vmatpush.bf16.msra.mxu0 %v890
      %906 = vmatpush.bf16.msra.mxu0 %v889
      %907 = vmatpush.bf16.msra.mxu0 %v888
      %908 = vmatpush.bf16.msra.mxu0 %v887
      %909 = vmatpush.bf16.msra.mxu0 %v886
      %910 = vmatmul.bf16.gmra.mxu0 %v636
      %v911 = vpop.f32.mrf.mxu0
      %v912 = vadd.f32 0.0, %v911
      %v913 = vpop.f32.mrf.mxu0
      %v914 = vadd.f32 0.0, %v913
      %915 = vmatmul.bf16.gmra.mxu0 %v637
      %v916 = vpop.f32.mrf.mxu0
      %v917 = vadd.f32 0.0, %v916
      %v918 = vpop.f32.mrf.mxu0
      %v919 = vadd.f32 0.0, %v918
      %920 = vmatmul.bf16.gmra.mxu0 %v638
      %v921 = vpop.f32.mrf.mxu0
      %v922 = vadd.f32 0.0, %v921
      %v923 = vpop.f32.mrf.mxu0
      %v924 = vadd.f32 0.0, %v923
      %925 = vmatmul.bf16.gmra.mxu0 %v639
      %v926 = vpop.f32.mrf.mxu0
      %v927 = vadd.f32 0.0, %v926
      %v928 = vpop.f32.mrf.mxu0
      %v929 = vadd.f32 0.0, %v928
      %930 = vmatmul.bf16.gmra.mxu0 %v640
      %v931 = vpop.f32.mrf.mxu0
      %v932 = vadd.f32 0.0, %v931
      %v933 = vpop.f32.mrf.mxu0
      %v934 = vadd.f32 0.0, %v933
      %935 = vmatmul.bf16.gmra.mxu0 %v641
      %v936 = vpop.f32.mrf.mxu0
      %v937 = vadd.f32 0.0, %v936
      %v938 = vpop.f32.mrf.mxu0
      %v939 = vadd.f32 0.0, %v938
      %940 = vmatmul.bf16.gmra.mxu0 %v642
      %v941 = vpop.f32.mrf.mxu0
      %v942 = vadd.f32 0.0, %v941
      %v943 = vpop.f32.mrf.mxu0
      %v944 = vadd.f32 0.0, %v943
      %945 = vmatmul.bf16.gmra.mxu0 %v643
      %v946 = vpop.f32.mrf.mxu0
      %v947 = vadd.f32 0.0, %v946
      %v948 = vpop.f32.mrf.mxu0
      %v949 = vadd.f32 0.0, %v948
      %950 = vdwg.mxu0
      %v951 = vld [vmem:[%s402] sm:$0xff]
      %v952 = vld [vmem:[%s402 + $0x8] sm:$0xff]
      %v953 = vld [vmem:[%s402 + $0x10] sm:$0xff]
      %v954 = vld [vmem:[%s402 + $0x18] sm:$0xff]
      %v955 = vld [vmem:[%s402 + $0x20] sm:$0xff]
      %v956 = vld [vmem:[%s402 + $0x28] sm:$0xff]
      %v957 = vld [vmem:[%s402 + $0x30] sm:$0xff]
      %v958 = vld [vmem:[%s402 + $0x38] sm:$0xff]
      %v959 = vld [vmem:[%s402 + $0x40] sm:$0xff]
      %v960 = vld [vmem:[%s402 + $0x48] sm:$0xff]
      %v961 = vld [vmem:[%s402 + $0x50] sm:$0xff]
      %v962 = vld [vmem:[%s402 + $0x58] sm:$0xff]
      %v963 = vld [vmem:[%s402 + $0x60] sm:$0xff]
      %v964 = vld [vmem:[%s402 + $0x68] sm:$0xff]
      %v965 = vld [vmem:[%s402 + $0x70] sm:$0xff]
      %v966 = vld [vmem:[%s402 + $0x78] sm:$0xff]
      %v967 = vld [vmem:[%s4] sm:$0xf]
      %v968 = vld [vmem:[%s4 + $0x4] sm:$0xf]
      %v969 = vld [vmem:[%s4 + $0x8] sm:$0xf]
      %v970 = vld [vmem:[%s4 + $0xc] sm:$0xf]
      %v971 = vld [vmem:[%s4 + $0x10] sm:$0xf]
      %v972 = vld [vmem:[%s4 + $0x14] sm:$0xf]
      %v973 = vld [vmem:[%s4 + $0x18] sm:$0xf]
      %v974 = vld [vmem:[%s4 + $0x1c] sm:$0xf]
      %v975 = vld [vmem:[%s4 + $0x20] sm:$0xf]
      %v976 = vld [vmem:[%s4 + $0x24] sm:$0xf]
      %v977 = vld [vmem:[%s4 + $0x28] sm:$0xf]
      %v978 = vld [vmem:[%s4 + $0x2c] sm:$0xf]
      %v979 = vld [vmem:[%s4 + $0x30] sm:$0xf]
      %v980 = vld [vmem:[%s4 + $0x34] sm:$0xf]
      %v981 = vld [vmem:[%s4 + $0x38] sm:$0xf]
      %v982 = vld [vmem:[%s4 + $0x3c] sm:$0xf]
      %v983 = vld [vmem:[%s5] sm:$0x1]
      %v984 = vld [vmem:[%s6] sm:$0xff]
      %v985 = vld [vmem:[%s6 + $0x8] sm:$0xff]
      %v986 = vld [vmem:[%s6 + $0x10] sm:$0xff]
      %v987 = vld [vmem:[%s6 + $0x18] sm:$0xff]
      %v988 = vld [vmem:[%s6 + $0x20] sm:$0xff]
      %v989 = vld [vmem:[%s6 + $0x28] sm:$0xff]
      %v990 = vld [vmem:[%s6 + $0x30] sm:$0xff]
      %v991 = vld [vmem:[%s6 + $0x38] sm:$0xff]
      %v992 = vld [vmem:[%s6 + $0x40] sm:$0xff]
      %v993 = vld [vmem:[%s6 + $0x48] sm:$0xff]
      %v994 = vld [vmem:[%s6 + $0x50] sm:$0xff]
      %v995 = vld [vmem:[%s6 + $0x58] sm:$0xff]
      %v996 = vld [vmem:[%s6 + $0x60] sm:$0xff]
      %v997 = vld [vmem:[%s6 + $0x68] sm:$0xff]
      %v998 = vld [vmem:[%s6 + $0x70] sm:$0xff]
      %v999 = vld [vmem:[%s6 + $0x78] sm:$0xff]
      %v1000 = vld [vmem:[%s7] sm:$0xff]
      %v1001 = vpack.c.bf16 %v952, %v951
      %v1002 = vpack.c.bf16 %v954, %v953
      %v1003 = vpack.c.bf16 %v956, %v955
      %v1004 = vpack.c.bf16 %v958, %v957
      %v1005 = vpack.c.bf16 %v960, %v959
      %v1006 = vpack.c.bf16 %v962, %v961
      %v1007 = vpack.c.bf16 %v964, %v963
      %v1008 = vpack.c.bf16 %v966, %v965
      %v1010 = vperm.slane %v983, 0
      %v1028 = vunpack.c.l.b16 %v967
      %v1029 = vunpack.c.l.b16 %v968
      %v1030 = vunpack.c.l.b16 %v969
      %v1031 = vunpack.c.l.b16 %v970
      %v1032 = vunpack.c.l.b16 %v971
      %v1033 = vunpack.c.l.b16 %v972
      %v1034 = vunpack.c.l.b16 %v973
      %v1035 = vunpack.c.l.b16 %v974
      %v1036 = vunpack.c.l.b16 %v975
      %v1037 = vunpack.c.l.b16 %v976
      %v1038 = vunpack.c.l.b16 %v977
      %v1039 = vunpack.c.l.b16 %v978
      %v1040 = vunpack.c.l.b16 %v979
      %v1041 = vunpack.c.l.b16 %v980
      %v1042 = vunpack.c.l.b16 %v981
      %v1043 = vunpack.c.l.b16 %v982
      %v1044 = vpack.c.b16 %v1029, %v1028
      %v1045 = vpack.c.b16 %v1031, %v1030
      %v1046 = vpack.c.b16 %v1033, %v1032
      %v1047 = vpack.c.b16 %v1035, %v1034
      %v1048 = vpack.c.b16 %v1037, %v1036
      %v1049 = vpack.c.b16 %v1039, %v1038
      %v1050 = vpack.c.b16 %v1041, %v1040
      %v1051 = vpack.c.b16 %v1043, %v1042
      %1060 = vmatpush.bf16.msra.mxu0 %v1051
      %1061 = vmatpush.bf16.msra.mxu0 %v1050
      %1062 = vmatpush.bf16.msra.mxu0 %v1049
      %1063 = vmatpush.bf16.msra.mxu0 %v1048
      %1064 = vmatpush.bf16.msra.mxu0 %v1047
      %1065 = vmatpush.bf16.msra.mxu0 %v1046
      %1066 = vmatpush.bf16.msra.mxu0 %v1045
      %1067 = vmatpush.bf16.msra.mxu0 %v1044
      %1068 = vmatmul.bf16.gmra.mxu0 %v1001
      %v1069 = vpop.f32.mrf.mxu0
      %v1070 = vadd.f32 %v1010, %v1069
      %v1071 = vpop.f32.mrf.mxu0
      %v1072 = vadd.f32 %v1010, %v1071
      %1073 = vmatmul.bf16.gmra.mxu0 %v1002
      %v1074 = vpop.f32.mrf.mxu0
      %v1075 = vadd.f32 %v1010, %v1074
      %v1076 = vpop.f32.mrf.mxu0
      %v1077 = vadd.f32 %v1010, %v1076
      %1078 = vmatmul.bf16.gmra.mxu0 %v1003
      %v1079 = vpop.f32.mrf.mxu0
      %v1080 = vadd.f32 %v1010, %v1079
      %v1081 = vpop.f32.mrf.mxu0
      %v1082 = vadd.f32 %v1010, %v1081
      %1083 = vmatmul.bf16.gmra.mxu0 %v1004
      %v1084 = vpop.f32.mrf.mxu0
      %v1085 = vadd.f32 %v1010, %v1084
      %v1086 = vpop.f32.mrf.mxu0
      %v1087 = vadd.f32 %v1010, %v1086
      %1088 = vmatmul.bf16.gmra.mxu0 %v1005
      %v1089 = vpop.f32.mrf.mxu0
      %v1090 = vadd.f32 %v1010, %v1089
      %v1091 = vpop.f32.mrf.mxu0
      %v1092 = vadd.f32 %v1010, %v1091
      %1093 = vmatmul.bf16.gmra.mxu0 %v1006
      %v1094 = vpop.f32.mrf.mxu0
      %v1095 = vadd.f32 %v1010, %v1094
      %v1096 = vpop.f32.mrf.mxu0
      %v1097 = vadd.f32 %v1010, %v1096
      %1098 = vmatmul.bf16.gmra.mxu0 %v1007
      %v1099 = vpop.f32.mrf.mxu0
      %v1100 = vadd.f32 %v1010, %v1099
      %v1101 = vpop.f32.mrf.mxu0
      %v1102 = vadd.f32 %v1010, %v1101
      %1103 = vmatmul.bf16.gmra.mxu0 %v1008
      %v1104 = vpop.f32.mrf.mxu0
      %v1105 = vadd.f32 %v1010, %v1104
      %v1106 = vpop.f32.mrf.mxu0
      %v1107 = vadd.f32 %v1010, %v1106
      %1108 = vdwg.mxu0
      %v1109 = vmul.f32 %v750, %v912
      %v1110 = vmul.f32 %v752, %v914
      %v1111 = vmul.f32 %v755, %v917
      %v1112 = vmul.f32 %v757, %v919
      %v1113 = vmul.f32 %v760, %v922
      %v1114 = vmul.f32 %v762, %v924
      %v1115 = vmul.f32 %v765, %v927
      %v1116 = vmul.f32 %v767, %v929
      %v1117 = vmul.f32 %v770, %v932
      %v1118 = vmul.f32 %v772, %v934
      %v1119 = vmul.f32 %v775, %v937
      %v1120 = vmul.f32 %v777, %v939
      %v1121 = vmul.f32 %v780, %v942
      %v1122 = vmul.f32 %v782, %v944
      %v1123 = vmul.f32 %v785, %v947
      %v1124 = vmul.f32 %v787, %v949
      %v1125 = vmul.f32 %v1109, 0.17677669
      %v1126 = vmul.f32 %v1110, 0.17677669
      %v1127 = vmul.f32 %v1111, 0.17677669
      %v1128 = vmul.f32 %v1112, 0.17677669
      %v1129 = vmul.f32 %v1113, 0.17677669
      %v1130 = vmul.f32 %v1114, 0.17677669
      %v1131 = vmul.f32 %v1115, 0.17677669
      %v1132 = vmul.f32 %v1116, 0.17677669
      %v1133 = vmul.f32 %v1117, 0.17677669
      %v1134 = vmul.f32 %v1118, 0.17677669
      %v1135 = vmul.f32 %v1119, 0.17677669
      %v1136 = vmul.f32 %v1120, 0.17677669
      %v1137 = vmul.f32 %v1121, 0.17677669
      %v1138 = vmul.f32 %v1122, 0.17677669
      %v1139 = vmul.f32 %v1123, 0.17677669
      %v1140 = vmul.f32 %v1124, 0.17677669
      %v1141 = vmul.f32 %v1125, %v1070
      %v1142 = vmul.f32 %v1126, %v1072
      %v1143 = vmul.f32 %v1127, %v1075
      %v1144 = vmul.f32 %v1128, %v1077
      %v1145 = vmul.f32 %v1129, %v1080
      %v1146 = vmul.f32 %v1130, %v1082
      %v1147 = vmul.f32 %v1131, %v1085
      %v1148 = vmul.f32 %v1132, %v1087
      %v1149 = vmul.f32 %v1133, %v1090
      %v1150 = vmul.f32 %v1134, %v1092
      %v1151 = vmul.f32 %v1135, %v1095
      %v1152 = vmul.f32 %v1136, %v1097
      %v1153 = vmul.f32 %v1137, %v1100
      %v1154 = vmul.f32 %v1138, %v1102
      %v1155 = vmul.f32 %v1139, %v1105
      %v1156 = vmul.f32 %v1140, %v1107
      %v1157 = vpack.c.bf16 %v1141, %v1141
      %v1158 = vpack.c.bf16 %v1142, %v1142
      %v1159 = vpack.c.bf16 %v1143, %v1143
      %v1160 = vpack.c.bf16 %v1144, %v1144
      %v1161 = vpack.c.bf16 %v1145, %v1145
      %v1162 = vpack.c.bf16 %v1146, %v1146
      %v1163 = vpack.c.bf16 %v1147, %v1147
      %v1164 = vpack.c.bf16 %v1148, %v1148
      %v1165 = vpack.c.bf16 %v1149, %v1149
      %v1166 = vpack.c.bf16 %v1150, %v1150
      %v1167 = vpack.c.bf16 %v1151, %v1151
      %v1168 = vpack.c.bf16 %v1152, %v1152
      %v1169 = vpack.c.bf16 %v1153, %v1153
      %v1170 = vpack.c.bf16 %v1154, %v1154
      %v1171 = vpack.c.bf16 %v1155, %v1155
      %v1172 = vpack.c.bf16 %v1156, %v1156
      %1173 = vst [vmem:[%s420] sm:$0xf] %v1157
      %1174 = vst [vmem:[%s420 + $0x4] sm:$0xf] %v1158
      %1175 = vst [vmem:[%s420 + $0x8] sm:$0xf] %v1159
      %1176 = vst [vmem:[%s420 + $0xc] sm:$0xf] %v1160
      %1177 = vst [vmem:[%s420 + $0x10] sm:$0xf] %v1161
      %1178 = vst [vmem:[%s420 + $0x14] sm:$0xf] %v1162
      %1179 = vst [vmem:[%s420 + $0x18] sm:$0xf] %v1163
      %1180 = vst [vmem:[%s420 + $0x1c] sm:$0xf] %v1164
      %1181 = vst [vmem:[%s420 + $0x20] sm:$0xf] %v1165
      %1182 = vst [vmem:[%s420 + $0x24] sm:$0xf] %v1166
      %1183 = vst [vmem:[%s420 + $0x28] sm:$0xf] %v1167
      %1184 = vst [vmem:[%s420 + $0x2c] sm:$0xf] %v1168
      %1185 = vst [vmem:[%s420 + $0x30] sm:$0xf] %v1169
      %1186 = vst [vmem:[%s420 + $0x34] sm:$0xf] %v1170
      %1187 = vst [vmem:[%s420 + $0x38] sm:$0xf] %v1171
      %1188 = vst [vmem:[%s420 + $0x3c] sm:$0xf] %v1172
      %1189 = vmatpush.msra.mxu0 %v999
      %1190 = vmatpush.msra.mxu0 %v998
      %1191 = vmatpush.msra.mxu0 %v997
      %1192 = vmatpush.msra.mxu0 %v996
      %1193 = vmatpush.msra.mxu0 %v995
      %1194 = vmatpush.msra.mxu0 %v994
      %1195 = vmatpush.msra.mxu0 %v993
      %1196 = vmatpush.msra.mxu0 %v992
      %1197 = vmatpush.msra.mxu0 %v991
      %1198 = vmatpush.msra.mxu0 %v990
      %1199 = vmatpush.msra.mxu0 %v989
      %1200 = vmatpush.msra.mxu0 %v988
      %1201 = vmatpush.msra.mxu0 %v987
      %1202 = vmatpush.msra.mxu0 %v986
      %1203 = vmatpush.msra.mxu0 %v985
      %1204 = vmatpush.msra.mxu0 %v984
      %1205 = vmatmul.f32.gmra.mxu0 %v1141
      %v1206 = vpop.f32.mrf.mxu0
      %v1207 = vadd.f32 0.0, %v1206
      %1208 = vmatmul.f32.gmra.mxu0 %v1142
      %v1209 = vpop.f32.mrf.mxu0
      %v1210 = vadd.f32 0.0, %v1209
      %1211 = vmatmul.f32.gmra.mxu0 %v1143
      %v1212 = vpop.f32.mrf.mxu0
      %v1213 = vadd.f32 0.0, %v1212
      %1214 = vmatmul.f32.gmra.mxu0 %v1144
      %v1215 = vpop.f32.mrf.mxu0
      %v1216 = vadd.f32 0.0, %v1215
      %1217 = vmatmul.f32.gmra.mxu0 %v1145
      %v1218 = vpop.f32.mrf.mxu0
      %v1219 = vadd.f32 0.0, %v1218
      %1220 = vmatmul.f32.gmra.mxu0 %v1146
      %v1221 = vpop.f32.mrf.mxu0
      %v1222 = vadd.f32 0.0, %v1221
      %1223 = vmatmul.f32.gmra.mxu0 %v1147
      %v1224 = vpop.f32.mrf.mxu0
      %v1225 = vadd.f32 0.0, %v1224
      %1226 = vmatmul.f32.gmra.mxu0 %v1148
      %v1227 = vpop.f32.mrf.mxu0
      %v1228 = vadd.f32 0.0, %v1227
      %1229 = vmatmul.f32.gmra.mxu0 %v1149
      %v1230 = vpop.f32.mrf.mxu0
      %v1231 = vadd.f32 0.0, %v1230
      %1232 = vmatmul.f32.gmra.mxu0 %v1150
      %v1233 = vpop.f32.mrf.mxu0
      %v1234 = vadd.f32 0.0, %v1233
      %1235 = vmatmul.f32.gmra.mxu0 %v1151
      %v1236 = vpop.f32.mrf.mxu0
      %v1237 = vadd.f32 0.0, %v1236
      %1238 = vmatmul.f32.gmra.mxu0 %v1152
      %v1239 = vpop.f32.mrf.mxu0
      %v1240 = vadd.f32 0.0, %v1239
      %1241 = vmatmul.f32.gmra.mxu0 %v1153
      %v1242 = vpop.f32.mrf.mxu0
      %v1243 = vadd.f32 0.0, %v1242
      %1244 = vmatmul.f32.gmra.mxu0 %v1154
      %v1245 = vpop.f32.mrf.mxu0
      %v1246 = vadd.f32 0.0, %v1245
      %1247 = vmatmul.f32.gmra.mxu0 %v1155
      %v1248 = vpop.f32.mrf.mxu0
      %v1249 = vadd.f32 0.0, %v1248
      %1250 = vmatmul.f32.gmra.mxu0 %v1156
      %v1251 = vpop.f32.mrf.mxu0
      %v1252 = vadd.f32 0.0, %v1251
      %1253 = vdwg.mxu0
      %v1254 = vmax.f32 %v1207, -5.0
      %v1255 = vmax.f32 %v1210, -5.0
      %v1256 = vmax.f32 %v1213, -5.0
      %v1257 = vmax.f32 %v1216, -5.0
      %v1258 = vmax.f32 %v1219, -5.0
      %v1259 = vmax.f32 %v1222, -5.0
      %v1260 = vmax.f32 %v1225, -5.0
      %v1261 = vmax.f32 %v1228, -5.0
      %v1262 = vmax.f32 %v1231, -5.0
      %v1263 = vmax.f32 %v1234, -5.0
      %v1264 = vmax.f32 %v1237, -5.0
      %v1265 = vmax.f32 %v1240, -5.0
      %v1266 = vmax.f32 %v1243, -5.0
      %v1267 = vmax.f32 %v1246, -5.0
      %v1268 = vmax.f32 %v1249, -5.0
      %v1269 = vmax.f32 %v1252, -5.0
      %v1270 = vmin.f32 %v1254, 5.0
      %v1271 = vmin.f32 %v1255, 5.0
      %v1272 = vmin.f32 %v1256, 5.0
      %v1273 = vmin.f32 %v1257, 5.0
      %v1274 = vmin.f32 %v1258, 5.0
      %v1275 = vmin.f32 %v1259, 5.0
      %v1276 = vmin.f32 %v1260, 5.0
      %v1277 = vmin.f32 %v1261, 5.0
      %v1278 = vmin.f32 %v1262, 5.0
      %v1279 = vmin.f32 %v1263, 5.0
      %v1280 = vmin.f32 %v1264, 5.0
      %v1281 = vmin.f32 %v1265, 5.0
      %v1282 = vmin.f32 %v1266, 5.0
      %v1283 = vmin.f32 %v1267, 5.0
      %v1284 = vmin.f32 %v1268, 5.0
      %v1285 = vmin.f32 %v1269, 5.0
      %v1286 = vmul.f32 %v1270, 1.442695
      %v1287 = vpow.pop %v1286
      %v1288 = vmul.f32 %v1271, 1.442695
      %v1289 = vpow.pop %v1288
      %v1290 = vmul.f32 %v1272, 1.442695
      %v1291 = vpow.pop %v1290
      %v1292 = vmul.f32 %v1273, 1.442695
      %v1293 = vpow.pop %v1292
      %v1294 = vmul.f32 %v1274, 1.442695
      %v1295 = vpow.pop %v1294
      %v1296 = vmul.f32 %v1275, 1.442695
      %v1297 = vpow.pop %v1296
      %v1298 = vmul.f32 %v1276, 1.442695
      %v1299 = vpow.pop %v1298
      %v1300 = vmul.f32 %v1277, 1.442695
      %v1301 = vpow.pop %v1300
      %v1302 = vmul.f32 %v1278, 1.442695
      %v1303 = vpow.pop %v1302
      %v1304 = vmul.f32 %v1279, 1.442695
      %v1305 = vpow.pop %v1304
      %v1306 = vmul.f32 %v1280, 1.442695
      %v1307 = vpow.pop %v1306
      %v1308 = vmul.f32 %v1281, 1.442695
      %v1309 = vpow.pop %v1308
      %v1310 = vmul.f32 %v1282, 1.442695
      %v1311 = vpow.pop %v1310
      %v1312 = vmul.f32 %v1283, 1.442695
      %v1313 = vpow.pop %v1312
      %v1314 = vmul.f32 %v1284, 1.442695
      %v1315 = vpow.pop %v1314
      %v1316 = vmul.f32 %v1285, 1.442695
      %v1317 = vpow.pop %v1316
      %vm1318 = vcmask 64512
      %1319 = vst.msk [vmem:[%s426] sm:$0xff] %vm1318, %v1287
      %1320 = vst.msk [vmem:[%s426 + $0x8] sm:$0xff] %vm1318, %v1289
      %1321 = vst.msk [vmem:[%s426 + $0x10] sm:$0xff] %vm1318, %v1291
      %1322 = vst.msk [vmem:[%s426 + $0x18] sm:$0xff] %vm1318, %v1293
      %1323 = vst.msk [vmem:[%s426 + $0x20] sm:$0xff] %vm1318, %v1295
      %1324 = vst.msk [vmem:[%s426 + $0x28] sm:$0xff] %vm1318, %v1297
      %1325 = vst.msk [vmem:[%s426 + $0x30] sm:$0xff] %vm1318, %v1299
      %1326 = vst.msk [vmem:[%s426 + $0x38] sm:$0xff] %vm1318, %v1301
      %1327 = vst.msk [vmem:[%s426 + $0x40] sm:$0xff] %vm1318, %v1303
      %1328 = vst.msk [vmem:[%s426 + $0x48] sm:$0xff] %vm1318, %v1305
      %1329 = vst.msk [vmem:[%s426 + $0x50] sm:$0xff] %vm1318, %v1307
      %1330 = vst.msk [vmem:[%s426 + $0x58] sm:$0xff] %vm1318, %v1309
      %1331 = vst.msk [vmem:[%s426 + $0x60] sm:$0xff] %vm1318, %v1311
      %1332 = vst.msk [vmem:[%s426 + $0x68] sm:$0xff] %vm1318, %v1313
      %1333 = vst.msk [vmem:[%s426 + $0x70] sm:$0xff] %vm1318, %v1315
      %1334 = vst.msk [vmem:[%s426 + $0x78] sm:$0xff] %vm1318, %v1317
      %v1336 = vsel %vm1318, %v1287, 0
      %v1339 = vsel %vm1318, %v1289, 0
      %v1342 = vsel %vm1318, %v1291, 0
      %v1345 = vsel %vm1318, %v1293, 0
      %v1348 = vsel %vm1318, %v1295, 0
      %v1351 = vsel %vm1318, %v1297, 0
      %v1354 = vsel %vm1318, %v1299, 0
      %v1357 = vsel %vm1318, %v1301, 0
      %v1360 = vsel %vm1318, %v1303, 0
      %v1363 = vsel %vm1318, %v1305, 0
      %v1366 = vsel %vm1318, %v1307, 0
      %v1369 = vsel %vm1318, %v1309, 0
      %v1372 = vsel %vm1318, %v1311, 0
      %v1375 = vsel %vm1318, %v1313, 0
      %v1378 = vsel %vm1318, %v1315, 0
      %v1381 = vsel %vm1318, %v1317, 0
      %1383 = vmatpush.msra.mxu0 0.0
      %1384 = vmatpush.msra.mxu0 0.0
      %1385 = vmatpush.msra.mxu0 0.0
      %1386 = vmatpush.msra.mxu0 0.0
      %1387 = vmatpush.msra.mxu0 0.0
      %1388 = vmatpush.msra.mxu0 0.0
      %1389 = vmatpush.msra.mxu0 0.0
      %1390 = vmatpush.msra.mxu0 0.0
      %1391 = vmatpush.msra.mxu0 0.0
      %1392 = vmatpush.msra.mxu0 0.0
      %1393 = vmatpush.msra.mxu0 0.0
      %1394 = vmatpush.msra.mxu0 0.0
      %1395 = vmatpush.msra.mxu0 0.0
      %1396 = vmatpush.msra.mxu0 0.0
      %1397 = vmatpush.msra.mxu0 0.0
      %1398 = vmatpush.msra.mxu0 %v1000
      %1399 = vmatmul.f32.gmra.mxu0 %v1336
      %v1400 = vpop.f32.mrf.mxu0
      %v1401 = vadd.f32 0.0, %v1400
      %1402 = vmatmul.f32.gmra.mxu0 %v1339
      %v1403 = vpop.f32.mrf.mxu0
      %v1404 = vadd.f32 0.0, %v1403
      %1405 = vmatmul.f32.gmra.mxu0 %v1342
      %v1406 = vpop.f32.mrf.mxu0
      %v1407 = vadd.f32 0.0, %v1406
      %1408 = vmatmul.f32.gmra.mxu0 %v1345
      %v1409 = vpop.f32.mrf.mxu0
      %v1410 = vadd.f32 0.0, %v1409
      %1411 = vmatmul.f32.gmra.mxu0 %v1348
      %v1412 = vpop.f32.mrf.mxu0
      %v1413 = vadd.f32 0.0, %v1412
      %1414 = vmatmul.f32.gmra.mxu0 %v1351
      %v1415 = vpop.f32.mrf.mxu0
      %v1416 = vadd.f32 0.0, %v1415
      %1417 = vmatmul.f32.gmra.mxu0 %v1354
      %v1418 = vpop.f32.mrf.mxu0
      %v1419 = vadd.f32 0.0, %v1418
      %1420 = vmatmul.f32.gmra.mxu0 %v1357
      %v1421 = vpop.f32.mrf.mxu0
      %v1422 = vadd.f32 0.0, %v1421
      %1423 = vmatmul.f32.gmra.mxu0 %v1360
      %v1424 = vpop.f32.mrf.mxu0
      %v1425 = vadd.f32 0.0, %v1424
      %1426 = vmatmul.f32.gmra.mxu0 %v1363
      %v1427 = vpop.f32.mrf.mxu0
      %v1428 = vadd.f32 0.0, %v1427
      %1429 = vmatmul.f32.gmra.mxu0 %v1366
      %v1430 = vpop.f32.mrf.mxu0
      %v1431 = vadd.f32 0.0, %v1430
      %1432 = vmatmul.f32.gmra.mxu0 %v1369
      %v1433 = vpop.f32.mrf.mxu0
      %v1434 = vadd.f32 0.0, %v1433
      %1435 = vmatmul.f32.gmra.mxu0 %v1372
      %v1436 = vpop.f32.mrf.mxu0
      %v1437 = vadd.f32 0.0, %v1436
      %1438 = vmatmul.f32.gmra.mxu0 %v1375
      %v1439 = vpop.f32.mrf.mxu0
      %v1440 = vadd.f32 0.0, %v1439
      %1441 = vmatmul.f32.gmra.mxu0 %v1378
      %v1442 = vpop.f32.mrf.mxu0
      %v1443 = vadd.f32 0.0, %v1442
      %1444 = vmatmul.f32.gmra.mxu0 %v1381
      %v1445 = vpop.f32.mrf.mxu0
      %v1446 = vadd.f32 0.0, %v1445
      %1447 = vdwg.mxu0
      %v1448 = vmul.f32 %v799, %v1401
      %v1449 = vmul.f32 %v801, %v1404
      %v1450 = vmul.f32 %v804, %v1407
      %v1451 = vmul.f32 %v806, %v1410
      %v1452 = vmul.f32 %v809, %v1413
      %v1453 = vmul.f32 %v811, %v1416
      %v1454 = vmul.f32 %v814, %v1419
      %v1455 = vmul.f32 %v816, %v1422
      %v1456 = vmul.f32 %v819, %v1425
      %v1457 = vmul.f32 %v821, %v1428
      %v1458 = vmul.f32 %v824, %v1431
      %v1459 = vmul.f32 %v826, %v1434
      %v1460 = vmul.f32 %v829, %v1437
      %v1461 = vmul.f32 %v831, %v1440
      %v1462 = vmul.f32 %v834, %v1443
      %v1463 = vmul.f32 %v836, %v1446
      %1464 = vst [vmem:[%s432] sm:$0xff] %v1448
      %1465 = vst [vmem:[%s432 + $0x8] sm:$0xff] %v1449
      %1466 = vst [vmem:[%s432 + $0x10] sm:$0xff] %v1450
      %1467 = vst [vmem:[%s432 + $0x18] sm:$0xff] %v1451
      %1468 = vst [vmem:[%s432 + $0x20] sm:$0xff] %v1452
      %1469 = vst [vmem:[%s432 + $0x28] sm:$0xff] %v1453
      %1470 = vst [vmem:[%s432 + $0x30] sm:$0xff] %v1454
      %1471 = vst [vmem:[%s432 + $0x38] sm:$0xff] %v1455
      %1472 = vst [vmem:[%s432 + $0x40] sm:$0xff] %v1456
      %1473 = vst [vmem:[%s432 + $0x48] sm:$0xff] %v1457
      %1474 = vst [vmem:[%s432 + $0x50] sm:$0xff] %v1458
      %1475 = vst [vmem:[%s432 + $0x58] sm:$0xff] %v1459
      %1476 = vst [vmem:[%s432 + $0x60] sm:$0xff] %v1460
      %1477 = vst [vmem:[%s432 + $0x68] sm:$0xff] %v1461
      %1478 = vst [vmem:[%s432 + $0x70] sm:$0xff] %v1462
      %1479 = vst [vmem:[%s432 + $0x78] sm:$0xff] %v1463
      %s1480 = smul.u32 16, %s22
      %p1481 = scmp.lt.s32.totalorder %s1480, 31
      %s1482 = scalar_select %p1481, %s1480, 31
      %s1483 = smul.addr %s1482, 4
      %s1484 = scalar_lea.vmem %s8, %s1483
      %s1485 = smul.u32 16, %s22
      %p1486 = scmp.lt.s32.totalorder %s1485, 31
      %s1487 = scalar_select %p1486, %s1485, 31
      %s1488 = smul.addr %s1487, 8
      %s1489 = scalar_lea.vmem %s9, %s1488
      %s1490 = smul.u32 16, %s22
      %p1491 = scmp.lt.s32.totalorder %s1490, 31
      %s1492 = scalar_select %p1491, %s1490, 31
      %s1493 = smul.addr %s1492, 8
      %s1494 = scalar_lea.vmem %s10, %s1493
      // Predicated region
      $region53: #{graph_transformer_layer.5} parent=51 // pred_check
        %p1495 = pneg %p223
      $region54: #{graph_transformer_layer.5} parent=51 // pred_check_branch
        %1497 = sbr.rel (%p1495) target = $region56
      $region55: #{graph_transformer_layer.5} parent=51 // pred_region
        %s1498 = smul.u32 16, %s22
      $region56: #{graph_transformer_layer.5} parent=51 // pred_fallthru
        _
      // Predicated region
      $region57: #{graph_transformer_layer.5} parent=51 // pred_check
        %p1499 = pneg %p249
      $region58: #{graph_transformer_layer.5} parent=51 // pred_check_branch
        %1501 = sbr.rel (%p1499) target = $region60
      $region59: #{graph_transformer_layer.5} parent=51 // pred_region
        %s1502 = smul.u32 16, %s22
      $region60: #{graph_transformer_layer.5} parent=51 // pred_fallthru
        _
      // Predicated region
      $region61: #{graph_transformer_layer.5} parent=51 // pred_check
        %p1503 = pneg %p275
      $region62: #{graph_transformer_layer.5} parent=51 // pred_check_branch
        %1505 = sbr.rel (%p1503) target = $region64
      $region63: #{graph_transformer_layer.5} parent=51 // pred_region
        %s1506 = smul.u32 16, %s22
      $region64: #{graph_transformer_layer.5} parent=51 // pred_fallthru
        _
    $region52: #{graph_transformer_layer.5} parent=5 // pred_fallthru
      _
    %p1507 = scmp.le.s32.totalorder 2, %s17
    // Predicated region
    $region65: #{graph_transformer_layer.5} parent=5 // pred_check
      %p1508 = pneg %p1507
    $region66: #{graph_transformer_layer.5} parent=5 // pred_check_branch
      %1510 = sbr.rel (%p1508) target = $region68
    $region67: #{graph_transformer_layer.5} parent=5 // pred_region
      %s1511 = ssub.s32 %s17, 2
      // Predicated region
      $region69: #{graph_transformer_layer.5} parent=67 // pred_check
        %p1512 = pneg %p229
      $region70: #{graph_transformer_layer.5} parent=67 // pred_check_branch
        %1514 = sbr.rel (%p1512) target = $region72
      $region71: #{graph_transformer_layer.5} parent=67 // pred_region
        %s1515 = smul.u32 16, %s23
        %p1516 = scmp.lt.s32.totalorder %s1515, 31
        %s1517 = scalar_select %p1516, %s1515, 31
        %s1518 = smul.addr %s1517, 4
        %s1519 = scalar_lea.vmem %s8, %s1518
      $region72: #{graph_transformer_layer.5} parent=67 // pred_fallthru
        _
      // Predicated region
      $region73: #{graph_transformer_layer.5} parent=67 // pred_check
        %p1520 = pneg %p255
      $region74: #{graph_transformer_layer.5} parent=67 // pred_check_branch
        %1522 = sbr.rel (%p1520) target = $region76
      $region75: #{graph_transformer_layer.5} parent=67 // pred_region
        %s1523 = smul.u32 16, %s23
        %p1524 = scmp.lt.s32.totalorder %s1523, 31
        %s1525 = scalar_select %p1524, %s1523, 31
        %s1526 = smul.addr %s1525, 8
        %s1527 = scalar_lea.vmem %s9, %s1526
      $region76: #{graph_transformer_layer.5} parent=67 // pred_fallthru
        _
      // Predicated region
      $region77: #{graph_transformer_layer.5} parent=67 // pred_check
        %p1528 = pneg %p281
      $region78: #{graph_transformer_layer.5} parent=67 // pred_check_branch
        %1530 = sbr.rel (%p1528) target = $region80
      $region79: #{graph_transformer_layer.5} parent=67 // pred_region
        %s1531 = smul.u32 16, %s23
        %p1532 = scmp.lt.s32.totalorder %s1531, 31
        %s1533 = scalar_select %p1532, %s1531, 31
        %s1534 = smul.addr %s1533, 8
        %s1535 = scalar_lea.vmem %s10, %s1534
      $region80: #{graph_transformer_layer.5} parent=67 // pred_fallthru
        _
    $region68: #{graph_transformer_layer.5} parent=5 // pred_fallthru
      _
  $region6: #{graph_transformer_layer.5} parent=0 // loop_footer
    %s21 = sadd.s32 1, %s17
  $region7: #{graph_transformer_layer.5} parent=0 // loop_footer_branch
    %16 = sbr.rel target = $region3
  $region8: #{graph_transformer_layer.5} parent=0 // loop_exit
    _

// kernel: graph_transformer_layer.6
$region0: #{graph_transformer_layer.6}
  #allocation0 [shape = 'u32[]', space=smem, size = 0x4, offset = 0x4, fixed_abs, tag = 'smem constant byte address 0x4 - core index']
  #allocation1 [shape = 'u32[72,128]{1,0:T(1,128)}', space=vmem, size = 0x9000, scoped, tag = 'internal scratch']
  %s0 = inlined_call_operand.vmem [shape: f32[64,128], index: 0, kind: input, shape index: {}]
  %s1 = inlined_call_operand.vmem [shape: f32[64,8], index: 1, kind: input, shape index: {}]
  %s2 = inlined_call_operand.vmem [shape: f32[64,128], index: 2, kind: input, shape index: {}]
  %s3 = inlined_call_operand.vmem [shape: f32[8,128], index: 3, kind: input, shape index: {}]
  %s4 = inlined_call_operand.vmem [shape: bf16[128,128], index: 4, kind: input, shape index: {}]
  %s5 = inlined_call_operand.vmem [shape: bf16[128,256], index: 5, kind: input, shape index: {}]
  %s6 = inlined_call_operand.vmem [shape: f32[1,256], index: 6, kind: input, shape index: {}]
  %s7 = inlined_call_operand.vmem [shape: bf16[256,128], index: 7, kind: input, shape index: {}]
  %s8 = inlined_call_operand.vmem [shape: f32[1,128], index: 8, kind: input, shape index: {}]
  %s9 = inlined_call_operand.vmem [shape: f32[1,128], index: 9, kind: input, shape index: {}]
  %s10 = inlined_call_operand.vmem [shape: f32[1,128], index: 10, kind: input, shape index: {}]
  %s11 = inlined_call_operand.vmem [shape: f32[1,128], index: 11, kind: input, shape index: {}]
  %s12 = inlined_call_operand.hbm [shape: f32[64,128], index: 12, kind: output, shape index: {}]
  %s13 = sld [smem:[#allocation0]]
  $region81: #{graph_transformer_layer.6} parent=0
    _
  %s15 = ssub.s32 1, %s13
  %s16 = scalar_select 0, %s15, %s13
  $region1: #{graph_transformer_layer.6} parent=0
    #allocation2 [shape = 'u8[32768]{0}', space=vmem, size = 0x8000, scoped, tag = 'output window, operand 0']
    #allocation3 [shape = 's32[2]{0}', space=sflag, size = 0x8, scoped, tag = 'scoped memory for graph_transformer_layer.6']
    %17 = vsyncpa [#allocation3], 0
    %s18 = scalar_lea.sflag [#allocation3], 1
    %19 = vsyncpa %s18, 0
    loop: start=0, step=1, limit=4
    $region2: #{graph_transformer_layer.6} parent=1 // loop_pre_header
      _
    $region3: #{graph_transformer_layer.6} parent=1 // loop_header
      %s21 = sphi 0, %s25
      %p22 = scmp.ge.s32.totalorder %s21, 4
      %s31 = sphi 0, %s33
      %s34 = sphi 0, %s31
      %s35 = sphi 0, %s34
      %s51 = sphi 0, %s35
      %s57 = sphi 0, %s59
      %s60 = sphi 0, %s57
      %s61 = sphi 0, %s60
      %s77 = sphi 0, %s61
      %s83 = sphi 0, %s85
      %s86 = sphi 0, %s83
      %s87 = sphi 0, %s86
      %s103 = sphi 0, %s87
      %s107 = sphi 0, %s107
      %s109 = sphi 0, %s107
      %s110 = sphi 0, %s109
      %s124 = sphi 0, %s110
      %s128 = sphi 0, %s128
      %s130 = sphi 0, %s128
      %s131 = sphi 0, %s130
      %s145 = sphi 0, %s131
      %s149 = sphi 0, %s149
      %s151 = sphi 0, %s149
      %s152 = sphi 0, %s151
      %s166 = sphi 0, %s152
      %s170 = sphi 0, %s170
      %s172 = sphi 0, %s170
      %s173 = sphi 0, %s172
      %s187 = sphi 0, %s173
      %s191 = sphi 0, %s191
      %s193 = sphi 0, %s191
      %s194 = sphi 0, %s193
      %s208 = sphi 0, %s194
      %s212 = sphi 0, %s212
      %s214 = sphi 0, %s212
      %s215 = sphi 0, %s214
      %s229 = sphi 0, %s215
      %s233 = sphi 0, %s233
      %s235 = sphi 0, %s233
      %s236 = sphi 0, %s235
      %s250 = sphi 0, %s236
      %s254 = sphi 0, %s254
      %s256 = sphi 0, %s254
      %s257 = sphi 0, %s256
      %s271 = sphi 0, %s257
      %s275 = sphi 0, %s275
      %s277 = sphi 0, %s275
      %s278 = sphi 0, %s277
      %s292 = sphi 0, %s278
      %s298 = sphi 0, %s300
      %s301 = sphi 0, %s298
      %s302 = sphi 0, %s301
      %s318 = sphi 0, %s302
    $region4: #{graph_transformer_layer.6} parent=1 // loop_header_branch
      %24 = sbr.rel (%p22) target = $region8
    $region5: #{graph_transformer_layer.6} parent=1 // loop_body
      %s26 = ssub.s32 %s21, 1
      %s27 = ssub.s32 %s21, 2
      %s28 = sadd.s32 %s21, 1
      %s29 = ssub.s32 %s21, %s28
      %p30 = scmp.eq.s32.totalorder %s29, 0
      %s32 = sadd.s32 %s31, 1
      %s33 = scalar_select %p30, %s31, %s32
      %p36 = pneg %p30
      %p37 = scmp.eq.s32.totalorder %s21, 1
      %p38 = por %p36, %p37
      %p39 = scmp.ne.s32.totalorder %s31, %s34
      %p40 = scmp.eq.s32.totalorder %s21, 0
      %p41 = por %p39, %p40
      %p42 = scmp.ne.s32.totalorder %s31, %s34
      %p43 = scmp.eq.s32.totalorder %s26, 1
      %p44 = por %p42, %p43
      %p45 = scmp.ne.s32.totalorder %s34, %s35
      %p46 = scmp.eq.s32.totalorder %s26, 0
      %p47 = por %p45, %p46
      %p48 = scmp.ne.s32.totalorder %s34, %s35
      %p49 = scmp.eq.s32.totalorder %s27, 1
      %p50 = por %p48, %p49
      %p52 = scmp.ne.s32.totalorder %s35, %s51
      %p53 = scmp.eq.s32.totalorder %s27, 0
      %p54 = por %p52, %p53
      %s55 = ssub.s32 %s21, %s28
      %p56 = scmp.eq.s32.totalorder %s55, 0
      %s58 = sadd.s32 %s57, 1
      %s59 = scalar_select %p56, %s57, %s58
      %p62 = pneg %p56
      %p63 = scmp.eq.s32.totalorder %s21, 1
      %p64 = por %p62, %p63
      %p65 = scmp.ne.s32.totalorder %s57, %s60
      %p66 = scmp.eq.s32.totalorder %s21, 0
      %p67 = por %p65, %p66
      %p68 = scmp.ne.s32.totalorder %s57, %s60
      %p69 = scmp.eq.s32.totalorder %s26, 1
      %p70 = por %p68, %p69
      %p71 = scmp.ne.s32.totalorder %s60, %s61
      %p72 = scmp.eq.s32.totalorder %s26, 0
      %p73 = por %p71, %p72
      %p74 = scmp.ne.s32.totalorder %s60, %s61
      %p75 = scmp.eq.s32.totalorder %s27, 1
      %p76 = por %p74, %p75
      %p78 = scmp.ne.s32.totalorder %s61, %s77
      %p79 = scmp.eq.s32.totalorder %s27, 0
      %p80 = por %p78, %p79
      %s81 = ssub.s32 %s21, %s28
      %p82 = scmp.eq.s32.totalorder %s81, 0
      %s84 = sadd.s32 %s83, 1
      %s85 = scalar_select %p82, %s83, %s84
      %p88 = pneg %p82
      %p89 = scmp.eq.s32.totalorder %s21, 1
      %p90 = por %p88, %p89
      %p91 = scmp.ne.s32.totalorder %s83, %s86
      %p92 = scmp.eq.s32.totalorder %s21, 0
      %p93 = por %p91, %p92
      %p94 = scmp.ne.s32.totalorder %s83, %s86
      %p95 = scmp.eq.s32.totalorder %s26, 1
      %p96 = por %p94, %p95
      %p97 = scmp.ne.s32.totalorder %s86, %s87
      %p98 = scmp.eq.s32.totalorder %s26, 0
      %p99 = por %p97, %p98
      %p100 = scmp.ne.s32.totalorder %s86, %s87
      %p101 = scmp.eq.s32.totalorder %s27, 1
      %p102 = por %p100, %p101
      %p104 = scmp.ne.s32.totalorder %s87, %s103
      %p105 = scmp.eq.s32.totalorder %s27, 0
      %p106 = por %p104, %p105
      %s108 = sadd.s32 %s107, 1
      %p111 = scmp.eq.s32.totalorder %s21, 1
      %p112 = scmp.ne.s32.totalorder %s107, %s109
      %p113 = scmp.eq.s32.totalorder %s21, 0
      %p114 = por %p112, %p113
      %p115 = scmp.ne.s32.totalorder %s107, %s109
      %p116 = scmp.eq.s32.totalorder %s26, 1
      %p117 = por %p115, %p116
      %p118 = scmp.ne.s32.totalorder %s109, %s110
      %p119 = scmp.eq.s32.totalorder %s26, 0
      %p120 = por %p118, %p119
      %p121 = scmp.ne.s32.totalorder %s109, %s110
      %p122 = scmp.eq.s32.totalorder %s27, 1
      %p123 = por %p121, %p122
      %p125 = scmp.ne.s32.totalorder %s110, %s124
      %p126 = scmp.eq.s32.totalorder %s27, 0
      %p127 = por %p125, %p126
      %s129 = sadd.s32 %s128, 1
      %p132 = scmp.eq.s32.totalorder %s21, 1
      %p133 = scmp.ne.s32.totalorder %s128, %s130
      %p134 = scmp.eq.s32.totalorder %s21, 0
      %p135 = por %p133, %p134
      %p136 = scmp.ne.s32.totalorder %s128, %s130
      %p137 = scmp.eq.s32.totalorder %s26, 1
      %p138 = por %p136, %p137
      %p139 = scmp.ne.s32.totalorder %s130, %s131
      %p140 = scmp.eq.s32.totalorder %s26, 0
      %p141 = por %p139, %p140
      %p142 = scmp.ne.s32.totalorder %s130, %s131
      %p143 = scmp.eq.s32.totalorder %s27, 1
      %p144 = por %p142, %p143
      %p146 = scmp.ne.s32.totalorder %s131, %s145
      %p147 = scmp.eq.s32.totalorder %s27, 0
      %p148 = por %p146, %p147
      %s150 = sadd.s32 %s149, 1
      %p153 = scmp.eq.s32.totalorder %s21, 1
      %p154 = scmp.ne.s32.totalorder %s149, %s151
      %p155 = scmp.eq.s32.totalorder %s21, 0
      %p156 = por %p154, %p155
      %p157 = scmp.ne.s32.totalorder %s149, %s151
      %p158 = scmp.eq.s32.totalorder %s26, 1
      %p159 = por %p157, %p158
      %p160 = scmp.ne.s32.totalorder %s151, %s152
      %p161 = scmp.eq.s32.totalorder %s26, 0
      %p162 = por %p160, %p161
      %p163 = scmp.ne.s32.totalorder %s151, %s152
      %p164 = scmp.eq.s32.totalorder %s27, 1
      %p165 = por %p163, %p164
      %p167 = scmp.ne.s32.totalorder %s152, %s166
      %p168 = scmp.eq.s32.totalorder %s27, 0
      %p169 = por %p167, %p168
      %s171 = sadd.s32 %s170, 1
      %p174 = scmp.eq.s32.totalorder %s21, 1
      %p175 = scmp.ne.s32.totalorder %s170, %s172
      %p176 = scmp.eq.s32.totalorder %s21, 0
      %p177 = por %p175, %p176
      %p178 = scmp.ne.s32.totalorder %s170, %s172
      %p179 = scmp.eq.s32.totalorder %s26, 1
      %p180 = por %p178, %p179
      %p181 = scmp.ne.s32.totalorder %s172, %s173
      %p182 = scmp.eq.s32.totalorder %s26, 0
      %p183 = por %p181, %p182
      %p184 = scmp.ne.s32.totalorder %s172, %s173
      %p185 = scmp.eq.s32.totalorder %s27, 1
      %p186 = por %p184, %p185
      %p188 = scmp.ne.s32.totalorder %s173, %s187
      %p189 = scmp.eq.s32.totalorder %s27, 0
      %p190 = por %p188, %p189
      %s192 = sadd.s32 %s191, 1
      %p195 = scmp.eq.s32.totalorder %s21, 1
      %p196 = scmp.ne.s32.totalorder %s191, %s193
      %p197 = scmp.eq.s32.totalorder %s21, 0
      %p198 = por %p196, %p197
      %p199 = scmp.ne.s32.totalorder %s191, %s193
      %p200 = scmp.eq.s32.totalorder %s26, 1
      %p201 = por %p199, %p200
      %p202 = scmp.ne.s32.totalorder %s193, %s194
      %p203 = scmp.eq.s32.totalorder %s26, 0
      %p204 = por %p202, %p203
      %p205 = scmp.ne.s32.totalorder %s193, %s194
      %p206 = scmp.eq.s32.totalorder %s27, 1
      %p207 = por %p205, %p206
      %p209 = scmp.ne.s32.totalorder %s194, %s208
      %p210 = scmp.eq.s32.totalorder %s27, 0
      %p211 = por %p209, %p210
      %s213 = sadd.s32 %s212, 1
      %p216 = scmp.eq.s32.totalorder %s21, 1
      %p217 = scmp.ne.s32.totalorder %s212, %s214
      %p218 = scmp.eq.s32.totalorder %s21, 0
      %p219 = por %p217, %p218
      %p220 = scmp.ne.s32.totalorder %s212, %s214
      %p221 = scmp.eq.s32.totalorder %s26, 1
      %p222 = por %p220, %p221
      %p223 = scmp.ne.s32.totalorder %s214, %s215
      %p224 = scmp.eq.s32.totalorder %s26, 0
      %p225 = por %p223, %p224
      %p226 = scmp.ne.s32.totalorder %s214, %s215
      %p227 = scmp.eq.s32.totalorder %s27, 1
      %p228 = por %p226, %p227
      %p230 = scmp.ne.s32.totalorder %s215, %s229
      %p231 = scmp.eq.s32.totalorder %s27, 0
      %p232 = por %p230, %p231
      %s234 = sadd.s32 %s233, 1
      %p237 = scmp.eq.s32.totalorder %s21, 1
      %p238 = scmp.ne.s32.totalorder %s233, %s235
      %p239 = scmp.eq.s32.totalorder %s21, 0
      %p240 = por %p238, %p239
      %p241 = scmp.ne.s32.totalorder %s233, %s235
      %p242 = scmp.eq.s32.totalorder %s26, 1
      %p243 = por %p241, %p242
      %p244 = scmp.ne.s32.totalorder %s235, %s236
      %p245 = scmp.eq.s32.totalorder %s26, 0
      %p246 = por %p244, %p245
      %p247 = scmp.ne.s32.totalorder %s235, %s236
      %p248 = scmp.eq.s32.totalorder %s27, 1
      %p249 = por %p247, %p248
      %p251 = scmp.ne.s32.totalorder %s236, %s250
      %p252 = scmp.eq.s32.totalorder %s27, 0
      %p253 = por %p251, %p252
      %s255 = sadd.s32 %s254, 1
      %p258 = scmp.eq.s32.totalorder %s21, 1
      %p259 = scmp.ne.s32.totalorder %s254, %s256
      %p260 = scmp.eq.s32.totalorder %s21, 0
      %p261 = por %p259, %p260
      %p262 = scmp.ne.s32.totalorder %s254, %s256
      %p263 = scmp.eq.s32.totalorder %s26, 1
      %p264 = por %p262, %p263
      %p265 = scmp.ne.s32.totalorder %s256, %s257
      %p266 = scmp.eq.s32.totalorder %s26, 0
      %p267 = por %p265, %p266
      %p268 = scmp.ne.s32.totalorder %s256, %s257
      %p269 = scmp.eq.s32.totalorder %s27, 1
      %p270 = por %p268, %p269
      %p272 = scmp.ne.s32.totalorder %s257, %s271
      %p273 = scmp.eq.s32.totalorder %s27, 0
      %p274 = por %p272, %p273
      %s276 = sadd.s32 %s275, 1
      %p279 = scmp.eq.s32.totalorder %s21, 1
      %p280 = scmp.ne.s32.totalorder %s275, %s277
      %p281 = scmp.eq.s32.totalorder %s21, 0
      %p282 = por %p280, %p281
      %p283 = scmp.ne.s32.totalorder %s275, %s277
      %p284 = scmp.eq.s32.totalorder %s26, 1
      %p285 = por %p283, %p284
      %p286 = scmp.ne.s32.totalorder %s277, %s278
      %p287 = scmp.eq.s32.totalorder %s26, 0
      %p288 = por %p286, %p287
      %p289 = scmp.ne.s32.totalorder %s277, %s278
      %p290 = scmp.eq.s32.totalorder %s27, 1
      %p291 = por %p289, %p290
      %p293 = scmp.ne.s32.totalorder %s278, %s292
      %p294 = scmp.eq.s32.totalorder %s27, 0
      %p295 = por %p293, %p294
      %s296 = ssub.s32 %s21, %s28
      %p297 = scmp.eq.s32.totalorder %s296, 0
      %s299 = sadd.s32 %s298, 1
      %s300 = scalar_select %p297, %s298, %s299
      %p303 = pneg %p297
      %p304 = scmp.eq.s32.totalorder %s21, 1
      %p305 = por %p303, %p304
      %p306 = scmp.ne.s32.totalorder %s298, %s301
      %p307 = scmp.eq.s32.totalorder %s21, 0
      %p308 = por %p306, %p307
      %p309 = scmp.ne.s32.totalorder %s298, %s301
      %p310 = scmp.eq.s32.totalorder %s26, 1
      %p311 = por %p309, %p310
      %p312 = scmp.ne.s32.totalorder %s301, %s302
      %p313 = scmp.eq.s32.totalorder %s26, 0
      %p314 = por %p312, %p313
      %p315 = scmp.ne.s32.totalorder %s301, %s302
      %p316 = scmp.eq.s32.totalorder %s27, 1
      %p317 = por %p315, %p316
      %p319 = scmp.ne.s32.totalorder %s302, %s318
      %p320 = scmp.eq.s32.totalorder %s27, 0
      %p321 = por %p319, %p320
      %p322 = scmp.le.s32.totalorder 1, %s21
      %p323 = scmp.lt.s32.totalorder %s21, 3
      %p324 = pnand %p322, %p323
      %p325 = pneg %p324
      // Predicated region
      $region9: #{graph_transformer_layer.6} parent=5 // pred_check
        _
      $region10: #{graph_transformer_layer.6} parent=5 // pred_check_branch
        %327 = sbr.rel (%p324) target = $region12
      $region11: #{graph_transformer_layer.6} parent=5 // pred_region
        %s328 = ssub.s32 %s21, 1
        // Predicated region
        $region13: #{graph_transformer_layer.6} parent=11 // pred_check
          %p329 = pneg %p120
        $region14: #{graph_transformer_layer.6} parent=11 // pred_check_branch
          %331 = sbr.rel (%p329) target = $region16
        $region15: #{graph_transformer_layer.6} parent=11 // pred_region
          _
        $region16: #{graph_transformer_layer.6} parent=11 // pred_fallthru
          _
        // Predicated region
        $region17: #{graph_transformer_layer.6} parent=11 // pred_check
          %p332 = pneg %p141
        $region18: #{graph_transformer_layer.6} parent=11 // pred_check_branch
          %334 = sbr.rel (%p332) target = $region20
        $region19: #{graph_transformer_layer.6} parent=11 // pred_region
          _
        $region20: #{graph_transformer_layer.6} parent=11 // pred_fallthru
          _
        // Predicated region
        $region21: #{graph_transformer_layer.6} parent=11 // pred_check
          %p335 = pneg %p162
        $region22: #{graph_transformer_layer.6} parent=11 // pred_check_branch
          %337 = sbr.rel (%p335) target = $region24
        $region23: #{graph_transformer_layer.6} parent=11 // pred_region
          _
        $region24: #{graph_transformer_layer.6} parent=11 // pred_fallthru
          _
        // Predicated region
        $region25: #{graph_transformer_layer.6} parent=11 // pred_check
          %p338 = pneg %p183
        $region26: #{graph_transformer_layer.6} parent=11 // pred_check_branch
          %340 = sbr.rel (%p338) target = $region28
        $region27: #{graph_transformer_layer.6} parent=11 // pred_region
          _
        $region28: #{graph_transformer_layer.6} parent=11 // pred_fallthru
          _
        // Predicated region
        $region29: #{graph_transformer_layer.6} parent=11 // pred_check
          %p341 = pneg %p204
        $region30: #{graph_transformer_layer.6} parent=11 // pred_check_branch
          %343 = sbr.rel (%p341) target = $region32
        $region31: #{graph_transformer_layer.6} parent=11 // pred_region
          _
        $region32: #{graph_transformer_layer.6} parent=11 // pred_fallthru
          _
        // Predicated region
        $region33: #{graph_transformer_layer.6} parent=11 // pred_check
          %p344 = pneg %p225
        $region34: #{graph_transformer_layer.6} parent=11 // pred_check_branch
          %346 = sbr.rel (%p344) target = $region36
        $region35: #{graph_transformer_layer.6} parent=11 // pred_region
          _
        $region36: #{graph_transformer_layer.6} parent=11 // pred_fallthru
          _
        // Predicated region
        $region37: #{graph_transformer_layer.6} parent=11 // pred_check
          %p347 = pneg %p246
        $region38: #{graph_transformer_layer.6} parent=11 // pred_check_branch
          %349 = sbr.rel (%p347) target = $region40
        $region39: #{graph_transformer_layer.6} parent=11 // pred_region
          _
        $region40: #{graph_transformer_layer.6} parent=11 // pred_fallthru
          _
        // Predicated region
        $region41: #{graph_transformer_layer.6} parent=11 // pred_check
          %p350 = pneg %p267
        $region42: #{graph_transformer_layer.6} parent=11 // pred_check_branch
          %352 = sbr.rel (%p350) target = $region44
        $region43: #{graph_transformer_layer.6} parent=11 // pred_region
          _
        $region44: #{graph_transformer_layer.6} parent=11 // pred_fallthru
          _
        // Predicated region
        $region45: #{graph_transformer_layer.6} parent=11 // pred_check
          %p353 = pneg %p288
        $region46: #{graph_transformer_layer.6} parent=11 // pred_check_branch
          %355 = sbr.rel (%p353) target = $region48
        $region47: #{graph_transformer_layer.6} parent=11 // pred_region
          _
        $region48: #{graph_transformer_layer.6} parent=11 // pred_fallthru
          _
      $region12: #{graph_transformer_layer.6} parent=5 // pred_fallthru
        _
      %p356 = scmp.lt.s32.totalorder %s21, 2
      // Predicated region
      $region49: #{graph_transformer_layer.6} parent=5 // pred_check
        %p357 = pneg %p356
      $region50: #{graph_transformer_layer.6} parent=5 // pred_check_branch
        %359 = sbr.rel (%p357) target = $region52
      $region51: #{graph_transformer_layer.6} parent=5 // pred_region
        // Predicated region
        $region53: #{graph_transformer_layer.6} parent=51 // pred_check
          %p360 = pneg %p41
        $region54: #{graph_transformer_layer.6} parent=51 // pred_check_branch
          %362 = sbr.rel (%p360) target = $region56
        $region55: #{graph_transformer_layer.6} parent=51 // pred_region
          %s363 = smul.u32 4, %s21
          %p364 = scmp.lt.s32.totalorder %s363, 7
          %s365 = scalar_select %p364, %s363, 7
          %s366 = smul.addr %s365, 8
          %s367 = scalar_lea.vmem %s0, %s366
          %s368 = smul.u32 4, %s21
        $region56: #{graph_transformer_layer.6} parent=51 // pred_fallthru
          _
        // Predicated region
        $region57: #{graph_transformer_layer.6} parent=51 // pred_check
          %p369 = pneg %p67
        $region58: #{graph_transformer_layer.6} parent=51 // pred_check_branch
          %371 = sbr.rel (%p369) target = $region60
        $region59: #{graph_transformer_layer.6} parent=51 // pred_region
          %s372 = smul.u32 4, %s21
          %p373 = scmp.lt.s32.totalorder %s372, 7
          %s374 = scalar_select %p373, %s372, 7
          %s375 = smul.addr %s374, 8
          %s376 = scalar_lea.vmem %s1, %s375
          %s377 = smul.u32 4, %s21
        $region60: #{graph_transformer_layer.6} parent=51 // pred_fallthru
          _
        // Predicated region
        $region61: #{graph_transformer_layer.6} parent=51 // pred_check
          %p378 = pneg %p93
        $region62: #{graph_transformer_layer.6} parent=51 // pred_check_branch
          %380 = sbr.rel (%p378) target = $region64
        $region63: #{graph_transformer_layer.6} parent=51 // pred_region
          %s381 = smul.u32 4, %s21
          %p382 = scmp.lt.s32.totalorder %s381, 7
          %s383 = scalar_select %p382, %s381, 7
          %s384 = smul.addr %s383, 8
          %s385 = scalar_lea.vmem %s2, %s384
          %s386 = smul.u32 4, %s21
        $region64: #{graph_transformer_layer.6} parent=51 // pred_fallthru
          _
      $region52: #{graph_transformer_layer.6} parent=5 // pred_fallthru
        _
      %p387 = scmp.le.s32.totalorder 1, %s21
      %p388 = scmp.lt.s32.totalorder %s21, 3
      %p389 = pnand %p387, %p388
      %p390 = pneg %p389
      // Predicated region
      $region65: #{graph_transformer_layer.6} parent=5 // pred_check
        _
      $region66: #{graph_transformer_layer.6} parent=5 // pred_check_branch
        %392 = sbr.rel (%p389) target = $region68
      $region67: #{graph_transformer_layer.6} parent=5 // pred_region
        %s393 = ssub.s32 %s21, 1
        %s394 = smul.u32 4, %s26
        %p395 = scmp.lt.s32.totalorder %s394, 7
        %s396 = scalar_select %p395, %s394, 7
        %s397 = smul.addr %s396, 8
        %s398 = scalar_lea.vmem %s0, %s397
        %p399 = pneg %p47
        %p400 = pneg %p44
        %s401 = smul.u32 4, %s26
        %p402 = scmp.lt.s32.totalorder %s401, 7
        %s403 = scalar_select %p402, %s401, 7
        %s404 = smul.addr %s403, 8
        %s405 = scalar_lea.vmem %s1, %s404
        %p406 = pneg %p73
        %p407 = pneg %p70
        %s408 = smul.u32 4, %s26
        %p409 = scmp.lt.s32.totalorder %s408, 7
        %s410 = scalar_select %p409, %s408, 7
        %s411 = smul.addr %s410, 8
        %s412 = scalar_lea.vmem %s2, %s411
        %p413 = pneg %p99
        %p414 = pneg %p96
        %p415 = pneg %p120
        %p416 = pneg %p117
        %p417 = pneg %p141
        %p418 = pneg %p138
        %p419 = pneg %p162
        %p420 = pneg %p159
        %p421 = pneg %p183
        %p422 = pneg %p180
        %p423 = pneg %p204
        %p424 = pneg %p201
        %p425 = pneg %p225
        %p426 = pneg %p222
        %p427 = pneg %p246
        %p428 = pneg %p243
        %p429 = pneg %p267
        %p430 = pneg %p264
        %p431 = pneg %p288
        %p432 = pneg %p285
        %p433 = pneg %p314
        %p434 = pneg %p311
        %s435 = sand.u32 %s301, 1
        %s436 = scalar_lea.sflag [#allocation3], %s435
        %s437 = sand.u32 %s301, 1
        %s438 = smul.addr %s437, 32
        %s439 = scalar_lea.vmem [#allocation2], %s438
        %s440 = smul.u32 4, %s26
        %p441 = scmp.lt.s32.totalorder %s440, 7
        %s442 = scalar_select %p441, %s440, 7
        %s443 = smul.addr %s442, 8
        %s444 = scalar_lea.vmem %s0, %s443
        %s445 = smul.u32 4, %s26
        %s446 = smul.u32 4, %s26
        %p447 = scmp.lt.s32.totalorder %s446, 7
        %s448 = scalar_select %p447, %s446, 7
        %s449 = smul.addr %s448, 8
        %s450 = scalar_lea.vmem %s1, %s449
        %s451 = smul.u32 4, %s26
        %s452 = smul.u32 4, %s26
        %p453 = scmp.lt.s32.totalorder %s452, 7
        %s454 = scalar_select %p453, %s452, 7
        %s455 = smul.addr %s454, 8
        %s456 = scalar_lea.vmem %s2, %s455
        %s457 = smul.u32 4, %s26
        %s458 = smul.u32 4, %s26
        %v459 = vld [vmem:[%s450] sm:$0xff]
        %v460 = vld [vmem:[%s450 + $0x8] sm:$0xff]
        %v461 = vld [vmem:[%s450 + $0x10] sm:$0xff]
        %v462 = vld [vmem:[%s450 + $0x18] sm:$0xff]
        %v463 = vld [vmem:[%s3] sm:$0xff]
        %v464 = vld [vmem:[%s444] sm:$0xff]
        %v465 = vld [vmem:[%s444 + $0x8] sm:$0xff]
        %v466 = vld [vmem:[%s444 + $0x10] sm:$0xff]
        %v467 = vld [vmem:[%s444 + $0x18] sm:$0xff]
        %vm468 = vcmask 64512
        %v470 = vsel %vm468, %v459, 0
        %v473 = vsel %vm468, %v460, 0
        %v476 = vsel %vm468, %v461, 0
        %v479 = vsel %vm468, %v462, 0
        %481 = vmatpush.msra.mxu0 0.0
        %482 = vmatpush.msra.mxu0 0.0
        %483 = vmatpush.msra.mxu0 0.0
        %484 = vmatpush.msra.mxu0 0.0
        %485 = vmatpush.msra.mxu0 0.0
        %486 = vmatpush.msra.mxu0 0.0
        %487 = vmatpush.msra.mxu0 0.0
        %488 = vmatpush.msra.mxu0 0.0
        %489 = vmatpush.msra.mxu0 0.0
        %490 = vmatpush.msra.mxu0 0.0
        %491 = vmatpush.msra.mxu0 0.0
        %492 = vmatpush.msra.mxu0 0.0
        %493 = vmatpush.msra.mxu0 0.0
        %494 = vmatpush.msra.mxu0 0.0
        %495 = vmatpush.msra.mxu0 0.0
        %496 = vmatpush.msra.mxu0 %v463
        %497 = vmatmul.f32.gmra.mxu0 %v470
        %v498 = vpop.f32.mrf.mxu0
        %v499 = vadd.f32 1e-06, %v498
        %500 = vmatmul.f32.gmra.mxu0 %v473
        %v501 = vpop.f32.mrf.mxu0
        %v502 = vadd.f32 1e-06, %v501
        %503 = vmatmul.f32.gmra.mxu0 %v476
        %v504 = vpop.f32.mrf.mxu0
        %v505 = vadd.f32 1e-06, %v504
        %506 = vmatmul.f32.gmra.mxu0 %v479
        %v507 = vpop.f32.mrf.mxu0
        %v508 = vadd.f32 1e-06, %v507
        %509 = vdwg.mxu0
        %v510 = vrcp.pop %v499
        %v511 = vrcp.pop %v502
        %v512 = vrcp.pop %v505
        %v513 = vrcp.pop %v508
        %v514 = vmul.f32 %v464, %v510
        %v515 = vmul.f32 %v465, %v511
        %v516 = vmul.f32 %v466, %v512
        %v517 = vmul.f32 %v467, %v513
        %v518 = vpack.c.bf16 %v515, %v514
        %v519 = vpack.c.bf16 %v517, %v516
        %v520 = vld [vmem:[%s4] sm:$0xf]
        %v521 = vld [vmem:[%s4 + $0x4] sm:$0xf]
        %v522 = vld [vmem:[%s4 + $0x8] sm:$0xf]
        %v523 = vld [vmem:[%s4 + $0xc] sm:$0xf]
        %v524 = vld [vmem:[%s4 + $0x10] sm:$0xf]
        %v525 = vld [vmem:[%s4 + $0x14] sm:$0xf]
        %v526 = vld [vmem:[%s4 + $0x18] sm:$0xf]
        %v527 = vld [vmem:[%s4 + $0x1c] sm:$0xf]
        %v528 = vld [vmem:[%s4 + $0x20] sm:$0xf]
        %v529 = vld [vmem:[%s4 + $0x24] sm:$0xf]
        %v530 = vld [vmem:[%s4 + $0x28] sm:$0xf]
        %v531 = vld [vmem:[%s4 + $0x2c] sm:$0xf]
        %v532 = vld [vmem:[%s4 + $0x30] sm:$0xf]
        %v533 = vld [vmem:[%s4 + $0x34] sm:$0xf]
        %v534 = vld [vmem:[%s4 + $0x38] sm:$0xf]
        %v535 = vld [vmem:[%s4 + $0x3c] sm:$0xf]
        %v552 = vunpack.c.l.b16 %v520
        %v553 = vunpack.c.l.b16 %v521
        %v554 = vunpack.c.l.b16 %v522
        %v555 = vunpack.c.l.b16 %v523
        %v556 = vunpack.c.l.b16 %v524
        %v557 = vunpack.c.l.b16 %v525
        %v558 = vunpack.c.l.b16 %v526
        %v559 = vunpack.c.l.b16 %v527
        %v560 = vunpack.c.l.b16 %v528
        %v561 = vunpack.c.l.b16 %v529
        %v562 = vunpack.c.l.b16 %v530
        %v563 = vunpack.c.l.b16 %v531
        %v564 = vunpack.c.l.b16 %v532
        %v565 = vunpack.c.l.b16 %v533
        %v566 = vunpack.c.l.b16 %v534
        %v567 = vunpack.c.l.b16 %v535
        %v568 = vpack.c.b16 %v553, %v552
        %v569 = vpack.c.b16 %v555, %v554
        %v570 = vpack.c.b16 %v557, %v556
        %v571 = vpack.c.b16 %v559, %v558
        %v572 = vpack.c.b16 %v561, %v560
        %v573 = vpack.c.b16 %v563, %v562
        %v574 = vpack.c.b16 %v565, %v564
        %v575 = vpack.c.b16 %v567, %v566
        %584 = vmatpush.bf16.msra.mxu0 %v575
        %585 = vmatpush.bf16.msra.mxu0 %v574
        %586 = vmatpush.bf16.msra.mxu0 %v573
        %587 = vmatpush.bf16.msra.mxu0 %v572
        %588 = vmatpush.bf16.msra.mxu0 %v571
        %589 = vmatpush.bf16.msra.mxu0 %v570
        %590 = vmatpush.bf16.msra.mxu0 %v569
        %591 = vmatpush.bf16.msra.mxu0 %v568
        %592 = vmatmul.bf16.gmra.mxu0 %v518
        %v593 = vpop.f32.mrf.mxu0
        %v594 = vadd.f32 0.0, %v593
        %v595 = vpop.f32.mrf.mxu0
        %v596 = vadd.f32 0.0, %v595
        %597 = vmatmul.bf16.gmra.mxu0 %v519
        %v598 = vpop.f32.mrf.mxu0
        %v599 = vadd.f32 0.0, %v598
        %v600 = vpop.f32.mrf.mxu0
        %v601 = vadd.f32 0.0, %v600
        %602 = vdwg.mxu0
        %v603 = vld [vmem:[%s456] sm:$0xff]
        %v604 = vld [vmem:[%s456 + $0x8] sm:$0xff]
        %v605 = vld [vmem:[%s456 + $0x10] sm:$0xff]
        %v606 = vld [vmem:[%s456 + $0x18] sm:$0xff]
        %v607 = vadd.f32 %v603, %v594
        %v608 = vadd.f32 %v604, %v596
        %v609 = vadd.f32 %v605, %v599
        %v610 = vadd.f32 %v606, %v601
        %v611 = vld [vmem:[%s8] sm:$0x1]
        %v613 = vperm.slane %v611, 0
        %v615 = vmul.f32 %v607, %v613
        %v616 = vmul.f32 %v608, %v613
        %v617 = vmul.f32 %v609, %v613
        %v618 = vmul.f32 %v610, %v613
        %v619 = vld [vmem:[%s9] sm:$0x1]
        %v621 = vperm.slane %v619, 0
        %v623 = vadd.f32 %v615, %v621
        %v624 = vadd.f32 %v616, %v621
        %v625 = vadd.f32 %v617, %v621
        %v626 = vadd.f32 %v618, %v621
        %v627 = vld [vmem:[%s5] sm:$0xff]
        %v628 = vld [vmem:[%s5 + $0x8] sm:$0xff]
        %v629 = vld [vmem:[%s5 + $0x10] sm:$0xff]
        %v630 = vld [vmem:[%s5 + $0x18] sm:$0xff]
        %v631 = vld [vmem:[%s5 + $0x20] sm:$0xff]
        %v632 = vld [vmem:[%s5 + $0x28] sm:$0xff]
        %v633 = vld [vmem:[%s5 + $0x30] sm:$0xff]
        %v634 = vld [vmem:[%s5 + $0x38] sm:$0xff]
        %v635 = vld [vmem:[%s5 + $0x40] sm:$0xff]
        %v636 = vld [vmem:[%s5 + $0x48] sm:$0xff]
        %v637 = vld [vmem:[%s5 + $0x50] sm:$0xff]
        %v638 = vld [vmem:[%s5 + $0x58] sm:$0xff]
        %v639 = vld [vmem:[%s5 + $0x60] sm:$0xff]
        %v640 = vld [vmem:[%s5 + $0x68] sm:$0xff]
        %v641 = vld [vmem:[%s5 + $0x70] sm:$0xff]
        %v642 = vld [vmem:[%s5 + $0x78] sm:$0xff]
        %v643 = vld [vmem:[%s6] sm:$0x3]
        %v644 = vld [vmem:[%s7] sm:$0xf]
        %v645 = vld [vmem:[%s7 + $0x4] sm:$0xf]
        %v646 = vld [vmem:[%s7 + $0x8] sm:$0xf]
        %v647 = vld [vmem:[%s7 + $0xc] sm:$0xf]
        %v648 = vld [vmem:[%s7 + $0x10] sm:$0xf]
        %v649 = vld [vmem:[%s7 + $0x14] sm:$0xf]
        %v650 = vld [vmem:[%s7 + $0x18] sm:$0xf]
        %v651 = vld [vmem:[%s7 + $0x1c] sm:$0xf]
        %v652 = vld [vmem:[%s7 + $0x20] sm:$0xf]
        %v653 = vld [vmem:[%s7 + $0x24] sm:$0xf]
        %v654 = vld [vmem:[%s7 + $0x28] sm:$0xf]
        %v655 = vld [vmem:[%s7 + $0x2c] sm:$0xf]
        %v656 = vld [vmem:[%s7 + $0x30] sm:$0xf]
        %v657 = vld [vmem:[%s7 + $0x34] sm:$0xf]
        %v658 = vld [vmem:[%s7 + $0x38] sm:$0xf]
        %v659 = vld [vmem:[%s7 + $0x3c] sm:$0xf]
        %v660 = vld [vmem:[%s7 + $0x40] sm:$0xf]
        %v661 = vld [vmem:[%s7 + $0x44] sm:$0xf]
        %v662 = vld [vmem:[%s7 + $0x48] sm:$0xf]
        %v663 = vld [vmem:[%s7 + $0x4c] sm:$0xf]
        %v664 = vld [vmem:[%s7 + $0x50] sm:$0xf]
        %v665 = vld [vmem:[%s7 + $0x54] sm:$0xf]
        %v666 = vld [vmem:[%s7 + $0x58] sm:$0xf]
        %v667 = vld [vmem:[%s7 + $0x5c] sm:$0xf]
        %v668 = vld [vmem:[%s7 + $0x60] sm:$0xf]
        %v669 = vld [vmem:[%s7 + $0x64] sm:$0xf]
        %v670 = vld [vmem:[%s7 + $0x68] sm:$0xf]
        %v671 = vld [vmem:[%s7 + $0x6c] sm:$0xf]
        %v672 = vld [vmem:[%s7 + $0x70] sm:$0xf]
        %v673 = vld [vmem:[%s7 + $0x74] sm:$0xf]
        %v674 = vld [vmem:[%s7 + $0x78] sm:$0xf]
        %v675 = vld [vmem:[%s7 + $0x7c] sm:$0xf]
        %v676 = vld [vmem:[%s10] sm:$0x1]
        %v677 = vld [vmem:[%s11] sm:$0x1]
        %v678 = vpack.c.bf16 %v624, %v623
        %v679 = vpack.c.bf16 %v626, %v625
        %v681 = vperm.slane %v643, 0
        %v682 = vperm.slane %v643, 1
        %v701 = vunpack.c.l.b16 %v627
        %v702 = vunpack.c.h.b16 %v627
        %v703 = vunpack.c.l.b16 %v628
        %v704 = vunpack.c.h.b16 %v628
        %v705 = vunpack.c.l.b16 %v629
        %v706 = vunpack.c.h.b16 %v629
        %v707 = vunpack.c.l.b16 %v630
        %v708 = vunpack.c.h.b16 %v630
        %v709 = vunpack.c.l.b16 %v631
        %v710 = vunpack.c.h.b16 %v631
        %v711 = vunpack.c.l.b16 %v632
        %v712 = vunpack.c.h.b16 %v632
        %v713 = vunpack.c.l.b16 %v633
        %v714 = vunpack.c.h.b16 %v633
        %v715 = vunpack.c.l.b16 %v634
        %v716 = vunpack.c.h.b16 %v634
        %v717 = vunpack.c.l.b16 %v635
        %v718 = vunpack.c.h.b16 %v635
        %v719 = vunpack.c.l.b16 %v636
        %v720 = vunpack.c.h.b16 %v636
        %v721 = vunpack.c.l.b16 %v637
        %v722 = vunpack.c.h.b16 %v637
        %v723 = vunpack.c.l.b16 %v638
        %v724 = vunpack.c.h.b16 %v638
        %v725 = vunpack.c.l.b16 %v639
        %v726 = vunpack.c.h.b16 %v639
        %v727 = vunpack.c.l.b16 %v640
        %v728 = vunpack.c.h.b16 %v640
        %v729 = vunpack.c.l.b16 %v641
        %v730 = vunpack.c.h.b16 %v641
        %v731 = vunpack.c.l.b16 %v642
        %v732 = vunpack.c.h.b16 %v642
        %v733 = vpack.c.b16 %v703, %v701
        %v734 = vpack.c.b16 %v704, %v702
        %v735 = vpack.c.b16 %v707, %v705
        %v736 = vpack.c.b16 %v708, %v706
        %v737 = vpack.c.b16 %v711, %v709
        %v738 = vpack.c.b16 %v712, %v710
        %v739 = vpack.c.b16 %v715, %v713
        %v740 = vpack.c.b16 %v716, %v714
        %v741 = vpack.c.b16 %v719, %v717
        %v742 = vpack.c.b16 %v720, %v718
        %v743 = vpack.c.b16 %v723, %v721
        %v744 = vpack.c.b16 %v724, %v722
        %v745 = vpack.c.b16 %v727, %v725
        %v746 = vpack.c.b16 %v728, %v726
        %v747 = vpack.c.b16 %v731, %v729
        %v748 = vpack.c.b16 %v732, %v730
        %765 = vmatpush.bf16.msra.mxu0 %v747
        %766 = vmatpush.bf16.msra.mxu0 %v745
        %767 = vmatpush.bf16.msra.mxu0 %v743
        %768 = vmatpush.bf16.msra.mxu0 %v741
        %769 = vmatpush.bf16.msra.mxu0 %v739
        %770 = vmatpush.bf16.msra.mxu0 %v737
        %771 = vmatpush.bf16.msra.mxu0 %v735
        %772 = vmatpush.bf16.msra.mxu0 %v733
        %773 = vmatmul.bf16.gmra.mxu0 %v678
        %v774 = vpop.f32.mrf.mxu0
        %v775 = vadd.f32 %v681, %v774
        %v776 = vpop.f32.mrf.mxu0
        %v777 = vadd.f32 %v681, %v776
        %778 = vmatmul.bf16.gmra.mxu0 %v679
        %v779 = vpop.f32.mrf.mxu0
        %v780 = vadd.f32 %v681, %v779
        %v781 = vpop.f32.mrf.mxu0
        %v782 = vadd.f32 %v681, %v781
        %783 = vdwg.mxu0
        %784 = vmatpush.bf16.msra.mxu0 %v748
        %785 = vmatpush.bf16.msra.mxu0 %v746
        %786 = vmatpush.bf16.msra.mxu0 %v744
        %787 = vmatpush.bf16.msra.mxu0 %v742
        %788 = vmatpush.bf16.msra.mxu0 %v740
        %789 = vmatpush.bf16.msra.mxu0 %v738
        %790 = vmatpush.bf16.msra.mxu0 %v736
        %791 = vmatpush.bf16.msra.mxu0 %v734
        %792 = vmatmul.bf16.gmra.mxu0 %v678
        %v793 = vpop.f32.mrf.mxu0
        %v794 = vadd.f32 %v682, %v793
        %v795 = vpop.f32.mrf.mxu0
        %v796 = vadd.f32 %v682, %v795
        %797 = vmatmul.bf16.gmra.mxu0 %v679
        %v798 = vpop.f32.mrf.mxu0
        %v799 = vadd.f32 %v682, %v798
        %v800 = vpop.f32.mrf.mxu0
        %v801 = vadd.f32 %v682, %v800
        %802 = vdwg.mxu0
        %v803 = vmax.f32 %v775, 0.0
        %v804 = vmax.f32 %v794, 0.0
        %v805 = vmax.f32 %v777, 0.0
        %v806 = vmax.f32 %v796, 0.0
        %v807 = vmax.f32 %v780, 0.0
        %v808 = vmax.f32 %v799, 0.0
        %v809 = vmax.f32 %v782, 0.0
        %v810 = vmax.f32 %v801, 0.0
        %v811 = vpack.c.bf16 %v805, %v803
        %v812 = vpack.c.bf16 %v806, %v804
        %v813 = vpack.c.bf16 %v809, %v807
        %v814 = vpack.c.bf16 %v810, %v808
        %v847 = vunpack.c.l.b16 %v644
        %v848 = vunpack.c.l.b16 %v645
        %v849 = vunpack.c.l.b16 %v646
        %v850 = vunpack.c.l.b16 %v647
        %v851 = vunpack.c.l.b16 %v648
        %v852 = vunpack.c.l.b16 %v649
        %v853 = vunpack.c.l.b16 %v650
        %v854 = vunpack.c.l.b16 %v651
        %v855 = vunpack.c.l.b16 %v652
        %v856 = vunpack.c.l.b16 %v653
        %v857 = vunpack.c.l.b16 %v654
        %v858 = vunpack.c.l.b16 %v655
        %v859 = vunpack.c.l.b16 %v656
        %v860 = vunpack.c.l.b16 %v657
        %v861 = vunpack.c.l.b16 %v658
        %v862 = vunpack.c.l.b16 %v659
        %v863 = vunpack.c.l.b16 %v660
        %v864 = vunpack.c.l.b16 %v661
        %v865 = vunpack.c.l.b16 %v662
        %v866 = vunpack.c.l.b16 %v663
        %v867 = vunpack.c.l.b16 %v664
        %v868 = vunpack.c.l.b16 %v665
        %v869 = vunpack.c.l.b16 %v666
        %v870 = vunpack.c.l.b16 %v667
        %v871 = vunpack.c.l.b16 %v668
        %v872 = vunpack.c.l.b16 %v669
        %v873 = vunpack.c.l.b16 %v670
        %v874 = vunpack.c.l.b16 %v671
        %v875 = vunpack.c.l.b16 %v672
        %v876 = vunpack.c.l.b16 %v673
        %v877 = vunpack.c.l.b16 %v674
        %v878 = vunpack.c.l.b16 %v675
        %v879 = vpack.c.b16 %v848, %v847
        %v880 = vpack.c.b16 %v850, %v849
        %v881 = vpack.c.b16 %v852, %v851
        %v882 = vpack.c.b16 %v854, %v853
        %v883 = vpack.c.b16 %v856, %v855
        %v884 = vpack.c.b16 %v858, %v857
        %v885 = vpack.c.b16 %v860, %v859
        %v886 = vpack.c.b16 %v862, %v861
        %v887 = vpack.c.b16 %v864, %v863
        %v888 = vpack.c.b16 %v866, %v865
        %v889 = vpack.c.b16 %v868, %v867
        %v890 = vpack.c.b16 %v870, %v869
        %v891 = vpack.c.b16 %v872, %v871
        %v892 = vpack.c.b16 %v874, %v873
        %v893 = vpack.c.b16 %v876, %v875
        %v894 = vpack.c.b16 %v878, %v877
        %911 = vmatpush.bf16.msra.mxu0 %v886
        %912 = vmatpush.bf16.msra.mxu0 %v885
        %913 = vmatpush.bf16.msra.mxu0 %v884
        %914 = vmatpush.bf16.msra.mxu0 %v883
        %915 = vmatpush.bf16.msra.mxu0 %v882
        %916 = vmatpush.bf16.msra.mxu0 %v881
        %917 = vmatpush.bf16.msra.mxu0 %v880
        %918 = vmatpush.bf16.msra.mxu0 %v879
        %919 = vmatmul.bf16.gmra.mxu0 %v811
        %v920 = vpop.f32.mrf.mxu0
        %v921 = vadd.f32 0.0, %v920
        %v922 = vpop.f32.mrf.mxu0
        %v923 = vadd.f32 0.0, %v922
        %924 = vmatmul.bf16.gmra.mxu0 %v813
        %v925 = vpop.f32.mrf.mxu0
        %v926 = vadd.f32 0.0, %v925
        %v927 = vpop.f32.mrf.mxu0
        %v928 = vadd.f32 0.0, %v927
        %929 = vdwg.mxu0
        %930 = vmatpush.bf16.msra.mxu0 %v894
        %931 = vmatpush.bf16.msra.mxu0 %v893
        %932 = vmatpush.bf16.msra.mxu0 %v892
        %933 = vmatpush.bf16.msra.mxu0 %v891
        %934 = vmatpush.bf16.msra.mxu0 %v890
        %935 = vmatpush.bf16.msra.mxu0 %v889
        %936 = vmatpush.bf16.msra.mxu0 %v888
        %937 = vmatpush.bf16.msra.mxu0 %v887
        %938 = vmatmul.bf16.gmra.mxu0 %v812
        %v939 = vpop.f32.mrf.mxu0
        %v940 = vadd.f32 %v921, %v939
        %v941 = vpop.f32.mrf.mxu0
        %v942 = vadd.f32 %v923, %v941
        %943 = vmatmul.bf16.gmra.mxu0 %v814
        %v944 = vpop.f32.mrf.mxu0
        %v945 = vadd.f32 %v926, %v944
        %v946 = vpop.f32.mrf.mxu0
        %v947 = vadd.f32 %v928, %v946
        %948 = vdwg.mxu0
        %v949 = vadd.f32 %v623, %v940
        %v950 = vadd.f32 %v624, %v942
        %v951 = vadd.f32 %v625, %v945
        %v952 = vadd.f32 %v626, %v947
        %v954 = vperm.slane %v676, 0
        %v956 = vmul.f32 %v949, %v954
        %v957 = vmul.f32 %v950, %v954
        %v958 = vmul.f32 %v951, %v954
        %v959 = vmul.f32 %v952, %v954
        %v961 = vperm.slane %v677, 0
        %v963 = vadd.f32 %v956, %v961
        %v964 = vadd.f32 %v957, %v961
        %v965 = vadd.f32 %v958, %v961
        %v966 = vadd.f32 %v959, %v961
        %967 = vst [vmem:[%s439] sm:$0xff] %v963
        %968 = vst [vmem:[%s439 + $0x8] sm:$0xff] %v964
        %969 = vst [vmem:[%s439 + $0x10] sm:$0xff] %v965
        %970 = vst [vmem:[%s439 + $0x18] sm:$0xff] %v966
        %s971 = sand.u32 %s301, 1
        %s972 = scalar_lea.sflag [#allocation3], %s971
        %s973 = sand.u32 %s301, 1
        %s974 = smul.addr %s973, 32
        %s975 = scalar_lea.vmem [#allocation2], %s974
        // Predicated region
        $region69: #{graph_transformer_layer.6} parent=67 // pred_check
          %p976 = pneg %p311
        $region70: #{graph_transformer_layer.6} parent=67 // pred_check_branch
          %978 = sbr.rel (%p976) target = $region72
        $region71: #{graph_transformer_layer.6} parent=67 // pred_region
          %s979 = smul.u32 4, %s26
          %981 = vsyncadd %s972, 0
          %s982 = smul.addr %s979, 8
          %s983 = scalar_lea.hbm %s12, %s982
          %s984 = sshll.u32 %s975, 4
          %s985 = int_to_ptr.vmem [resolvable:$true] %s984
          %s986 = sshll.u32 %s983, 4
          %s987 = int_to_ptr.hbm [resolvable:$true] %s986
          %992 = dma.vmem_to_hbm [thread:$0]  %s985, 512, %s987, %s972, 128, 128, 8
        $region72: #{graph_transformer_layer.6} parent=67 // pred_fallthru
          _
      $region68: #{graph_transformer_layer.6} parent=5 // pred_fallthru
        _
      %p993 = scmp.le.s32.totalorder 2, %s21
      // Predicated region
      $region73: #{graph_transformer_layer.6} parent=5 // pred_check
        %p994 = pneg %p993
      $region74: #{graph_transformer_layer.6} parent=5 // pred_check_branch
        %996 = sbr.rel (%p994) target = $region76
      $region75: #{graph_transformer_layer.6} parent=5 // pred_region
        %s997 = ssub.s32 %s21, 2
        // Predicated region
        $region77: #{graph_transformer_layer.6} parent=75 // pred_check
          %p998 = pneg %p317
        $region78: #{graph_transformer_layer.6} parent=75 // pred_check_branch
          %1000 = sbr.rel (%p998) target = $region80
        $region79: #{graph_transformer_layer.6} parent=75 // pred_region
          %s1001 = sand.u32 %s302, 1
          %s1002 = scalar_lea.sflag [#allocation3], %s1001
          %s1003 = sand.u32 %s302, 1
          %s1004 = smul.addr %s1003, 32
          %s1005 = scalar_lea.vmem [#allocation2], %s1004
          %1007 = dma.done %s1002, 512
        $region80: #{graph_transformer_layer.6} parent=75 // pred_fallthru
          _
      $region76: #{graph_transformer_layer.6} parent=5 // pred_fallthru
        _
    $region6: #{graph_transformer_layer.6} parent=1 // loop_footer
      %s25 = sadd.s32 1, %s21
    $region7: #{graph_transformer_layer.6} parent=1 // loop_footer_branch
      %20 = sbr.rel target = $region3
    $region8: #{graph_transformer_layer.6} parent=1 // loop_exit
      _
    %1008 = vsyncpa [#allocation3], 1
    %s1009 = scalar_lea.sflag [#allocation3], 1
    %1010 = vsyncpa %s1009, 1

// kernel: graph_transformer_layer.7
$region0: #{graph_transformer_layer.7}
  #allocation0 [shape = 'u32[]', space=smem, size = 0x4, offset = 0x4, fixed_abs, tag = 'smem constant byte address 0x4 - core index']
  #allocation1 [shape = 'u32[72,128]{1,0:T(1,128)}', space=vmem, size = 0x9000, scoped, tag = 'internal scratch']
  %s0 = inlined_call_operand.vmem [shape: bf16[256,128], index: 0, kind: input, shape index: {}]
  %s1 = inlined_call_operand.vmem [shape: f32[256,128], index: 1, kind: input, shape index: {}]
  %s2 = inlined_call_operand.vmem [shape: bf16[128,128], index: 2, kind: input, shape index: {}]
  %s3 = inlined_call_operand.vmem [shape: bf16[128,256], index: 3, kind: input, shape index: {}]
  %s4 = inlined_call_operand.vmem [shape: f32[1,256], index: 4, kind: input, shape index: {}]
  %s5 = inlined_call_operand.vmem [shape: bf16[256,128], index: 5, kind: input, shape index: {}]
  %s6 = inlined_call_operand.vmem [shape: f32[1,128], index: 6, kind: input, shape index: {}]
  %s7 = inlined_call_operand.vmem [shape: f32[1,128], index: 7, kind: input, shape index: {}]
  %s8 = inlined_call_operand.vmem [shape: f32[1,128], index: 8, kind: input, shape index: {}]
  %s9 = inlined_call_operand.vmem [shape: f32[1,128], index: 9, kind: input, shape index: {}]
  %s10 = inlined_call_operand.hbm [shape: f32[256,128], index: 10, kind: output, shape index: {}]
  %s11 = sld [smem:[#allocation0]]
  $region73: #{graph_transformer_layer.7} parent=0
    _
  %s13 = ssub.s32 1, %s11
  %s14 = scalar_select 0, %s13, %s11
  $region1: #{graph_transformer_layer.7} parent=0
    #allocation2 [shape = 'u8[131072]{0}', space=vmem, size = 0x20000, scoped, tag = 'output window, operand 0']
    #allocation3 [shape = 's32[2]{0}', space=sflag, size = 0x8, scoped, tag = 'scoped memory for graph_transformer_layer.7']
    %15 = vsyncpa [#allocation3], 0
    %s16 = scalar_lea.sflag [#allocation3], 1
    %17 = vsyncpa %s16, 0
    loop: start=0, step=1, limit=4
    $region2: #{graph_transformer_layer.7} parent=1 // loop_pre_header
      _
    $region3: #{graph_transformer_layer.7} parent=1 // loop_header
      %s19 = sphi 0, %s23
      %p20 = scmp.ge.s32.totalorder %s19, 4
      %s29 = sphi 0, %s31
      %s32 = sphi 0, %s29
      %s33 = sphi 0, %s32
      %s49 = sphi 0, %s33
      %s55 = sphi 0, %s57
      %s58 = sphi 0, %s55
      %s59 = sphi 0, %s58
      %s75 = sphi 0, %s59
      %s79 = sphi 0, %s79
      %s81 = sphi 0, %s79
      %s82 = sphi 0, %s81
      %s96 = sphi 0, %s82
      %s100 = sphi 0, %s100
      %s102 = sphi 0, %s100
      %s103 = sphi 0, %s102
      %s117 = sphi 0, %s103
      %s121 = sphi 0, %s121
      %s123 = sphi 0, %s121
      %s124 = sphi 0, %s123
      %s138 = sphi 0, %s124
      %s142 = sphi 0, %s142
      %s144 = sphi 0, %s142
      %s145 = sphi 0, %s144
      %s159 = sphi 0, %s145
      %s163 = sphi 0, %s163
      %s165 = sphi 0, %s163
      %s166 = sphi 0, %s165
      %s180 = sphi 0, %s166
      %s184 = sphi 0, %s184
      %s186 = sphi 0, %s184
      %s187 = sphi 0, %s186
      %s201 = sphi 0, %s187
      %s205 = sphi 0, %s205
      %s207 = sphi 0, %s205
      %s208 = sphi 0, %s207
      %s222 = sphi 0, %s208
      %s226 = sphi 0, %s226
      %s228 = sphi 0, %s226
      %s229 = sphi 0, %s228
      %s243 = sphi 0, %s229
      %s249 = sphi 0, %s251
      %s252 = sphi 0, %s249
      %s253 = sphi 0, %s252
      %s269 = sphi 0, %s253
    $region4: #{graph_transformer_layer.7} parent=1 // loop_header_branch
      %22 = sbr.rel (%p20) target = $region8
    $region5: #{graph_transformer_layer.7} parent=1 // loop_body
      %s24 = ssub.s32 %s19, 1
      %s25 = ssub.s32 %s19, 2
      %s26 = sadd.s32 %s19, 1
      %s27 = ssub.s32 %s19, %s26
      %p28 = scmp.eq.s32.totalorder %s27, 0
      %s30 = sadd.s32 %s29, 1
      %s31 = scalar_select %p28, %s29, %s30
      %p34 = pneg %p28
      %p35 = scmp.eq.s32.totalorder %s19, 1
      %p36 = por %p34, %p35
      %p37 = scmp.ne.s32.totalorder %s29, %s32
      %p38 = scmp.eq.s32.totalorder %s19, 0
      %p39 = por %p37, %p38
      %p40 = scmp.ne.s32.totalorder %s29, %s32
      %p41 = scmp.eq.s32.totalorder %s24, 1
      %p42 = por %p40, %p41
      %p43 = scmp.ne.s32.totalorder %s32, %s33
      %p44 = scmp.eq.s32.totalorder %s24, 0
      %p45 = por %p43, %p44
      %p46 = scmp.ne.s32.totalorder %s32, %s33
      %p47 = scmp.eq.s32.totalorder %s25, 1
      %p48 = por %p46, %p47
      %p50 = scmp.ne.s32.totalorder %s33, %s49
      %p51 = scmp.eq.s32.totalorder %s25, 0
      %p52 = por %p50, %p51
      %s53 = ssub.s32 %s19, %s26
      %p54 = scmp.eq.s32.totalorder %s53, 0
      %s56 = sadd.s32 %s55, 1
      %s57 = scalar_select %p54, %s55, %s56
      %p60 = pneg %p54
      %p61 = scmp.eq.s32.totalorder %s19, 1
      %p62 = por %p60, %p61
      %p63 = scmp.ne.s32.totalorder %s55, %s58
      %p64 = scmp.eq.s32.totalorder %s19, 0
      %p65 = por %p63, %p64
      %p66 = scmp.ne.s32.totalorder %s55, %s58
      %p67 = scmp.eq.s32.totalorder %s24, 1
      %p68 = por %p66, %p67
      %p69 = scmp.ne.s32.totalorder %s58, %s59
      %p70 = scmp.eq.s32.totalorder %s24, 0
      %p71 = por %p69, %p70
      %p72 = scmp.ne.s32.totalorder %s58, %s59
      %p73 = scmp.eq.s32.totalorder %s25, 1
      %p74 = por %p72, %p73
      %p76 = scmp.ne.s32.totalorder %s59, %s75
      %p77 = scmp.eq.s32.totalorder %s25, 0
      %p78 = por %p76, %p77
      %s80 = sadd.s32 %s79, 1
      %p83 = scmp.eq.s32.totalorder %s19, 1
      %p84 = scmp.ne.s32.totalorder %s79, %s81
      %p85 = scmp.eq.s32.totalorder %s19, 0
      %p86 = por %p84, %p85
      %p87 = scmp.ne.s32.totalorder %s79, %s81
      %p88 = scmp.eq.s32.totalorder %s24, 1
      %p89 = por %p87, %p88
      %p90 = scmp.ne.s32.totalorder %s81, %s82
      %p91 = scmp.eq.s32.totalorder %s24, 0
      %p92 = por %p90, %p91
      %p93 = scmp.ne.s32.totalorder %s81, %s82
      %p94 = scmp.eq.s32.totalorder %s25, 1
      %p95 = por %p93, %p94
      %p97 = scmp.ne.s32.totalorder %s82, %s96
      %p98 = scmp.eq.s32.totalorder %s25, 0
      %p99 = por %p97, %p98
      %s101 = sadd.s32 %s100, 1
      %p104 = scmp.eq.s32.totalorder %s19, 1
      %p105 = scmp.ne.s32.totalorder %s100, %s102
      %p106 = scmp.eq.s32.totalorder %s19, 0
      %p107 = por %p105, %p106
      %p108 = scmp.ne.s32.totalorder %s100, %s102
      %p109 = scmp.eq.s32.totalorder %s24, 1
      %p110 = por %p108, %p109
      %p111 = scmp.ne.s32.totalorder %s102, %s103
      %p112 = scmp.eq.s32.totalorder %s24, 0
      %p113 = por %p111, %p112
      %p114 = scmp.ne.s32.totalorder %s102, %s103
      %p115 = scmp.eq.s32.totalorder %s25, 1
      %p116 = por %p114, %p115
      %p118 = scmp.ne.s32.totalorder %s103, %s117
      %p119 = scmp.eq.s32.totalorder %s25, 0
      %p120 = por %p118, %p119
      %s122 = sadd.s32 %s121, 1
      %p125 = scmp.eq.s32.totalorder %s19, 1
      %p126 = scmp.ne.s32.totalorder %s121, %s123
      %p127 = scmp.eq.s32.totalorder %s19, 0
      %p128 = por %p126, %p127
      %p129 = scmp.ne.s32.totalorder %s121, %s123
      %p130 = scmp.eq.s32.totalorder %s24, 1
      %p131 = por %p129, %p130
      %p132 = scmp.ne.s32.totalorder %s123, %s124
      %p133 = scmp.eq.s32.totalorder %s24, 0
      %p134 = por %p132, %p133
      %p135 = scmp.ne.s32.totalorder %s123, %s124
      %p136 = scmp.eq.s32.totalorder %s25, 1
      %p137 = por %p135, %p136
      %p139 = scmp.ne.s32.totalorder %s124, %s138
      %p140 = scmp.eq.s32.totalorder %s25, 0
      %p141 = por %p139, %p140
      %s143 = sadd.s32 %s142, 1
      %p146 = scmp.eq.s32.totalorder %s19, 1
      %p147 = scmp.ne.s32.totalorder %s142, %s144
      %p148 = scmp.eq.s32.totalorder %s19, 0
      %p149 = por %p147, %p148
      %p150 = scmp.ne.s32.totalorder %s142, %s144
      %p151 = scmp.eq.s32.totalorder %s24, 1
      %p152 = por %p150, %p151
      %p153 = scmp.ne.s32.totalorder %s144, %s145
      %p154 = scmp.eq.s32.totalorder %s24, 0
      %p155 = por %p153, %p154
      %p156 = scmp.ne.s32.totalorder %s144, %s145
      %p157 = scmp.eq.s32.totalorder %s25, 1
      %p158 = por %p156, %p157
      %p160 = scmp.ne.s32.totalorder %s145, %s159
      %p161 = scmp.eq.s32.totalorder %s25, 0
      %p162 = por %p160, %p161
      %s164 = sadd.s32 %s163, 1
      %p167 = scmp.eq.s32.totalorder %s19, 1
      %p168 = scmp.ne.s32.totalorder %s163, %s165
      %p169 = scmp.eq.s32.totalorder %s19, 0
      %p170 = por %p168, %p169
      %p171 = scmp.ne.s32.totalorder %s163, %s165
      %p172 = scmp.eq.s32.totalorder %s24, 1
      %p173 = por %p171, %p172
      %p174 = scmp.ne.s32.totalorder %s165, %s166
      %p175 = scmp.eq.s32.totalorder %s24, 0
      %p176 = por %p174, %p175
      %p177 = scmp.ne.s32.totalorder %s165, %s166
      %p178 = scmp.eq.s32.totalorder %s25, 1
      %p179 = por %p177, %p178
      %p181 = scmp.ne.s32.totalorder %s166, %s180
      %p182 = scmp.eq.s32.totalorder %s25, 0
      %p183 = por %p181, %p182
      %s185 = sadd.s32 %s184, 1
      %p188 = scmp.eq.s32.totalorder %s19, 1
      %p189 = scmp.ne.s32.totalorder %s184, %s186
      %p190 = scmp.eq.s32.totalorder %s19, 0
      %p191 = por %p189, %p190
      %p192 = scmp.ne.s32.totalorder %s184, %s186
      %p193 = scmp.eq.s32.totalorder %s24, 1
      %p194 = por %p192, %p193
      %p195 = scmp.ne.s32.totalorder %s186, %s187
      %p196 = scmp.eq.s32.totalorder %s24, 0
      %p197 = por %p195, %p196
      %p198 = scmp.ne.s32.totalorder %s186, %s187
      %p199 = scmp.eq.s32.totalorder %s25, 1
      %p200 = por %p198, %p199
      %p202 = scmp.ne.s32.totalorder %s187, %s201
      %p203 = scmp.eq.s32.totalorder %s25, 0
      %p204 = por %p202, %p203
      %s206 = sadd.s32 %s205, 1
      %p209 = scmp.eq.s32.totalorder %s19, 1
      %p210 = scmp.ne.s32.totalorder %s205, %s207
      %p211 = scmp.eq.s32.totalorder %s19, 0
      %p212 = por %p210, %p211
      %p213 = scmp.ne.s32.totalorder %s205, %s207
      %p214 = scmp.eq.s32.totalorder %s24, 1
      %p215 = por %p213, %p214
      %p216 = scmp.ne.s32.totalorder %s207, %s208
      %p217 = scmp.eq.s32.totalorder %s24, 0
      %p218 = por %p216, %p217
      %p219 = scmp.ne.s32.totalorder %s207, %s208
      %p220 = scmp.eq.s32.totalorder %s25, 1
      %p221 = por %p219, %p220
      %p223 = scmp.ne.s32.totalorder %s208, %s222
      %p224 = scmp.eq.s32.totalorder %s25, 0
      %p225 = por %p223, %p224
      %s227 = sadd.s32 %s226, 1
      %p230 = scmp.eq.s32.totalorder %s19, 1
      %p231 = scmp.ne.s32.totalorder %s226, %s228
      %p232 = scmp.eq.s32.totalorder %s19, 0
      %p233 = por %p231, %p232
      %p234 = scmp.ne.s32.totalorder %s226, %s228
      %p235 = scmp.eq.s32.totalorder %s24, 1
      %p236 = por %p234, %p235
      %p237 = scmp.ne.s32.totalorder %s228, %s229
      %p238 = scmp.eq.s32.totalorder %s24, 0
      %p239 = por %p237, %p238
      %p240 = scmp.ne.s32.totalorder %s228, %s229
      %p241 = scmp.eq.s32.totalorder %s25, 1
      %p242 = por %p240, %p241
      %p244 = scmp.ne.s32.totalorder %s229, %s243
      %p245 = scmp.eq.s32.totalorder %s25, 0
      %p246 = por %p244, %p245
      %s247 = ssub.s32 %s19, %s26
      %p248 = scmp.eq.s32.totalorder %s247, 0
      %s250 = sadd.s32 %s249, 1
      %s251 = scalar_select %p248, %s249, %s250
      %p254 = pneg %p248
      %p255 = scmp.eq.s32.totalorder %s19, 1
      %p256 = por %p254, %p255
      %p257 = scmp.ne.s32.totalorder %s249, %s252
      %p258 = scmp.eq.s32.totalorder %s19, 0
      %p259 = por %p257, %p258
      %p260 = scmp.ne.s32.totalorder %s249, %s252
      %p261 = scmp.eq.s32.totalorder %s24, 1
      %p262 = por %p260, %p261
      %p263 = scmp.ne.s32.totalorder %s252, %s253
      %p264 = scmp.eq.s32.totalorder %s24, 0
      %p265 = por %p263, %p264
      %p266 = scmp.ne.s32.totalorder %s252, %s253
      %p267 = scmp.eq.s32.totalorder %s25, 1
      %p268 = por %p266, %p267
      %p270 = scmp.ne.s32.totalorder %s253, %s269
      %p271 = scmp.eq.s32.totalorder %s25, 0
      %p272 = por %p270, %p271
      %p273 = scmp.le.s32.totalorder 1, %s19
      %p274 = scmp.lt.s32.totalorder %s19, 3
      %p275 = pnand %p273, %p274
      %p276 = pneg %p275
      // Predicated region
      $region9: #{graph_transformer_layer.7} parent=5 // pred_check
        _
      $region10: #{graph_transformer_layer.7} parent=5 // pred_check_branch
        %278 = sbr.rel (%p275) target = $region12
      $region11: #{graph_transformer_layer.7} parent=5 // pred_region
        %s279 = ssub.s32 %s19, 1
        // Predicated region
        $region13: #{graph_transformer_layer.7} parent=11 // pred_check
          %p280 = pneg %p92
        $region14: #{graph_transformer_layer.7} parent=11 // pred_check_branch
          %282 = sbr.rel (%p280) target = $region16
        $region15: #{graph_transformer_layer.7} parent=11 // pred_region
          _
        $region16: #{graph_transformer_layer.7} parent=11 // pred_fallthru
          _
        // Predicated region
        $region17: #{graph_transformer_layer.7} parent=11 // pred_check
          %p283 = pneg %p113
        $region18: #{graph_transformer_layer.7} parent=11 // pred_check_branch
          %285 = sbr.rel (%p283) target = $region20
        $region19: #{graph_transformer_layer.7} parent=11 // pred_region
          _
        $region20: #{graph_transformer_layer.7} parent=11 // pred_fallthru
          _
        // Predicated region
        $region21: #{graph_transformer_layer.7} parent=11 // pred_check
          %p286 = pneg %p134
        $region22: #{graph_transformer_layer.7} parent=11 // pred_check_branch
          %288 = sbr.rel (%p286) target = $region24
        $region23: #{graph_transformer_layer.7} parent=11 // pred_region
          _
        $region24: #{graph_transformer_layer.7} parent=11 // pred_fallthru
          _
        // Predicated region
        $region25: #{graph_transformer_layer.7} parent=11 // pred_check
          %p289 = pneg %p155
        $region26: #{graph_transformer_layer.7} parent=11 // pred_check_branch
          %291 = sbr.rel (%p289) target = $region28
        $region27: #{graph_transformer_layer.7} parent=11 // pred_region
          _
        $region28: #{graph_transformer_layer.7} parent=11 // pred_fallthru
          _
        // Predicated region
        $region29: #{graph_transformer_layer.7} parent=11 // pred_check
          %p292 = pneg %p176
        $region30: #{graph_transformer_layer.7} parent=11 // pred_check_branch
          %294 = sbr.rel (%p292) target = $region32
        $region31: #{graph_transformer_layer.7} parent=11 // pred_region
          _
        $region32: #{graph_transformer_layer.7} parent=11 // pred_fallthru
          _
        // Predicated region
        $region33: #{graph_transformer_layer.7} parent=11 // pred_check
          %p295 = pneg %p197
        $region34: #{graph_transformer_layer.7} parent=11 // pred_check_branch
          %297 = sbr.rel (%p295) target = $region36
        $region35: #{graph_transformer_layer.7} parent=11 // pred_region
          _
        $region36: #{graph_transformer_layer.7} parent=11 // pred_fallthru
          _
        // Predicated region
        $region37: #{graph_transformer_layer.7} parent=11 // pred_check
          %p298 = pneg %p218
        $region38: #{graph_transformer_layer.7} parent=11 // pred_check_branch
          %300 = sbr.rel (%p298) target = $region40
        $region39: #{graph_transformer_layer.7} parent=11 // pred_region
          _
        $region40: #{graph_transformer_layer.7} parent=11 // pred_fallthru
          _
        // Predicated region
        $region41: #{graph_transformer_layer.7} parent=11 // pred_check
          %p301 = pneg %p239
        $region42: #{graph_transformer_layer.7} parent=11 // pred_check_branch
          %303 = sbr.rel (%p301) target = $region44
        $region43: #{graph_transformer_layer.7} parent=11 // pred_region
          _
        $region44: #{graph_transformer_layer.7} parent=11 // pred_fallthru
          _
      $region12: #{graph_transformer_layer.7} parent=5 // pred_fallthru
        _
      %p304 = scmp.lt.s32.totalorder %s19, 2
      // Predicated region
      $region45: #{graph_transformer_layer.7} parent=5 // pred_check
        %p305 = pneg %p304
      $region46: #{graph_transformer_layer.7} parent=5 // pred_check_branch
        %307 = sbr.rel (%p305) target = $region48
      $region47: #{graph_transformer_layer.7} parent=5 // pred_region
        // Predicated region
        $region49: #{graph_transformer_layer.7} parent=47 // pred_check
          %p308 = pneg %p39
        $region50: #{graph_transformer_layer.7} parent=47 // pred_check_branch
          %310 = sbr.rel (%p308) target = $region52
        $region51: #{graph_transformer_layer.7} parent=47 // pred_region
          %s311 = smul.u32 16, %s19
          %p312 = scmp.lt.s32.totalorder %s311, 31
          %s313 = scalar_select %p312, %s311, 31
          %s314 = smul.addr %s313, 4
          %s315 = scalar_lea.vmem %s0, %s314
          %s316 = smul.u32 16, %s19
        $region52: #{graph_transformer_layer.7} parent=47 // pred_fallthru
          _
        // Predicated region
        $region53: #{graph_transformer_layer.7} parent=47 // pred_check
          %p317 = pneg %p65
        $region54: #{graph_transformer_layer.7} parent=47 // pred_check_branch
          %319 = sbr.rel (%p317) target = $region56
        $region55: #{graph_transformer_layer.7} parent=47 // pred_region
          %s320 = smul.u32 16, %s19
          %p321 = scmp.lt.s32.totalorder %s320, 31
          %s322 = scalar_select %p321, %s320, 31
          %s323 = smul.addr %s322, 8
          %s324 = scalar_lea.vmem %s1, %s323
          %s325 = smul.u32 16, %s19
        $region56: #{graph_transformer_layer.7} parent=47 // pred_fallthru
          _
      $region48: #{graph_transformer_layer.7} parent=5 // pred_fallthru
        _
      %p326 = scmp.le.s32.totalorder 1, %s19
      %p327 = scmp.lt.s32.totalorder %s19, 3
      %p328 = pnand %p326, %p327
      %p329 = pneg %p328
      // Predicated region
      $region57: #{graph_transformer_layer.7} parent=5 // pred_check
        _
      $region58: #{graph_transformer_layer.7} parent=5 // pred_check_branch
        %331 = sbr.rel (%p328) target = $region60
      $region59: #{graph_transformer_layer.7} parent=5 // pred_region
        %s332 = ssub.s32 %s19, 1
        %s333 = smul.u32 16, %s24
        %p334 = scmp.lt.s32.totalorder %s333, 31
        %s335 = scalar_select %p334, %s333, 31
        %s336 = smul.addr %s335, 4
        %s337 = scalar_lea.vmem %s0, %s336
        %p338 = pneg %p45
        %p339 = pneg %p42
        %s340 = smul.u32 16, %s24
        %p341 = scmp.lt.s32.totalorder %s340, 31
        %s342 = scalar_select %p341, %s340, 31
        %s343 = smul.addr %s342, 8
        %s344 = scalar_lea.vmem %s1, %s343
        %p345 = pneg %p71
        %p346 = pneg %p68
        %p347 = pneg %p92
        %p348 = pneg %p89
        %p349 = pneg %p113
        %p350 = pneg %p110
        %p351 = pneg %p134
        %p352 = pneg %p131
        %p353 = pneg %p155
        %p354 = pneg %p152
        %p355 = pneg %p176
        %p356 = pneg %p173
        %p357 = pneg %p197
        %p358 = pneg %p194
        %p359 = pneg %p218
        %p360 = pneg %p215
        %p361 = pneg %p239
        %p362 = pneg %p236
        %p363 = pneg %p265
        %p364 = pneg %p262
        %s365 = sand.u32 %s252, 1
        %s366 = scalar_lea.sflag [#allocation3], %s365
        %s367 = sand.u32 %s252, 1
        %s368 = smul.addr %s367, 128
        %s369 = scalar_lea.vmem [#allocation2], %s368
        %s370 = smul.u32 16, %s24
        %p371 = scmp.lt.s32.totalorder %s370, 31
        %s372 = scalar_select %p371, %s370, 31
        %s373 = smul.addr %s372, 4
        %s374 = scalar_lea.vmem %s0, %s373
        %s375 = smul.u32 16, %s24
        %s376 = smul.u32 16, %s24
        %p377 = scmp.lt.s32.totalorder %s376, 31
        %s378 = scalar_select %p377, %s376, 31
        %s379 = smul.addr %s378, 8
        %s380 = scalar_lea.vmem %s1, %s379
        %s381 = smul.u32 16, %s24
        %s382 = smul.u32 16, %s24
        %v383 = vld [vmem:[%s374] sm:$0xf]
        %v384 = vld [vmem:[%s374 + $0x4] sm:$0xf]
        %v385 = vld [vmem:[%s374 + $0x8] sm:$0xf]
        %v386 = vld [vmem:[%s374 + $0xc] sm:$0xf]
        %v387 = vld [vmem:[%s374 + $0x10] sm:$0xf]
        %v388 = vld [vmem:[%s374 + $0x14] sm:$0xf]
        %v389 = vld [vmem:[%s374 + $0x18] sm:$0xf]
        %v390 = vld [vmem:[%s374 + $0x1c] sm:$0xf]
        %v391 = vld [vmem:[%s374 + $0x20] sm:$0xf]
        %v392 = vld [vmem:[%s374 + $0x24] sm:$0xf]
        %v393 = vld [vmem:[%s374 + $0x28] sm:$0xf]
        %v394 = vld [vmem:[%s374 + $0x2c] sm:$0xf]
        %v395 = vld [vmem:[%s374 + $0x30] sm:$0xf]
        %v396 = vld [vmem:[%s374 + $0x34] sm:$0xf]
        %v397 = vld [vmem:[%s374 + $0x38] sm:$0xf]
        %v398 = vld [vmem:[%s374 + $0x3c] sm:$0xf]
        %v399 = vld [vmem:[%s2] sm:$0xf]
        %v400 = vld [vmem:[%s2 + $0x4] sm:$0xf]
        %v401 = vld [vmem:[%s2 + $0x8] sm:$0xf]
        %v402 = vld [vmem:[%s2 + $0xc] sm:$0xf]
        %v403 = vld [vmem:[%s2 + $0x10] sm:$0xf]
        %v404 = vld [vmem:[%s2 + $0x14] sm:$0xf]
        %v405 = vld [vmem:[%s2 + $0x18] sm:$0xf]
        %v406 = vld [vmem:[%s2 + $0x1c] sm:$0xf]
        %v407 = vld [vmem:[%s2 + $0x20] sm:$0xf]
        %v408 = vld [vmem:[%s2 + $0x24] sm:$0xf]
        %v409 = vld [vmem:[%s2 + $0x28] sm:$0xf]
        %v410 = vld [vmem:[%s2 + $0x2c] sm:$0xf]
        %v411 = vld [vmem:[%s2 + $0x30] sm:$0xf]
        %v412 = vld [vmem:[%s2 + $0x34] sm:$0xf]
        %v413 = vld [vmem:[%s2 + $0x38] sm:$0xf]
        %v414 = vld [vmem:[%s2 + $0x3c] sm:$0xf]
        %v431 = vunpack.c.l.b16 %v383
        %v432 = vunpack.c.l.b16 %v384
        %v433 = vunpack.c.l.b16 %v385
        %v434 = vunpack.c.l.b16 %v386
        %v435 = vunpack.c.l.b16 %v387
        %v436 = vunpack.c.l.b16 %v388
        %v437 = vunpack.c.l.b16 %v389
        %v438 = vunpack.c.l.b16 %v390
        %v439 = vunpack.c.l.b16 %v391
        %v440 = vunpack.c.l.b16 %v392
        %v441 = vunpack.c.l.b16 %v393
        %v442 = vunpack.c.l.b16 %v394
        %v443 = vunpack.c.l.b16 %v395
        %v444 = vunpack.c.l.b16 %v396
        %v445 = vunpack.c.l.b16 %v397
        %v446 = vunpack.c.l.b16 %v398
        %v447 = vpack.c.b16 %v432, %v431
        %v448 = vpack.c.b16 %v434, %v433
        %v449 = vpack.c.b16 %v436, %v435
        %v450 = vpack.c.b16 %v438, %v437
        %v451 = vpack.c.b16 %v440, %v439
        %v452 = vpack.c.b16 %v442, %v441
        %v453 = vpack.c.b16 %v444, %v443
        %v454 = vpack.c.b16 %v446, %v445
        %v479 = vunpack.c.l.b16 %v399
        %v480 = vunpack.c.l.b16 %v400
        %v481 = vunpack.c.l.b16 %v401
        %v482 = vunpack.c.l.b16 %v402
        %v483 = vunpack.c.l.b16 %v403
        %v484 = vunpack.c.l.b16 %v404
        %v485 = vunpack.c.l.b16 %v405
        %v486 = vunpack.c.l.b16 %v406
        %v487 = vunpack.c.l.b16 %v407
        %v488 = vunpack.c.l.b16 %v408
        %v489 = vunpack.c.l.b16 %v409
        %v490 = vunpack.c.l.b16 %v410
        %v491 = vunpack.c.l.b16 %v411
        %v492 = vunpack.c.l.b16 %v412
        %v493 = vunpack.c.l.b16 %v413
        %v494 = vunpack.c.l.b16 %v414
        %v495 = vpack.c.b16 %v480, %v479
        %v496 = vpack.c.b16 %v482, %v481
        %v497 = vpack.c.b16 %v484, %v483
        %v498 = vpack.c.b16 %v486, %v485
        %v499 = vpack.c.b16 %v488, %v487
        %v500 = vpack.c.b16 %v490, %v489
        %v501 = vpack.c.b16 %v492, %v491
        %v502 = vpack.c.b16 %v494, %v493
        %511 = vmatpush.bf16.msra.mxu0 %v502
        %512 = vmatpush.bf16.msra.mxu0 %v501
        %513 = vmatpush.bf16.msra.mxu0 %v500
        %514 = vmatpush.bf16.msra.mxu0 %v499
        %515 = vmatpush.bf16.msra.mxu0 %v498
        %516 = vmatpush.bf16.msra.mxu0 %v497
        %517 = vmatpush.bf16.msra.mxu0 %v496
        %518 = vmatpush.bf16.msra.mxu0 %v495
        %519 = vmatmul.bf16.gmra.mxu0 %v447
        %v520 = vpop.f32.mrf.mxu0
        %v521 = vadd.f32 0.0, %v520
        %v522 = vpop.f32.mrf.mxu0
        %v523 = vadd.f32 0.0, %v522
        %524 = vmatmul.bf16.gmra.mxu0 %v448
        %v525 = vpop.f32.mrf.mxu0
        %v526 = vadd.f32 0.0, %v525
        %v527 = vpop.f32.mrf.mxu0
        %v528 = vadd.f32 0.0, %v527
        %529 = vmatmul.bf16.gmra.mxu0 %v449
        %v530 = vpop.f32.mrf.mxu0
        %v531 = vadd.f32 0.0, %v530
        %v532 = vpop.f32.mrf.mxu0
        %v533 = vadd.f32 0.0, %v532
        %534 = vmatmul.bf16.gmra.mxu0 %v450
        %v535 = vpop.f32.mrf.mxu0
        %v536 = vadd.f32 0.0, %v535
        %v537 = vpop.f32.mrf.mxu0
        %v538 = vadd.f32 0.0, %v537
        %539 = vmatmul.bf16.gmra.mxu0 %v451
        %v540 = vpop.f32.mrf.mxu0
        %v541 = vadd.f32 0.0, %v540
        %v542 = vpop.f32.mrf.mxu0
        %v543 = vadd.f32 0.0, %v542
        %544 = vmatmul.bf16.gmra.mxu0 %v452
        %v545 = vpop.f32.mrf.mxu0
        %v546 = vadd.f32 0.0, %v545
        %v547 = vpop.f32.mrf.mxu0
        %v548 = vadd.f32 0.0, %v547
        %549 = vmatmul.bf16.gmra.mxu0 %v453
        %v550 = vpop.f32.mrf.mxu0
        %v551 = vadd.f32 0.0, %v550
        %v552 = vpop.f32.mrf.mxu0
        %v553 = vadd.f32 0.0, %v552
        %554 = vmatmul.bf16.gmra.mxu0 %v454
        %v555 = vpop.f32.mrf.mxu0
        %v556 = vadd.f32 0.0, %v555
        %v557 = vpop.f32.mrf.mxu0
        %v558 = vadd.f32 0.0, %v557
        %559 = vdwg.mxu0
        %v560 = vld [vmem:[%s380] sm:$0xff]
        %v561 = vld [vmem:[%s380 + $0x8] sm:$0xff]
        %v562 = vld [vmem:[%s380 + $0x10] sm:$0xff]
        %v563 = vld [vmem:[%s380 + $0x18] sm:$0xff]
        %v564 = vld [vmem:[%s380 + $0x20] sm:$0xff]
        %v565 = vld [vmem:[%s380 + $0x28] sm:$0xff]
        %v566 = vld [vmem:[%s380 + $0x30] sm:$0xff]
        %v567 = vld [vmem:[%s380 + $0x38] sm:$0xff]
        %v568 = vld [vmem:[%s380 + $0x40] sm:$0xff]
        %v569 = vld [vmem:[%s380 + $0x48] sm:$0xff]
        %v570 = vld [vmem:[%s380 + $0x50] sm:$0xff]
        %v571 = vld [vmem:[%s380 + $0x58] sm:$0xff]
        %v572 = vld [vmem:[%s380 + $0x60] sm:$0xff]
        %v573 = vld [vmem:[%s380 + $0x68] sm:$0xff]
        %v574 = vld [vmem:[%s380 + $0x70] sm:$0xff]
        %v575 = vld [vmem:[%s380 + $0x78] sm:$0xff]
        %v576 = vadd.f32 %v560, %v521
        %v577 = vadd.f32 %v561, %v523
        %v578 = vadd.f32 %v562, %v526
        %v579 = vadd.f32 %v563, %v528
        %v580 = vadd.f32 %v564, %v531
        %v581 = vadd.f32 %v565, %v533
        %v582 = vadd.f32 %v566, %v536
        %v583 = vadd.f32 %v567, %v538
        %v584 = vadd.f32 %v568, %v541
        %v585 = vadd.f32 %v569, %v543
        %v586 = vadd.f32 %v570, %v546
        %v587 = vadd.f32 %v571, %v548
        %v588 = vadd.f32 %v572, %v551
        %v589 = vadd.f32 %v573, %v553
        %v590 = vadd.f32 %v574, %v556
        %v591 = vadd.f32 %v575, %v558
        %v592 = vld [vmem:[%s6] sm:$0x1]
        %v594 = vperm.slane %v592, 0
        %v596 = vmul.f32 %v576, %v594
        %v597 = vmul.f32 %v577, %v594
        %v598 = vmul.f32 %v578, %v594
        %v599 = vmul.f32 %v579, %v594
        %v600 = vmul.f32 %v580, %v594
        %v601 = vmul.f32 %v581, %v594
        %v602 = vmul.f32 %v582, %v594
        %v603 = vmul.f32 %v583, %v594
        %v604 = vmul.f32 %v584, %v594
        %v605 = vmul.f32 %v585, %v594
        %v606 = vmul.f32 %v586, %v594
        %v607 = vmul.f32 %v587, %v594
        %v608 = vmul.f32 %v588, %v594
        %v609 = vmul.f32 %v589, %v594
        %v610 = vmul.f32 %v590, %v594
        %v611 = vmul.f32 %v591, %v594
        %v612 = vld [vmem:[%s7] sm:$0x1]
        %v614 = vperm.slane %v612, 0
        %v616 = vadd.f32 %v596, %v614
        %v617 = vadd.f32 %v597, %v614
        %v618 = vadd.f32 %v598, %v614
        %v619 = vadd.f32 %v599, %v614
        %v620 = vadd.f32 %v600, %v614
        %v621 = vadd.f32 %v601, %v614
        %v622 = vadd.f32 %v602, %v614
        %v623 = vadd.f32 %v603, %v614
        %v624 = vadd.f32 %v604, %v614
        %v625 = vadd.f32 %v605, %v614
        %v626 = vadd.f32 %v606, %v614
        %v627 = vadd.f32 %v607, %v614
        %v628 = vadd.f32 %v608, %v614
        %v629 = vadd.f32 %v609, %v614
        %v630 = vadd.f32 %v610, %v614
        %v631 = vadd.f32 %v611, %v614
        %v632 = vld [vmem:[%s3] sm:$0xff]
        %v633 = vld [vmem:[%s3 + $0x8] sm:$0xff]
        %v634 = vld [vmem:[%s3 + $0x10] sm:$0xff]
        %v635 = vld [vmem:[%s3 + $0x18] sm:$0xff]
        %v636 = vld [vmem:[%s3 + $0x20] sm:$0xff]
        %v637 = vld [vmem:[%s3 + $0x28] sm:$0xff]
        %v638 = vld [vmem:[%s3 + $0x30] sm:$0xff]
        %v639 = vld [vmem:[%s3 + $0x38] sm:$0xff]
        %v640 = vld [vmem:[%s3 + $0x40] sm:$0xff]
        %v641 = vld [vmem:[%s3 + $0x48] sm:$0xff]
        %v642 = vld [vmem:[%s3 + $0x50] sm:$0xff]
        %v643 = vld [vmem:[%s3 + $0x58] sm:$0xff]
        %v644 = vld [vmem:[%s3 + $0x60] sm:$0xff]
        %v645 = vld [vmem:[%s3 + $0x68] sm:$0xff]
        %v646 = vld [vmem:[%s3 + $0x70] sm:$0xff]
        %v647 = vld [vmem:[%s3 + $0x78] sm:$0xff]
        %v648 = vld [vmem:[%s4] sm:$0x3]
        %v649 = vld [vmem:[%s5] sm:$0xf]
        %v650 = vld [vmem:[%s5 + $0x4] sm:$0xf]
        %v651 = vld [vmem:[%s5 + $0x8] sm:$0xf]
        %v652 = vld [vmem:[%s5 + $0xc] sm:$0xf]
        %v653 = vld [vmem:[%s5 + $0x10] sm:$0xf]
        %v654 = vld [vmem:[%s5 + $0x14] sm:$0xf]
        %v655 = vld [vmem:[%s5 + $0x18] sm:$0xf]
        %v656 = vld [vmem:[%s5 + $0x1c] sm:$0xf]
        %v657 = vld [vmem:[%s5 + $0x20] sm:$0xf]
        %v658 = vld [vmem:[%s5 + $0x24] sm:$0xf]
        %v659 = vld [vmem:[%s5 + $0x28] sm:$0xf]
        %v660 = vld [vmem:[%s5 + $0x2c] sm:$0xf]
        %v661 = vld [vmem:[%s5 + $0x30] sm:$0xf]
        %v662 = vld [vmem:[%s5 + $0x34] sm:$0xf]
        %v663 = vld [vmem:[%s5 + $0x38] sm:$0xf]
        %v664 = vld [vmem:[%s5 + $0x3c] sm:$0xf]
        %v665 = vld [vmem:[%s5 + $0x40] sm:$0xf]
        %v666 = vld [vmem:[%s5 + $0x44] sm:$0xf]
        %v667 = vld [vmem:[%s5 + $0x48] sm:$0xf]
        %v668 = vld [vmem:[%s5 + $0x4c] sm:$0xf]
        %v669 = vld [vmem:[%s5 + $0x50] sm:$0xf]
        %v670 = vld [vmem:[%s5 + $0x54] sm:$0xf]
        %v671 = vld [vmem:[%s5 + $0x58] sm:$0xf]
        %v672 = vld [vmem:[%s5 + $0x5c] sm:$0xf]
        %v673 = vld [vmem:[%s5 + $0x60] sm:$0xf]
        %v674 = vld [vmem:[%s5 + $0x64] sm:$0xf]
        %v675 = vld [vmem:[%s5 + $0x68] sm:$0xf]
        %v676 = vld [vmem:[%s5 + $0x6c] sm:$0xf]
        %v677 = vld [vmem:[%s5 + $0x70] sm:$0xf]
        %v678 = vld [vmem:[%s5 + $0x74] sm:$0xf]
        %v679 = vld [vmem:[%s5 + $0x78] sm:$0xf]
        %v680 = vld [vmem:[%s5 + $0x7c] sm:$0xf]
        %v681 = vld [vmem:[%s8] sm:$0x1]
        %v682 = vld [vmem:[%s9] sm:$0x1]
        %v683 = vpack.c.bf16 %v617, %v616
        %v684 = vpack.c.bf16 %v619, %v618
        %v685 = vpack.c.bf16 %v621, %v620
        %v686 = vpack.c.bf16 %v623, %v622
        %v687 = vpack.c.bf16 %v625, %v624
        %v688 = vpack.c.bf16 %v627, %v626
        %v689 = vpack.c.bf16 %v629, %v628
        %v690 = vpack.c.bf16 %v631, %v630
        %v692 = vperm.slane %v648, 0
        %v693 = vperm.slane %v648, 1
        %v712 = vunpack.c.l.b16 %v632
        %v713 = vunpack.c.h.b16 %v632
        %v714 = vunpack.c.l.b16 %v633
        %v715 = vunpack.c.h.b16 %v633
        %v716 = vunpack.c.l.b16 %v634
        %v717 = vunpack.c.h.b16 %v634
        %v718 = vunpack.c.l.b16 %v635
        %v719 = vunpack.c.h.b16 %v635
        %v720 = vunpack.c.l.b16 %v636
        %v721 = vunpack.c.h.b16 %v636
        %v722 = vunpack.c.l.b16 %v637
        %v723 = vunpack.c.h.b16 %v637
        %v724 = vunpack.c.l.b16 %v638
        %v725 = vunpack.c.h.b16 %v638
        %v726 = vunpack.c.l.b16 %v639
        %v727 = vunpack.c.h.b16 %v639
        %v728 = vunpack.c.l.b16 %v640
        %v729 = vunpack.c.h.b16 %v640
        %v730 = vunpack.c.l.b16 %v641
        %v731 = vunpack.c.h.b16 %v641
        %v732 = vunpack.c.l.b16 %v642
        %v733 = vunpack.c.h.b16 %v642
        %v734 = vunpack.c.l.b16 %v643
        %v735 = vunpack.c.h.b16 %v643
        %v736 = vunpack.c.l.b16 %v644
        %v737 = vunpack.c.h.b16 %v644
        %v738 = vunpack.c.l.b16 %v645
        %v739 = vunpack.c.h.b16 %v645
        %v740 = vunpack.c.l.b16 %v646
        %v741 = vunpack.c.h.b16 %v646
        %v742 = vunpack.c.l.b16 %v647
        %v743 = vunpack.c.h.b16 %v647
        %v744 = vpack.c.b16 %v714, %v712
        %v745 = vpack.c.b16 %v715, %v713
        %v746 = vpack.c.b16 %v718, %v716
        %v747 = vpack.c.b16 %v719, %v717
        %v748 = vpack.c.b16 %v722, %v720
        %v749 = vpack.c.b16 %v723, %v721
        %v750 = vpack.c.b16 %v726, %v724
        %v751 = vpack.c.b16 %v727, %v725
        %v752 = vpack.c.b16 %v730, %v728
        %v753 = vpack.c.b16 %v731, %v729
        %v754 = vpack.c.b16 %v734, %v732
        %v755 = vpack.c.b16 %v735, %v733
        %v756 = vpack.c.b16 %v738, %v736
        %v757 = vpack.c.b16 %v739, %v737
        %v758 = vpack.c.b16 %v742, %v740
        %v759 = vpack.c.b16 %v743, %v741
        %776 = vmatpush.bf16.msra.mxu0 %v758
        %777 = vmatpush.bf16.msra.mxu0 %v756
        %778 = vmatpush.bf16.msra.mxu0 %v754
        %779 = vmatpush.bf16.msra.mxu0 %v752
        %780 = vmatpush.bf16.msra.mxu0 %v750
        %781 = vmatpush.bf16.msra.mxu0 %v748
        %782 = vmatpush.bf16.msra.mxu0 %v746
        %783 = vmatpush.bf16.msra.mxu0 %v744
        %784 = vmatmul.bf16.gmra.mxu0 %v683
        %v785 = vpop.f32.mrf.mxu0
        %v786 = vadd.f32 %v692, %v785
        %v787 = vpop.f32.mrf.mxu0
        %v788 = vadd.f32 %v692, %v787
        %789 = vmatmul.bf16.gmra.mxu0 %v684
        %v790 = vpop.f32.mrf.mxu0
        %v791 = vadd.f32 %v692, %v790
        %v792 = vpop.f32.mrf.mxu0
        %v793 = vadd.f32 %v692, %v792
        %794 = vmatmul.bf16.gmra.mxu0 %v685
        %v795 = vpop.f32.mrf.mxu0
        %v796 = vadd.f32 %v692, %v795
        %v797 = vpop.f32.mrf.mxu0
        %v798 = vadd.f32 %v692, %v797
        %799 = vmatmul.bf16.gmra.mxu0 %v686
        %v800 = vpop.f32.mrf.mxu0
        %v801 = vadd.f32 %v692, %v800
        %v802 = vpop.f32.mrf.mxu0
        %v803 = vadd.f32 %v692, %v802
        %804 = vmatmul.bf16.gmra.mxu0 %v687
        %v805 = vpop.f32.mrf.mxu0
        %v806 = vadd.f32 %v692, %v805
        %v807 = vpop.f32.mrf.mxu0
        %v808 = vadd.f32 %v692, %v807
        %809 = vmatmul.bf16.gmra.mxu0 %v688
        %v810 = vpop.f32.mrf.mxu0
        %v811 = vadd.f32 %v692, %v810
        %v812 = vpop.f32.mrf.mxu0
        %v813 = vadd.f32 %v692, %v812
        %814 = vmatmul.bf16.gmra.mxu0 %v689
        %v815 = vpop.f32.mrf.mxu0
        %v816 = vadd.f32 %v692, %v815
        %v817 = vpop.f32.mrf.mxu0
        %v818 = vadd.f32 %v692, %v817
        %819 = vmatmul.bf16.gmra.mxu0 %v690
        %v820 = vpop.f32.mrf.mxu0
        %v821 = vadd.f32 %v692, %v820
        %v822 = vpop.f32.mrf.mxu0
        %v823 = vadd.f32 %v692, %v822
        %824 = vdwg.mxu0
        %825 = vmatpush.bf16.msra.mxu0 %v759
        %826 = vmatpush.bf16.msra.mxu0 %v757
        %827 = vmatpush.bf16.msra.mxu0 %v755
        %828 = vmatpush.bf16.msra.mxu0 %v753
        %829 = vmatpush.bf16.msra.mxu0 %v751
        %830 = vmatpush.bf16.msra.mxu0 %v749
        %831 = vmatpush.bf16.msra.mxu0 %v747
        %832 = vmatpush.bf16.msra.mxu0 %v745
        %833 = vmatmul.bf16.gmra.mxu0 %v683
        %v834 = vpop.f32.mrf.mxu0
        %v835 = vadd.f32 %v693, %v834
        %v836 = vpop.f32.mrf.mxu0
        %v837 = vadd.f32 %v693, %v836
        %838 = vmatmul.bf16.gmra.mxu0 %v684
        %v839 = vpop.f32.mrf.mxu0
        %v840 = vadd.f32 %v693, %v839
        %v841 = vpop.f32.mrf.mxu0
        %v842 = vadd.f32 %v693, %v841
        %843 = vmatmul.bf16.gmra.mxu0 %v685
        %v844 = vpop.f32.mrf.mxu0
        %v845 = vadd.f32 %v693, %v844
        %v846 = vpop.f32.mrf.mxu0
        %v847 = vadd.f32 %v693, %v846
        %848 = vmatmul.bf16.gmra.mxu0 %v686
        %v849 = vpop.f32.mrf.mxu0
        %v850 = vadd.f32 %v693, %v849
        %v851 = vpop.f32.mrf.mxu0
        %v852 = vadd.f32 %v693, %v851
        %853 = vmatmul.bf16.gmra.mxu0 %v687
        %v854 = vpop.f32.mrf.mxu0
        %v855 = vadd.f32 %v693, %v854
        %v856 = vpop.f32.mrf.mxu0
        %v857 = vadd.f32 %v693, %v856
        %858 = vmatmul.bf16.gmra.mxu0 %v688
        %v859 = vpop.f32.mrf.mxu0
        %v860 = vadd.f32 %v693, %v859
        %v861 = vpop.f32.mrf.mxu0
        %v862 = vadd.f32 %v693, %v861
        %863 = vmatmul.bf16.gmra.mxu0 %v689
        %v864 = vpop.f32.mrf.mxu0
        %v865 = vadd.f32 %v693, %v864
        %v866 = vpop.f32.mrf.mxu0
        %v867 = vadd.f32 %v693, %v866
        %868 = vmatmul.bf16.gmra.mxu0 %v690
        %v869 = vpop.f32.mrf.mxu0
        %v870 = vadd.f32 %v693, %v869
        %v871 = vpop.f32.mrf.mxu0
        %v872 = vadd.f32 %v693, %v871
        %873 = vdwg.mxu0
        %v874 = vmax.f32 %v786, 0.0
        %v875 = vmax.f32 %v835, 0.0
        %v876 = vmax.f32 %v788, 0.0
        %v877 = vmax.f32 %v837, 0.0
        %v878 = vmax.f32 %v791, 0.0
        %v879 = vmax.f32 %v840, 0.0
        %v880 = vmax.f32 %v793, 0.0
        %v881 = vmax.f32 %v842, 0.0
        %v882 = vmax.f32 %v796, 0.0
        %v883 = vmax.f32 %v845, 0.0
        %v884 = vmax.f32 %v798, 0.0
        %v885 = vmax.f32 %v847, 0.0
        %v886 = vmax.f32 %v801, 0.0
        %v887 = vmax.f32 %v850, 0.0
        %v888 = vmax.f32 %v803, 0.0
        %v889 = vmax.f32 %v852, 0.0
        %v890 = vmax.f32 %v806, 0.0
        %v891 = vmax.f32 %v855, 0.0
        %v892 = vmax.f32 %v808, 0.0
        %v893 = vmax.f32 %v857, 0.0
        %v894 = vmax.f32 %v811, 0.0
        %v895 = vmax.f32 %v860, 0.0
        %v896 = vmax.f32 %v813, 0.0
        %v897 = vmax.f32 %v862, 0.0
        %v898 = vmax.f32 %v816, 0.0
        %v899 = vmax.f32 %v865, 0.0
        %v900 = vmax.f32 %v818, 0.0
        %v901 = vmax.f32 %v867, 0.0
        %v902 = vmax.f32 %v821, 0.0
        %v903 = vmax.f32 %v870, 0.0
        %v904 = vmax.f32 %v823, 0.0
        %v905 = vmax.f32 %v872, 0.0
        %v906 = vpack.c.bf16 %v876, %v874
        %v907 = vpack.c.bf16 %v877, %v875
        %v908 = vpack.c.bf16 %v880, %v878
        %v909 = vpack.c.bf16 %v881, %v879
        %v910 = vpack.c.bf16 %v884, %v882
        %v911 = vpack.c.bf16 %v885, %v883
        %v912 = vpack.c.bf16 %v888, %v886
        %v913 = vpack.c.bf16 %v889, %v887
        %v914 = vpack.c.bf16 %v892, %v890
        %v915 = vpack.c.bf16 %v893, %v891
        %v916 = vpack.c.bf16 %v896, %v894
        %v917 = vpack.c.bf16 %v897, %v895
        %v918 = vpack.c.bf16 %v900, %v898
        %v919 = vpack.c.bf16 %v901, %v899
        %v920 = vpack.c.bf16 %v904, %v902
        %v921 = vpack.c.bf16 %v905, %v903
        %v954 = vunpack.c.l.b16 %v649
        %v955 = vunpack.c.l.b16 %v650
        %v956 = vunpack.c.l.b16 %v651
        %v957 = vunpack.c.l.b16 %v652
        %v958 = vunpack.c.l.b16 %v653
        %v959 = vunpack.c.l.b16 %v654
        %v960 = vunpack.c.l.b16 %v655
        %v961 = vunpack.c.l.b16 %v656
        %v962 = vunpack.c.l.b16 %v657
        %v963 = vunpack.c.l.b16 %v658
        %v964 = vunpack.c.l.b16 %v659
        %v965 = vunpack.c.l.b16 %v660
        %v966 = vunpack.c.l.b16 %v661
        %v967 = vunpack.c.l.b16 %v662
        %v968 = vunpack.c.l.b16 %v663
        %v969 = vunpack.c.l.b16 %v664
        %v970 = vunpack.c.l.b16 %v665
        %v971 = vunpack.c.l.b16 %v666
        %v972 = vunpack.c.l.b16 %v667
        %v973 = vunpack.c.l.b16 %v668
        %v974 = vunpack.c.l.b16 %v669
        %v975 = vunpack.c.l.b16 %v670
        %v976 = vunpack.c.l.b16 %v671
        %v977 = vunpack.c.l.b16 %v672
        %v978 = vunpack.c.l.b16 %v673
        %v979 = vunpack.c.l.b16 %v674
        %v980 = vunpack.c.l.b16 %v675
        %v981 = vunpack.c.l.b16 %v676
        %v982 = vunpack.c.l.b16 %v677
        %v983 = vunpack.c.l.b16 %v678
        %v984 = vunpack.c.l.b16 %v679
        %v985 = vunpack.c.l.b16 %v680
        %v986 = vpack.c.b16 %v955, %v954
        %v987 = vpack.c.b16 %v957, %v956
        %v988 = vpack.c.b16 %v959, %v958
        %v989 = vpack.c.b16 %v961, %v960
        %v990 = vpack.c.b16 %v963, %v962
        %v991 = vpack.c.b16 %v965, %v964
        %v992 = vpack.c.b16 %v967, %v966
        %v993 = vpack.c.b16 %v969, %v968
        %v994 = vpack.c.b16 %v971, %v970
        %v995 = vpack.c.b16 %v973, %v972
        %v996 = vpack.c.b16 %v975, %v974
        %v997 = vpack.c.b16 %v977, %v976
        %v998 = vpack.c.b16 %v979, %v978
        %v999 = vpack.c.b16 %v981, %v980
        %v1000 = vpack.c.b16 %v983, %v982
        %v1001 = vpack.c.b16 %v985, %v984
        %1018 = vmatpush.bf16.msra.mxu0 %v993
        %1019 = vmatpush.bf16.msra.mxu0 %v992
        %1020 = vmatpush.bf16.msra.mxu0 %v991
        %1021 = vmatpush.bf16.msra.mxu0 %v990
        %1022 = vmatpush.bf16.msra.mxu0 %v989
        %1023 = vmatpush.bf16.msra.mxu0 %v988
        %1024 = vmatpush.bf16.msra.mxu0 %v987
        %1025 = vmatpush.bf16.msra.mxu0 %v986
        %1026 = vmatmul.bf16.gmra.mxu0 %v906
        %v1027 = vpop.f32.mrf.mxu0
        %v1028 = vadd.f32 0.0, %v1027
        %v1029 = vpop.f32.mrf.mxu0
        %v1030 = vadd.f32 0.0, %v1029
        %1031 = vmatmul.bf16.gmra.mxu0 %v908
        %v1032 = vpop.f32.mrf.mxu0
        %v1033 = vadd.f32 0.0, %v1032
        %v1034 = vpop.f32.mrf.mxu0
        %v1035 = vadd.f32 0.0, %v1034
        %1036 = vmatmul.bf16.gmra.mxu0 %v910
        %v1037 = vpop.f32.mrf.mxu0
        %v1038 = vadd.f32 0.0, %v1037
        %v1039 = vpop.f32.mrf.mxu0
        %v1040 = vadd.f32 0.0, %v1039
        %1041 = vmatmul.bf16.gmra.mxu0 %v912
        %v1042 = vpop.f32.mrf.mxu0
        %v1043 = vadd.f32 0.0, %v1042
        %v1044 = vpop.f32.mrf.mxu0
        %v1045 = vadd.f32 0.0, %v1044
        %1046 = vmatmul.bf16.gmra.mxu0 %v914
        %v1047 = vpop.f32.mrf.mxu0
        %v1048 = vadd.f32 0.0, %v1047
        %v1049 = vpop.f32.mrf.mxu0
        %v1050 = vadd.f32 0.0, %v1049
        %1051 = vmatmul.bf16.gmra.mxu0 %v916
        %v1052 = vpop.f32.mrf.mxu0
        %v1053 = vadd.f32 0.0, %v1052
        %v1054 = vpop.f32.mrf.mxu0
        %v1055 = vadd.f32 0.0, %v1054
        %1056 = vmatmul.bf16.gmra.mxu0 %v918
        %v1057 = vpop.f32.mrf.mxu0
        %v1058 = vadd.f32 0.0, %v1057
        %v1059 = vpop.f32.mrf.mxu0
        %v1060 = vadd.f32 0.0, %v1059
        %1061 = vmatmul.bf16.gmra.mxu0 %v920
        %v1062 = vpop.f32.mrf.mxu0
        %v1063 = vadd.f32 0.0, %v1062
        %v1064 = vpop.f32.mrf.mxu0
        %v1065 = vadd.f32 0.0, %v1064
        %1066 = vdwg.mxu0
        %1067 = vmatpush.bf16.msra.mxu0 %v1001
        %1068 = vmatpush.bf16.msra.mxu0 %v1000
        %1069 = vmatpush.bf16.msra.mxu0 %v999
        %1070 = vmatpush.bf16.msra.mxu0 %v998
        %1071 = vmatpush.bf16.msra.mxu0 %v997
        %1072 = vmatpush.bf16.msra.mxu0 %v996
        %1073 = vmatpush.bf16.msra.mxu0 %v995
        %1074 = vmatpush.bf16.msra.mxu0 %v994
        %1075 = vmatmul.bf16.gmra.mxu0 %v907
        %v1076 = vpop.f32.mrf.mxu0
        %v1077 = vadd.f32 %v1028, %v1076
        %v1078 = vpop.f32.mrf.mxu0
        %v1079 = vadd.f32 %v1030, %v1078
        %1080 = vmatmul.bf16.gmra.mxu0 %v909
        %v1081 = vpop.f32.mrf.mxu0
        %v1082 = vadd.f32 %v1033, %v1081
        %v1083 = vpop.f32.mrf.mxu0
        %v1084 = vadd.f32 %v1035, %v1083
        %1085 = vmatmul.bf16.gmra.mxu0 %v911
        %v1086 = vpop.f32.mrf.mxu0
        %v1087 = vadd.f32 %v1038, %v1086
        %v1088 = vpop.f32.mrf.mxu0
        %v1089 = vadd.f32 %v1040, %v1088
        %1090 = vmatmul.bf16.gmra.mxu0 %v913
        %v1091 = vpop.f32.mrf.mxu0
        %v1092 = vadd.f32 %v1043, %v1091
        %v1093 = vpop.f32.mrf.mxu0
        %v1094 = vadd.f32 %v1045, %v1093
        %1095 = vmatmul.bf16.gmra.mxu0 %v915
        %v1096 = vpop.f32.mrf.mxu0
        %v1097 = vadd.f32 %v1048, %v1096
        %v1098 = vpop.f32.mrf.mxu0
        %v1099 = vadd.f32 %v1050, %v1098
        %1100 = vmatmul.bf16.gmra.mxu0 %v917
        %v1101 = vpop.f32.mrf.mxu0
        %v1102 = vadd.f32 %v1053, %v1101
        %v1103 = vpop.f32.mrf.mxu0
        %v1104 = vadd.f32 %v1055, %v1103
        %1105 = vmatmul.bf16.gmra.mxu0 %v919
        %v1106 = vpop.f32.mrf.mxu0
        %v1107 = vadd.f32 %v1058, %v1106
        %v1108 = vpop.f32.mrf.mxu0
        %v1109 = vadd.f32 %v1060, %v1108
        %1110 = vmatmul.bf16.gmra.mxu0 %v921
        %v1111 = vpop.f32.mrf.mxu0
        %v1112 = vadd.f32 %v1063, %v1111
        %v1113 = vpop.f32.mrf.mxu0
        %v1114 = vadd.f32 %v1065, %v1113
        %1115 = vdwg.mxu0
        %v1116 = vadd.f32 %v616, %v1077
        %v1117 = vadd.f32 %v617, %v1079
        %v1118 = vadd.f32 %v618, %v1082
        %v1119 = vadd.f32 %v619, %v1084
        %v1120 = vadd.f32 %v620, %v1087
        %v1121 = vadd.f32 %v621, %v1089
        %v1122 = vadd.f32 %v622, %v1092
        %v1123 = vadd.f32 %v623, %v1094
        %v1124 = vadd.f32 %v624, %v1097
        %v1125 = vadd.f32 %v625, %v1099
        %v1126 = vadd.f32 %v626, %v1102
        %v1127 = vadd.f32 %v627, %v1104
        %v1128 = vadd.f32 %v628, %v1107
        %v1129 = vadd.f32 %v629, %v1109
        %v1130 = vadd.f32 %v630, %v1112
        %v1131 = vadd.f32 %v631, %v1114
        %v1133 = vperm.slane %v681, 0
        %v1135 = vmul.f32 %v1116, %v1133
        %v1136 = vmul.f32 %v1117, %v1133
        %v1137 = vmul.f32 %v1118, %v1133
        %v1138 = vmul.f32 %v1119, %v1133
        %v1139 = vmul.f32 %v1120, %v1133
        %v1140 = vmul.f32 %v1121, %v1133
        %v1141 = vmul.f32 %v1122, %v1133
        %v1142 = vmul.f32 %v1123, %v1133
        %v1143 = vmul.f32 %v1124, %v1133
        %v1144 = vmul.f32 %v1125, %v1133
        %v1145 = vmul.f32 %v1126, %v1133
        %v1146 = vmul.f32 %v1127, %v1133
        %v1147 = vmul.f32 %v1128, %v1133
        %v1148 = vmul.f32 %v1129, %v1133
        %v1149 = vmul.f32 %v1130, %v1133
        %v1150 = vmul.f32 %v1131, %v1133
        %v1152 = vperm.slane %v682, 0
        %v1154 = vadd.f32 %v1135, %v1152
        %v1155 = vadd.f32 %v1136, %v1152
        %v1156 = vadd.f32 %v1137, %v1152
        %v1157 = vadd.f32 %v1138, %v1152
        %v1158 = vadd.f32 %v1139, %v1152
        %v1159 = vadd.f32 %v1140, %v1152
        %v1160 = vadd.f32 %v1141, %v1152
        %v1161 = vadd.f32 %v1142, %v1152
        %v1162 = vadd.f32 %v1143, %v1152
        %v1163 = vadd.f32 %v1144, %v1152
        %v1164 = vadd.f32 %v1145, %v1152
        %v1165 = vadd.f32 %v1146, %v1152
        %v1166 = vadd.f32 %v1147, %v1152
        %v1167 = vadd.f32 %v1148, %v1152
        %v1168 = vadd.f32 %v1149, %v1152
        %v1169 = vadd.f32 %v1150, %v1152
        %1170 = vst [vmem:[%s369] sm:$0xff] %v1154
        %1171 = vst [vmem:[%s369 + $0x8] sm:$0xff] %v1155
        %1172 = vst [vmem:[%s369 + $0x10] sm:$0xff] %v1156
        %1173 = vst [vmem:[%s369 + $0x18] sm:$0xff] %v1157
        %1174 = vst [vmem:[%s369 + $0x20] sm:$0xff] %v1158
        %1175 = vst [vmem:[%s369 + $0x28] sm:$0xff] %v1159
        %1176 = vst [vmem:[%s369 + $0x30] sm:$0xff] %v1160
        %1177 = vst [vmem:[%s369 + $0x38] sm:$0xff] %v1161
        %1178 = vst [vmem:[%s369 + $0x40] sm:$0xff] %v1162
        %1179 = vst [vmem:[%s369 + $0x48] sm:$0xff] %v1163
        %1180 = vst [vmem:[%s369 + $0x50] sm:$0xff] %v1164
        %1181 = vst [vmem:[%s369 + $0x58] sm:$0xff] %v1165
        %1182 = vst [vmem:[%s369 + $0x60] sm:$0xff] %v1166
        %1183 = vst [vmem:[%s369 + $0x68] sm:$0xff] %v1167
        %1184 = vst [vmem:[%s369 + $0x70] sm:$0xff] %v1168
        %1185 = vst [vmem:[%s369 + $0x78] sm:$0xff] %v1169
        %s1186 = sand.u32 %s252, 1
        %s1187 = scalar_lea.sflag [#allocation3], %s1186
        %s1188 = sand.u32 %s252, 1
        %s1189 = smul.addr %s1188, 128
        %s1190 = scalar_lea.vmem [#allocation2], %s1189
        // Predicated region
        $region61: #{graph_transformer_layer.7} parent=59 // pred_check
          %p1191 = pneg %p262
        $region62: #{graph_transformer_layer.7} parent=59 // pred_check_branch
          %1193 = sbr.rel (%p1191) target = $region64
        $region63: #{graph_transformer_layer.7} parent=59 // pred_region
          %s1194 = smul.u32 16, %s24
          %1196 = vsyncadd %s1187, 0
          %s1197 = smul.addr %s1194, 8
          %s1198 = scalar_lea.hbm %s10, %s1197
          %s1199 = sshll.u32 %s1190, 4
          %s1200 = int_to_ptr.vmem [resolvable:$true] %s1199
          %s1201 = sshll.u32 %s1198, 4
          %s1202 = int_to_ptr.hbm [resolvable:$true] %s1201
          %1207 = dma.vmem_to_hbm [thread:$0]  %s1200, 2048, %s1202, %s1187, 128, 128, 8
        $region64: #{graph_transformer_layer.7} parent=59 // pred_fallthru
          _
      $region60: #{graph_transformer_layer.7} parent=5 // pred_fallthru
        _
      %p1208 = scmp.le.s32.totalorder 2, %s19
      // Predicated region
      $region65: #{graph_transformer_layer.7} parent=5 // pred_check
        %p1209 = pneg %p1208
      $region66: #{graph_transformer_layer.7} parent=5 // pred_check_branch
        %1211 = sbr.rel (%p1209) target = $region68
      $region67: #{graph_transformer_layer.7} parent=5 // pred_region
        %s1212 = ssub.s32 %s19, 2
        // Predicated region
        $region69: #{graph_transformer_layer.7} parent=67 // pred_check
          %p1213 = pneg %p268
        $region70: #{graph_transformer_layer.7} parent=67 // pred_check_branch
          %1215 = sbr.rel (%p1213) target = $region72
        $region71: #{graph_transformer_layer.7} parent=67 // pred_region
          %s1216 = sand.u32 %s253, 1
          %s1217 = scalar_lea.sflag [#allocation3], %s1216
          %s1218 = sand.u32 %s253, 1
          %s1219 = smul.addr %s1218, 128
          %s1220 = scalar_lea.vmem [#allocation2], %s1219
          %1222 = dma.done %s1217, 2048
        $region72: #{graph_transformer_layer.7} parent=67 // pred_fallthru
          _
      $region68: #{graph_transformer_layer.7} parent=5 // pred_fallthru
        _
    $region6: #{graph_transformer_layer.7} parent=1 // loop_footer
      %s23 = sadd.s32 1, %s19
    $region7: #{graph_transformer_layer.7} parent=1 // loop_footer_branch
      %18 = sbr.rel target = $region3
    $region8: #{graph_transformer_layer.7} parent=1 // loop_exit
      _
    %1223 = vsyncpa [#allocation3], 1
    %s1224 = scalar_lea.sflag [#allocation3], 1
    %1225 = vsyncpa %s1224, 1

</llo_original>
